<compile_context>
chip_gen: v6e
topology: v6e:2x2x1
jax: 0.10.0
libtpu: 0.0.40
codegen_flags: <defaults>
</compile_context>

<pallas_src>
import functools

import jax
import jax.numpy as jnp
from jax import lax
from jax.experimental import pallas as pl
from jax.experimental.pallas import tpu as pltpu


def _round_up(n, m):
    return ((n + m - 1) // m) * m


def _pick_pack_factor(cout, divisors):
    """Largest power-of-two r with r*cout == multiple of 128 (lane-dense output
    rows) that divides every value in `divisors`; falls back to 1."""
    if cout >= 128 or 128 % cout != 0:
        return 1
    r = 128 // cout
    while r > 1 and any(d % r for d in divisors):
        r //= 2
    return r


# ---------------------------------------------------------------------------
# Fused 3x3 conv (BN scale pre-folded into W) + bias + ReLU
# ---------------------------------------------------------------------------
def _conv_bias_relu_kernel(x_ref, w_ref, b_ref, o_ref, *, n_taps, shift):
    """One batch image per grid step.

    x_ref : (rows_in_p,  r*K)    packed activation rows (r tokens per row)
    w_ref : (n_taps, r*K, r*N)   block-diagonal weights (BN scale folded in)
    b_ref : (1, r*N)             folded BN bias (f32)
    o_ref : (rows_out_p, r*N)    lane-dense output rows
    """
    rows = o_ref.shape[0]
    acc = jnp.dot(x_ref[0:rows, :], w_ref[0],
                  preferred_element_type=jnp.float32)
    for t in range(1, n_taps):                      # vertical taps, in-kernel
        acc = acc + jnp.dot(x_ref[t * shift:t * shift + rows, :], w_ref[t],
                            preferred_element_type=jnp.float32)
    acc = acc + b_ref[...]                          # folded BN bias (f32, VPU)
    o_ref[...] = jnp.maximum(acc, 0.0).astype(o_ref.dtype)


def _conv_stage(x_nhwc, w_oihw, scale, bias, *, stride, compute_dtype):
    b, h, w, cin = x_nhwc.shape
    cout = w_oihw.shape[0]
    oh = (h + 2 - 3) // stride + 1
    ow = (w + 2 - 3) // stride + 1
    cdt = compute_dtype if compute_dtype is not None else x_nhwc.dtype
    out_dtype = x_nhwc.dtype

    # Fold the BN scale into the conv weight (exact in eval mode).
    w_f = (w_oihw * scale[:, None, None, None]).astype(jnp.float32)
    w_hwio = jnp.transpose(w_f, (2, 3, 1, 0))        # (ky, kx, cin, cout)

    # Cast before the patch build so the expanded intermediate is already bf16.
    xp = jnp.pad(x_nhwc, ((0, 0), (1, 1), (1, 1), (0, 0))).astype(cdt)

    if stride == 1:
        # Horizontal (dx) taps in the wrapper -> 3x rowpatch; vertical (dy)
        # taps accumulated inside the kernel via row-shifted slices.
        rp = jnp.concatenate([xp[:, :, dx:dx + ow, :] for dx in range(3)],
                             axis=-1)                # (B, H+2, W, 3*Cin)
        n_taps, k = 3, 3 * cin
        rows_in = (h + 2) * ow
        w_taps = w_hwio.reshape(3, 3 * cin, cout)    # [dy, dx*cin+ci, co]
        divisors = (ow, rows_in, oh * ow)
    else:
        # Stride-2 stem (Cin == 3): full im2col is cheap -> single matmul tap.
        slabs = [xp[:, dy:dy + stride * (oh - 1) + 1:stride,
                       dx:dx + stride * (ow - 1) + 1:stride, :]
                 for dy in range(3) for dx in range(3)]
        rp = jnp.concatenate(slabs, axis=-1)         # (B, OH, OW, 9*Cin)
        n_taps, k = 1, 9 * cin
        rows_in = oh * ow
        w_taps = w_hwio.reshape(1, 9 * cin, cout)    # [0, (dy*3+dx)*cin+ci, co]
        divisors = (rows_in, oh * ow)

    # Align the per-token feature width (zero features hit zero weight rows).
    k_al = _round_up(k, 16)
    if k_al != k:
        rp = jnp.pad(rp, ((0, 0), (0, 0), (0, 0), (0, k_al - k)))
        w_taps = jnp.pad(w_taps, ((0, 0), (0, k_al - k), (0, 0)))

    rows_out = oh * ow
    # Lane-dense packing: r consecutive output tokens per stored row.
    r = _pick_pack_factor(cout, divisors)
    shift = (ow // r) if stride == 1 else 0          # dy shift in packed rows

    # Packed lhs: free row-major reshape, r tokens' features per row.
    lhs = rp.reshape(b, rows_in // r, r * k_al)

    # Block-diagonal weights so the MXU emits lane-packed output rows directly
    # (no in-kernel reshape, stores are full-128-lane vst).
    eye = jnp.eye(r, dtype=jnp.float32)
    w_bd = (w_taps[:, None, :, None, :] * eye[None, :, None, :, None])
    w_bd = w_bd.reshape(n_taps, r * k_al, r * cout).astype(cdt)
    bias_p = jnp.tile(bias.astype(jnp.float32).reshape(1, cout), (1, r))

    kernel = functools.partial(_conv_bias_relu_kernel, n_taps=n_taps,
                               shift=shift)
    flops = 2 * b * (rows_out // r) * (r * k_al) * (r * cout) * n_taps
    bytes_acc = (lhs.size * lhs.dtype.itemsize
                 + w_bd.size * w_bd.dtype.itemsize
                 + bias_p.size * 4
                 + b * rows_out * cout * jnp.dtype(out_dtype).itemsize)

    out = pl.pallas_call(
        kernel,
        out_shape=jax.ShapeDtypeStruct((b, rows_out // r, r * cout), out_dtype),
        grid_spec=pltpu.PrefetchScalarGridSpec(
            num_scalar_prefetch=0,
            grid=(b,),
            in_specs=[
                pl.BlockSpec((None, rows_in // r, r * k_al),
                             lambda i: (i, 0, 0)),
                # Weights / bias: constant index maps -> DMA'd once and kept
                # VMEM-resident for the whole grid.
                pl.BlockSpec((n_taps, r * k_al, r * cout),
                             lambda i: (0, 0, 0)),
                pl.BlockSpec((1, r * cout), lambda i: (0, 0)),
            ],
            out_specs=pl.BlockSpec((None, rows_out // r, r * cout),
                                   lambda i: (i, 0, 0)),
        ),
        compiler_params=pltpu.CompilerParams(
            dimension_semantics=("parallel",),        # shards batch on v7x
            vmem_limit_bytes=32 * 1024 * 1024,        # safe on v7x's 64 MiB
        ),
        cost_estimate=pl.CostEstimate(flops=flops, transcendentals=0,
                                      bytes_accessed=bytes_acc),
    )(lhs, w_bd, bias_p)

    # Packed (rows_out//r, r*cout) rows are byte-identical to (rows_out, cout).
    return out.reshape(b, oh, ow, cout)


# ---------------------------------------------------------------------------
# MaxPool2d(3x3, stride 2, padding 1) via even/odd parity split (no 9x stack)
# ---------------------------------------------------------------------------
def _maxpool3x3_kernel(ee_ref, eo_ref, oe_ref, oo_ref, o_ref, *, oh, ow):
    m = ee_ref[0:oh, 0:ow]
    m = jnp.maximum(m, eo_ref[0:oh, 0:ow])
    m = jnp.maximum(m, ee_ref[0:oh, 1:ow + 1])
    m = jnp.maximum(m, oe_ref[0:oh, 0:ow])
    m = jnp.maximum(m, oo_ref[0:oh, 0:ow])
    m = jnp.maximum(m, oe_ref[0:oh, 1:ow + 1])
    m = jnp.maximum(m, ee_ref[1:oh + 1, 0:ow])
    m = jnp.maximum(m, eo_ref[1:oh + 1, 0:ow])
    m = jnp.maximum(m, ee_ref[1:oh + 1, 1:ow + 1])
    o_ref[...] = m


def _maxpool3x3_s2(y_nhwc):
    b, h, w, c = y_nhwc.shape
    oh = (h + 2 - 3) // 2 + 1
    ow = (w + 2 - 3) // 2 + 1
    hp = _round_up(h + 2, 2)
    wp = _round_up(w + 2, 2)

    yp = jnp.pad(y_nhwc, ((0, 0), (1, hp - h - 1), (1, wp - w - 1), (0, 0)),
                 constant_values=-jnp.inf)
    # One cheap parity pass instead of the old (9, M, C) candidate stack.
    ee = yp[:, 0::2, 0::2, :]
    eo = yp[:, 0::2, 1::2, :]
    oe = yp[:, 1::2, 0::2, :]
    oo = yp[:, 1::2, 1::2, :]
    hp2, wp2 = hp // 2, wp // 2

    # TODO(synk): fuse the pool into the stage-3 epilogue and lane-pack the
    # C=64 output rows to avoid the remaining masked stores.
    in_spec = pl.BlockSpec((None, hp2, wp2, c), lambda i: (i, 0, 0, 0))
    out = pl.pallas_call(
        functools.partial(_maxpool3x3_kernel, oh=oh, ow=ow),
        out_shape=jax.ShapeDtypeStruct((b, oh, ow, c), y_nhwc.dtype),
        grid_spec=pltpu.PrefetchScalarGridSpec(
            num_scalar_prefetch=0,
            grid=(b,),
            in_specs=[in_spec, in_spec, in_spec, in_spec],
            out_specs=pl.BlockSpec((None, oh, ow, c), lambda i: (i, 0, 0, 0)),
        ),
        compiler_params=pltpu.CompilerParams(
            dimension_semantics=("parallel",),
            vmem_limit_bytes=32 * 1024 * 1024,
        ),
    )(ee, eo, oe, oo)
    return out


# ---------------------------------------------------------------------------
# Top level
# ---------------------------------------------------------------------------
def _fold_bn(gamma, beta, mean, var, eps=1e-5):
    scale = gamma / jnp.sqrt(var + eps)
    return scale, beta - mean * scale


@functools.partial(jax.jit, static_argnames=("compute_dtype",))
def conv_tokenizer_pallas(x_nchw, params, *, compute_dtype="bfloat16"):
    """ConvTokenizer forward.

    x_nchw: (B, 3, H, W).  params: 3 stages of
      (conv_weight (Cout,Cin,3,3), bn_gamma, bn_beta, bn_mean, bn_var).
    compute_dtype: matmul operand dtype (f32 accumulation either way);
      None -> keep the input dtype (exact path).
    """
    cdt = jnp.dtype(compute_dtype) if compute_dtype is not None else None
    y = jnp.transpose(x_nchw, (0, 2, 3, 1))          # NCHW -> NHWC (lanes = C)
    strides = (2, 1, 1)
    for (wgt, g, bt, mu, var), s in zip(params, strides):
        scale, bias = _fold_bn(g, bt, mu, var)
        y = _conv_stage(y, wgt, scale, bias, stride=s, compute_dtype=cdt)
    y = _maxpool3x3_s2(y)
    return jnp.transpose(y, (0, 3, 1, 2))            # back to NCHW


def conv_tokenizer_reference(x_nchw, params, eps=1e-5):
    """Pure-JAX reference (eval-mode BN), for verification."""
    y = x_nchw
    strides = (2, 1, 1)
    for (w, g, bt, mu, var), s in zip(params, strides):
        y = lax.conv_general_dilated(
            y, w, window_strides=(s, s), padding=((1, 1), (1, 1)),
            dimension_numbers=("NCHW", "OIHW", "NCHW"))
        y = (y - mu[None, :, None, None]) / jnp.sqrt(var + eps)[None, :, None, None]
        y = y * g[None, :, None, None] + bt[None, :, None, None]
        y = jnp.maximum(y, 0.0)
    y = lax.reduce_window(y, -jnp.inf, lax.max,
                          window_dimensions=(1, 1, 3, 3),
                          window_strides=(1, 1, 2, 2),
                          padding=((0, 0), (0, 0), (1, 1), (1, 1)))
    return y


if __name__ == "__main__":
    B, C_IN, H, W = 2, 3, 16, 16
    EMBED = 64

    key = jax.random.PRNGKey(0)
    keys = jax.random.split(key, 4)

    x = jax.random.normal(keys[0], (B, C_IN, H, W), dtype=jnp.float32)

    def make_stage(k, cin, cout):
        kw, kg, kb, km, kv = jax.random.split(k, 5)
        wgt = jax.random.normal(kw, (cout, cin, 3, 3), dtype=jnp.float32) * 0.1
        gamma = 1.0 + 0.1 * jax.random.normal(kg, (cout,), dtype=jnp.float32)
        beta = 0.1 * jax.random.normal(kb, (cout,), dtype=jnp.float32)
        mean = 0.1 * jax.random.normal(km, (cout,), dtype=jnp.float32)
        var = jax.random.uniform(kv, (cout,), dtype=jnp.float32,
                                 minval=0.5, maxval=1.5)
        return (wgt, gamma, beta, mean, var)

    params = (make_stage(keys[1], C_IN, EMBED // 2),
              make_stage(keys[2], EMBED // 2, EMBED // 2),
              make_stage(keys[3], EMBED // 2, EMBED))

    ref = conv_tokenizer_reference(x, params)

    # Exact (f32-operand) path: tight check.
    out_f32 = jax.block_until_ready(
        conv_tokenizer_pallas(x, params, compute_dtype=None))
    assert out_f32.shape == (B, EMBED, H // 4, W // 4), out_f32.shape
    err32 = float(jnp.max(jnp.abs(out_f32 - ref)))
    assert jnp.allclose(out_f32, ref, atol=1e-3, rtol=1e-3), (
        "f32 max abs err = %f" % err32)

    # Default bf16-operand path (f32 accumulation): loosened tolerance.
    out_bf16 = jax.block_until_ready(conv_tokenizer_pallas(x, params))
    errbf = float(jnp.max(jnp.abs(out_bf16 - ref)))
    assert jnp.allclose(out_bf16, ref, atol=2e-1, rtol=5e-2), (
        "bf16 max abs err = %f" % errbf)

    print("KERNEL_OK")
</pallas_src>

<mosaic_0001>
module attributes {stable_mosaic.version = 11 : i64} {
  func.func @_conv_bias_relu_kernel(%arg0: i32, %arg1: memref<1x16x128xf32, #tpu.memory_space<vmem>>, %arg2: memref<1x128x128xf32, #tpu.memory_space<vmem>>, %arg3: memref<1x128xf32, #tpu.memory_space<vmem>>, %arg4: memref<1x16x128xf32, #tpu.memory_space<vmem>>) attributes {dimension_semantics = [#tpu.dimension_semantics<parallel>], iteration_bounds = array<i64: 2>, scalar_prefetch = 0 : i64, scratch_operands = 0 : i64, tpu.core_type = #tpu.core_type<tc>, window_params = [{transform_indices = @transform_0, window_bounds = array<i64: 1, 16, 128>}, {pipeline_mode = #tpu.pipeline_mode<synchronous>, transform_indices = @transform_1, window_bounds = array<i64: 1, 128, 128>}, {pipeline_mode = #tpu.pipeline_mode<synchronous>, transform_indices = @transform_2, window_bounds = array<i64: 1, 128>}, {transform_indices = @transform_3, window_bounds = array<i64: 1, 16, 128>}]} {
    %c0 = arith.constant 0 : index
    %c0_0 = arith.constant 0 : index
    %c0_1 = arith.constant 0 : index
    %0 = vector.load %arg1[%c0, %c0_0, %c0_1] : memref<1x16x128xf32, #tpu.memory_space<vmem>>, vector<1x16x128xf32>
    %1 = vector.shape_cast %0 : vector<1x16x128xf32> to vector<16x128xf32>
    %c0_2 = arith.constant 0 : index
    %c0_3 = arith.constant 0 : index
    %c0_4 = arith.constant 0 : index
    %2 = vector.load %arg2[%c0_2, %c0_3, %c0_4] : memref<1x128x128xf32, #tpu.memory_space<vmem>>, vector<1x128x128xf32>
    %3 = vector.shape_cast %2 : vector<1x128x128xf32> to vector<128x128xf32>
    %cst = arith.constant dense<0.000000e+00> : vector<16x128xf32>
    %4 = tpu.matmul %1, %3, %cst {dimension_numbers = #tpu.dot_dimension_numbers<[1], [0], [0], [1], [0, 0, 1, 1], [], []>} : vector<16x128xf32>, vector<128x128xf32>, vector<16x128xf32> -> vector<16x128xf32>
    %c0_5 = arith.constant 0 : index
    %c0_6 = arith.constant 0 : index
    %5 = vector.load %arg3[%c0_5, %c0_6] : memref<1x128xf32, #tpu.memory_space<vmem>>, vector<1x128xf32>
    %6 = vector.broadcast %5 : vector<1x128xf32> to vector<16x128xf32>
    %7 = arith.addf %4, %6 : vector<16x128xf32>
    %cst_7 = arith.constant 0.000000e+00 : f32
    %8 = vector.broadcast %cst_7 : f32 to vector<16x128xf32>
    %9 = arith.maximumf %7, %8 : vector<16x128xf32>
    %c0_8 = arith.constant 0 : index
    %c0_9 = arith.constant 0 : index
    %c0_10 = arith.constant 0 : index
    %10 = vector.load %arg4[%c0_8, %c0_9, %c0_10] : memref<1x16x128xf32, #tpu.memory_space<vmem>>, vector<1x16x128xf32>
    %11 = vector.shape_cast %10 : vector<1x16x128xf32> to vector<16x128xf32>
    %12 = vector.shape_cast %9 : vector<16x128xf32> to vector<1x16x128xf32>
    tpu.vector_store %arg4[%c0_8, %c0_9, %c0_10], %12 {strides = array<i32>} : memref<1x16x128xf32, #tpu.memory_space<vmem>>, vector<1x16x128xf32>,
    return
  }
  func.func @transform_0(%arg0: i32) -> (i32, i32, i32) {
    %c0_i32 = arith.constant 0 : i32
    %c0_i32_0 = arith.constant 0 : i32
    %c0_i32_1 = arith.constant 0 : i32
    return %arg0, %c0_i32, %c0_i32_0 : i32, i32, i32
  }
  func.func @transform_1(%arg0: i32) -> (i32, i32, i32) {
    %c0_i32 = arith.constant 0 : i32
    %c0_i32_0 = arith.constant 0 : i32
    %c0_i32_1 = arith.constant 0 : i32
    %c0_i32_2 = arith.constant 0 : i32
    return %c0_i32, %c0_i32_0, %c0_i32_1 : i32, i32, i32
  }
  func.func @transform_2(%arg0: i32) -> (i32, i32) {
    %c0_i32 = arith.constant 0 : i32
    %c0_i32_0 = arith.constant 0 : i32
    %c0_i32_1 = arith.constant 0 : i32
    return %c0_i32, %c0_i32_0 : i32, i32
  }
  func.func @transform_3(%arg0: i32) -> (i32, i32, i32) {
    %c0_i32 = arith.constant 0 : i32
    %c0_i32_0 = arith.constant 0 : i32
    %c0_i32_1 = arith.constant 0 : i32
    return %arg0, %c0_i32, %c0_i32_0 : i32, i32, i32
  }
}

module attributes {stable_mosaic.version = 11 : i64} {
  func.func @_conv_bias_relu_kernel(%arg0: i32, %arg1: memref<1x20x384xf32, #tpu.memory_space<vmem>>, %arg2: memref<3x384x128xf32, #tpu.memory_space<vmem>>, %arg3: memref<1x128xf32, #tpu.memory_space<vmem>>, %arg4: memref<1x16x128xf32, #tpu.memory_space<vmem>>) attributes {dimension_semantics = [#tpu.dimension_semantics<parallel>], iteration_bounds = array<i64: 2>, scalar_prefetch = 0 : i64, scratch_operands = 0 : i64, tpu.core_type = #tpu.core_type<tc>, window_params = [{transform_indices = @transform_0, window_bounds = array<i64: 1, 20, 384>}, {pipeline_mode = #tpu.pipeline_mode<synchronous>, transform_indices = @transform_1, window_bounds = array<i64: 3, 384, 128>}, {pipeline_mode = #tpu.pipeline_mode<synchronous>, transform_indices = @transform_2, window_bounds = array<i64: 1, 128>}, {transform_indices = @transform_3, window_bounds = array<i64: 1, 16, 128>}]} {
    %c0 = arith.constant 0 : index
    %c0_0 = arith.constant 0 : index
    %c0_1 = arith.constant 0 : index
    %0 = vector.load %arg1[%c0, %c0_0, %c0_1] : memref<1x20x384xf32, #tpu.memory_space<vmem>>, vector<1x16x384xf32>
    %1 = vector.shape_cast %0 : vector<1x16x384xf32> to vector<16x384xf32>
    %c0_2 = arith.constant 0 : index
    %c0_3 = arith.constant 0 : index
    %c0_4 = arith.constant 0 : index
    %2 = vector.load %arg2[%c0_2, %c0_3, %c0_4] : memref<3x384x128xf32, #tpu.memory_space<vmem>>, vector<1x384x128xf32>
    %3 = vector.shape_cast %2 : vector<1x384x128xf32> to vector<384x128xf32>
    %cst = arith.constant dense<0.000000e+00> : vector<16x128xf32>
    %4 = tpu.matmul %1, %3, %cst {dimension_numbers = #tpu.dot_dimension_numbers<[1], [0], [0], [1], [0, 0, 1, 1], [], []>} : vector<16x384xf32>, vector<384x128xf32>, vector<16x128xf32> -> vector<16x128xf32>
    %c0_5 = arith.constant 0 : index
    %c2 = arith.constant 2 : index
    %c0_6 = arith.constant 0 : index
    %5 = vector.load %arg1[%c0_5, %c2, %c0_6] : memref<1x20x384xf32, #tpu.memory_space<vmem>>, vector<1x16x384xf32>
    %6 = vector.shape_cast %5 : vector<1x16x384xf32> to vector<16x384xf32>
    %c1 = arith.constant 1 : index
    %c0_7 = arith.constant 0 : index
    %c0_8 = arith.constant 0 : index
    %7 = vector.load %arg2[%c1, %c0_7, %c0_8] : memref<3x384x128xf32, #tpu.memory_space<vmem>>, vector<1x384x128xf32>
    %8 = vector.shape_cast %7 : vector<1x384x128xf32> to vector<384x128xf32>
    %cst_9 = arith.constant dense<0.000000e+00> : vector<16x128xf32>
    %9 = tpu.matmul %6, %8, %cst_9 {dimension_numbers = #tpu.dot_dimension_numbers<[1], [0], [0], [1], [0, 0, 1, 1], [], []>} : vector<16x384xf32>, vector<384x128xf32>, vector<16x128xf32> -> vector<16x128xf32>
    %10 = arith.addf %4, %9 : vector<16x128xf32>
    %c0_10 = arith.constant 0 : index
    %c4 = arith.constant 4 : index
    %c0_11 = arith.constant 0 : index
    %11 = vector.load %arg1[%c0_10, %c4, %c0_11] : memref<1x20x384xf32, #tpu.memory_space<vmem>>, vector<1x16x384xf32>
    %12 = vector.shape_cast %11 : vector<1x16x384xf32> to vector<16x384xf32>
    %c2_12 = arith.constant 2 : index
    %c0_13 = arith.constant 0 : index
    %c0_14 = arith.constant 0 : index
    %13 = vector.load %arg2[%c2_12, %c0_13, %c0_14] : memref<3x384x128xf32, #tpu.memory_space<vmem>>, vector<1x384x128xf32>
    %14 = vector.shape_cast %13 : vector<1x384x128xf32> to vector<384x128xf32>
    %cst_15 = arith.constant dense<0.000000e+00> : vector<16x128xf32>
    %15 = tpu.matmul %12, %14, %cst_15 {dimension_numbers = #tpu.dot_dimension_numbers<[1], [0], [0], [1], [0, 0, 1, 1], [], []>} : vector<16x384xf32>, vector<384x128xf32>, vector<16x128xf32> -> vector<16x128xf32>
    %16 = arith.addf %10, %15 : vector<16x128xf32>
    %c0_16 = arith.constant 0 : index
    %c0_17 = arith.constant 0 : index
    %17 = vector.load %arg3[%c0_16, %c0_17] : memref<1x128xf32, #tpu.memory_space<vmem>>, vector<1x128xf32>
    %18 = vector.broadcast %17 : vector<1x128xf32> to vector<16x128xf32>
    %19 = arith.addf %16, %18 : vector<16x128xf32>
    %cst_18 = arith.constant 0.000000e+00 : f32
    %20 = vector.broadcast %cst_18 : f32 to vector<16x128xf32>
    %21 = arith.maximumf %19, %20 : vector<16x128xf32>
    %c0_19 = arith.constant 0 : index
    %c0_20 = arith.constant 0 : index
    %c0_21 = arith.constant 0 : index
    %22 = vector.load %arg4[%c0_19, %c0_20, %c0_21] : memref<1x16x128xf32, #tpu.memory_space<vmem>>, vector<1x16x128xf32>
    %23 = vector.shape_cast %22 : vector<1x16x128xf32> to vector<16x128xf32>
    %24 = vector.shape_cast %21 : vector<16x128xf32> to vector<1x16x128xf32>
    tpu.vector_store %arg4[%c0_19, %c0_20, %c0_21], %24 {strides = array<i32>} : memref<1x16x128xf32, #tpu.memory_space<vmem>>, vector<1x16x128xf32>,
    return
  }
  func.func @transform_0(%arg0: i32) -> (i32, i32, i32) {
    %c0_i32 = arith.constant 0 : i32
    %c0_i32_0 = arith.constant 0 : i32
    %c0_i32_1 = arith.constant 0 : i32
    return %arg0, %c0_i32, %c0_i32_0 : i32, i32, i32
  }
  func.func @transform_1(%arg0: i32) -> (i32, i32, i32) {
    %c0_i32 = arith.constant 0 : i32
    %c0_i32_0 = arith.constant 0 : i32
    %c0_i32_1 = arith.constant 0 : i32
    %c0_i32_2 = arith.constant 0 : i32
    return %c0_i32, %c0_i32_0, %c0_i32_1 : i32, i32, i32
  }
  func.func @transform_2(%arg0: i32) -> (i32, i32) {
    %c0_i32 = arith.constant 0 : i32
    %c0_i32_0 = arith.constant 0 : i32
    %c0_i32_1 = arith.constant 0 : i32
    return %c0_i32, %c0_i32_0 : i32, i32
  }
  func.func @transform_3(%arg0: i32) -> (i32, i32, i32) {
    %c0_i32 = arith.constant 0 : i32
    %c0_i32_0 = arith.constant 0 : i32
    %c0_i32_1 = arith.constant 0 : i32
    return %arg0, %c0_i32, %c0_i32_0 : i32, i32, i32
  }
}

module attributes {stable_mosaic.version = 11 : i64} {
  func.func @_conv_bias_relu_kernel(%arg0: i32, %arg1: memref<1x40x192xf32, #tpu.memory_space<vmem>>, %arg2: memref<3x192x128xf32, #tpu.memory_space<vmem>>, %arg3: memref<1x128xf32, #tpu.memory_space<vmem>>, %arg4: memref<1x32x128xf32, #tpu.memory_space<vmem>>) attributes {dimension_semantics = [#tpu.dimension_semantics<parallel>], iteration_bounds = array<i64: 2>, scalar_prefetch = 0 : i64, scratch_operands = 0 : i64, tpu.core_type = #tpu.core_type<tc>, window_params = [{transform_indices = @transform_0, window_bounds = array<i64: 1, 40, 192>}, {pipeline_mode = #tpu.pipeline_mode<synchronous>, transform_indices = @transform_1, window_bounds = array<i64: 3, 192, 128>}, {pipeline_mode = #tpu.pipeline_mode<synchronous>, transform_indices = @transform_2, window_bounds = array<i64: 1, 128>}, {transform_indices = @transform_3, window_bounds = array<i64: 1, 32, 128>}]} {
    %c0 = arith.constant 0 : index
    %c0_0 = arith.constant 0 : index
    %c0_1 = arith.constant 0 : index
    %0 = vector.load %arg1[%c0, %c0_0, %c0_1] : memref<1x40x192xf32, #tpu.memory_space<vmem>>, vector<1x32x192xf32>
    %1 = vector.shape_cast %0 : vector<1x32x192xf32> to vector<32x192xf32>
    %c0_2 = arith.constant 0 : index
    %c0_3 = arith.constant 0 : index
    %c0_4 = arith.constant 0 : index
    %2 = vector.load %arg2[%c0_2, %c0_3, %c0_4] : memref<3x192x128xf32, #tpu.memory_space<vmem>>, vector<1x192x128xf32>
    %3 = vector.shape_cast %2 : vector<1x192x128xf32> to vector<192x128xf32>
    %cst = arith.constant dense<0.000000e+00> : vector<32x128xf32>
    %4 = tpu.matmul %1, %3, %cst {dimension_numbers = #tpu.dot_dimension_numbers<[1], [0], [0], [1], [0, 0, 1, 1], [], []>} : vector<32x192xf32>, vector<192x128xf32>, vector<32x128xf32> -> vector<32x128xf32>
    %c0_5 = arith.constant 0 : index
    %c4 = arith.constant 4 : index
    %c0_6 = arith.constant 0 : index
    %5 = vector.load %arg1[%c0_5, %c4, %c0_6] : memref<1x40x192xf32, #tpu.memory_space<vmem>>, vector<1x32x192xf32>
    %6 = vector.shape_cast %5 : vector<1x32x192xf32> to vector<32x192xf32>
    %c1 = arith.constant 1 : index
    %c0_7 = arith.constant 0 : index
    %c0_8 = arith.constant 0 : index
    %7 = vector.load %arg2[%c1, %c0_7, %c0_8] : memref<3x192x128xf32, #tpu.memory_space<vmem>>, vector<1x192x128xf32>
    %8 = vector.shape_cast %7 : vector<1x192x128xf32> to vector<192x128xf32>
    %cst_9 = arith.constant dense<0.000000e+00> : vector<32x128xf32>
    %9 = tpu.matmul %6, %8, %cst_9 {dimension_numbers = #tpu.dot_dimension_numbers<[1], [0], [0], [1], [0, 0, 1, 1], [], []>} : vector<32x192xf32>, vector<192x128xf32>, vector<32x128xf32> -> vector<32x128xf32>
    %10 = arith.addf %4, %9 : vector<32x128xf32>
    %c0_10 = arith.constant 0 : index
    %c8 = arith.constant 8 : index
    %c0_11 = arith.constant 0 : index
    %11 = vector.load %arg1[%c0_10, %c8, %c0_11] : memref<1x40x192xf32, #tpu.memory_space<vmem>>, vector<1x32x192xf32>
    %12 = vector.shape_cast %11 : vector<1x32x192xf32> to vector<32x192xf32>
    %c2 = arith.constant 2 : index
    %c0_12 = arith.constant 0 : index
    %c0_13 = arith.constant 0 : index
    %13 = vector.load %arg2[%c2, %c0_12, %c0_13] : memref<3x192x128xf32, #tpu.memory_space<vmem>>, vector<1x192x128xf32>
    %14 = vector.shape_cast %13 : vector<1x192x128xf32> to vector<192x128xf32>
    %cst_14 = arith.constant dense<0.000000e+00> : vector<32x128xf32>
    %15 = tpu.matmul %12, %14, %cst_14 {dimension_numbers = #tpu.dot_dimension_numbers<[1], [0], [0], [1], [0, 0, 1, 1], [], []>} : vector<32x192xf32>, vector<192x128xf32>, vector<32x128xf32> -> vector<32x128xf32>
    %16 = arith.addf %10, %15 : vector<32x128xf32>
    %c0_15 = arith.constant 0 : index
    %c0_16 = arith.constant 0 : index
    %17 = vector.load %arg3[%c0_15, %c0_16] : memref<1x128xf32, #tpu.memory_space<vmem>>, vector<1x128xf32>
    %18 = vector.broadcast %17 : vector<1x128xf32> to vector<32x128xf32>
    %19 = arith.addf %16, %18 : vector<32x128xf32>
    %cst_17 = arith.constant 0.000000e+00 : f32
    %20 = vector.broadcast %cst_17 : f32 to vector<32x128xf32>
    %21 = arith.maximumf %19, %20 : vector<32x128xf32>
    %c0_18 = arith.constant 0 : index
    %c0_19 = arith.constant 0 : index
    %c0_20 = arith.constant 0 : index
    %22 = vector.load %arg4[%c0_18, %c0_19, %c0_20] : memref<1x32x128xf32, #tpu.memory_space<vmem>>, vector<1x32x128xf32>
    %23 = vector.shape_cast %22 : vector<1x32x128xf32> to vector<32x128xf32>
    %24 = vector.shape_cast %21 : vector<32x128xf32> to vector<1x32x128xf32>
    tpu.vector_store %arg4[%c0_18, %c0_19, %c0_20], %24 {strides = array<i32>} : memref<1x32x128xf32, #tpu.memory_space<vmem>>, vector<1x32x128xf32>,
    return
  }
  func.func @transform_0(%arg0: i32) -> (i32, i32, i32) {
    %c0_i32 = arith.constant 0 : i32
    %c0_i32_0 = arith.constant 0 : i32
    %c0_i32_1 = arith.constant 0 : i32
    return %arg0, %c0_i32, %c0_i32_0 : i32, i32, i32
  }
  func.func @transform_1(%arg0: i32) -> (i32, i32, i32) {
    %c0_i32 = arith.constant 0 : i32
    %c0_i32_0 = arith.constant 0 : i32
    %c0_i32_1 = arith.constant 0 : i32
    %c0_i32_2 = arith.constant 0 : i32
    return %c0_i32, %c0_i32_0, %c0_i32_1 : i32, i32, i32
  }
  func.func @transform_2(%arg0: i32) -> (i32, i32) {
    %c0_i32 = arith.constant 0 : i32
    %c0_i32_0 = arith.constant 0 : i32
    %c0_i32_1 = arith.constant 0 : i32
    return %c0_i32, %c0_i32_0 : i32, i32
  }
  func.func @transform_3(%arg0: i32) -> (i32, i32, i32) {
    %c0_i32 = arith.constant 0 : i32
    %c0_i32_0 = arith.constant 0 : i32
    %c0_i32_1 = arith.constant 0 : i32
    return %arg0, %c0_i32, %c0_i32_0 : i32, i32, i32
  }
}

module attributes {stable_mosaic.version = 11 : i64} {
  func.func @_maxpool3x3_kernel(%arg0: i32, %arg1: memref<1x5x5x64xf32, #tpu.memory_space<vmem>>, %arg2: memref<1x5x5x64xf32, #tpu.memory_space<vmem>>, %arg3: memref<1x5x5x64xf32, #tpu.memory_space<vmem>>, %arg4: memref<1x5x5x64xf32, #tpu.memory_space<vmem>>, %arg5: memref<1x4x4x64xf32, #tpu.memory_space<vmem>>) attributes {dimension_semantics = [#tpu.dimension_semantics<parallel>], iteration_bounds = array<i64: 2>, scalar_prefetch = 0 : i64, scratch_operands = 0 : i64, tpu.core_type = #tpu.core_type<tc>, window_params = [{transform_indices = @transform_0, window_bounds = array<i64: 1, 5, 5, 64>}, {transform_indices = @transform_1, window_bounds = array<i64: 1, 5, 5, 64>}, {transform_indices = @transform_2, window_bounds = array<i64: 1, 5, 5, 64>}, {transform_indices = @transform_3, window_bounds = array<i64: 1, 5, 5, 64>}, {transform_indices = @transform_4, window_bounds = array<i64: 1, 4, 4, 64>}]} {
    %c0 = arith.constant 0 : index
    %c0_0 = arith.constant 0 : index
    %c0_1 = arith.constant 0 : index
    %c0_2 = arith.constant 0 : index
    %0 = vector.load %arg1[%c0, %c0_0, %c0_1, %c0_2] : memref<1x5x5x64xf32, #tpu.memory_space<vmem>>, vector<1x4x4x64xf32>
    %1 = vector.shape_cast %0 : vector<1x4x4x64xf32> to vector<4x4x64xf32>
    %c0_3 = arith.constant 0 : index
    %c0_4 = arith.constant 0 : index
    %c0_5 = arith.constant 0 : index
    %c0_6 = arith.constant 0 : index
    %2 = vector.load %arg2[%c0_3, %c0_4, %c0_5, %c0_6] : memref<1x5x5x64xf32, #tpu.memory_space<vmem>>, vector<1x4x4x64xf32>
    %3 = vector.shape_cast %2 : vector<1x4x4x64xf32> to vector<4x4x64xf32>
    %4 = arith.maximumf %1, %3 : vector<4x4x64xf32>
    %c0_7 = arith.constant 0 : index
    %c0_8 = arith.constant 0 : index
    %c1 = arith.constant 1 : index
    %c0_9 = arith.constant 0 : index
    %5 = vector.load %arg1[%c0_7, %c0_8, %c1, %c0_9] : memref<1x5x5x64xf32, #tpu.memory_space<vmem>>, vector<1x4x4x64xf32>
    %6 = vector.shape_cast %5 : vector<1x4x4x64xf32> to vector<4x4x64xf32>
    %7 = arith.maximumf %4, %6 : vector<4x4x64xf32>
    %c0_10 = arith.constant 0 : index
    %c0_11 = arith.constant 0 : index
    %c0_12 = arith.constant 0 : index
    %c0_13 = arith.constant 0 : index
    %8 = vector.load %arg3[%c0_10, %c0_11, %c0_12, %c0_13] : memref<1x5x5x64xf32, #tpu.memory_space<vmem>>, vector<1x4x4x64xf32>
    %9 = vector.shape_cast %8 : vector<1x4x4x64xf32> to vector<4x4x64xf32>
    %10 = arith.maximumf %7, %9 : vector<4x4x64xf32>
    %c0_14 = arith.constant 0 : index
    %c0_15 = arith.constant 0 : index
    %c0_16 = arith.constant 0 : index
    %c0_17 = arith.constant 0 : index
    %11 = vector.load %arg4[%c0_14, %c0_15, %c0_16, %c0_17] : memref<1x5x5x64xf32, #tpu.memory_space<vmem>>, vector<1x4x4x64xf32>
    %12 = vector.shape_cast %11 : vector<1x4x4x64xf32> to vector<4x4x64xf32>
    %13 = arith.maximumf %10, %12 : vector<4x4x64xf32>
    %c0_18 = arith.constant 0 : index
    %c0_19 = arith.constant 0 : index
    %c1_20 = arith.constant 1 : index
    %c0_21 = arith.constant 0 : index
    %14 = vector.load %arg3[%c0_18, %c0_19, %c1_20, %c0_21] : memref<1x5x5x64xf32, #tpu.memory_space<vmem>>, vector<1x4x4x64xf32>
    %15 = vector.shape_cast %14 : vector<1x4x4x64xf32> to vector<4x4x64xf32>
    %16 = arith.maximumf %13, %15 : vector<4x4x64xf32>
    %c0_22 = arith.constant 0 : index
    %c1_23 = arith.constant 1 : index
    %c0_24 = arith.constant 0 : index
    %c0_25 = arith.constant 0 : index
    %17 = vector.load %arg1[%c0_22, %c1_23, %c0_24, %c0_25] : memref<1x5x5x64xf32, #tpu.memory_space<vmem>>, vector<1x4x4x64xf32>
    %18 = vector.shape_cast %17 : vector<1x4x4x64xf32> to vector<4x4x64xf32>
    %19 = arith.maximumf %16, %18 : vector<4x4x64xf32>
    %c0_26 = arith.constant 0 : index
    %c1_27 = arith.constant 1 : index
    %c0_28 = arith.constant 0 : index
    %c0_29 = arith.constant 0 : index
    %20 = vector.load %arg2[%c0_26, %c1_27, %c0_28, %c0_29] : memref<1x5x5x64xf32, #tpu.memory_space<vmem>>, vector<1x4x4x64xf32>
    %21 = vector.shape_cast %20 : vector<1x4x4x64xf32> to vector<4x4x64xf32>
    %22 = arith.maximumf %19, %21 : vector<4x4x64xf32>
    %c0_30 = arith.constant 0 : index
    %c1_31 = arith.constant 1 : index
    %c1_32 = arith.constant 1 : index
    %c0_33 = arith.constant 0 : index
    %23 = vector.load %arg1[%c0_30, %c1_31, %c1_32, %c0_33] : memref<1x5x5x64xf32, #tpu.memory_space<vmem>>, vector<1x4x4x64xf32>
    %24 = vector.shape_cast %23 : vector<1x4x4x64xf32> to vector<4x4x64xf32>
    %25 = arith.maximumf %22, %24 : vector<4x4x64xf32>
    %c0_34 = arith.constant 0 : index
    %c0_35 = arith.constant 0 : index
    %c0_36 = arith.constant 0 : index
    %c0_37 = arith.constant 0 : index
    %26 = vector.load %arg5[%c0_34, %c0_35, %c0_36, %c0_37] : memref<1x4x4x64xf32, #tpu.memory_space<vmem>>, vector<1x4x4x64xf32>
    %27 = vector.shape_cast %26 : vector<1x4x4x64xf32> to vector<4x4x64xf32>
    %28 = vector.shape_cast %25 : vector<4x4x64xf32> to vector<1x4x4x64xf32>
    tpu.vector_store %arg5[%c0_34, %c0_35, %c0_36, %c0_37], %28 {strides = array<i32>} : memref<1x4x4x64xf32, #tpu.memory_space<vmem>>, vector<1x4x4x64xf32>,
    return
  }
  func.func @transform_0(%arg0: i32) -> (i32, i32, i32, i32) {
    %c0_i32 = arith.constant 0 : i32
    %c0_i32_0 = arith.constant 0 : i32
    %c0_i32_1 = arith.constant 0 : i32
    %c0_i32_2 = arith.constant 0 : i32
    return %arg0, %c0_i32, %c0_i32_0, %c0_i32_1 : i32, i32, i32, i32
  }
  func.func @transform_1(%arg0: i32) -> (i32, i32, i32, i32) {
    %c0_i32 = arith.constant 0 : i32
    %c0_i32_0 = arith.constant 0 : i32
    %c0_i32_1 = arith.constant 0 : i32
    %c0_i32_2 = arith.constant 0 : i32
    return %arg0, %c0_i32, %c0_i32_0, %c0_i32_1 : i32, i32, i32, i32
  }
  func.func @transform_2(%arg0: i32) -> (i32, i32, i32, i32) {
    %c0_i32 = arith.constant 0 : i32
    %c0_i32_0 = arith.constant 0 : i32
    %c0_i32_1 = arith.constant 0 : i32
    %c0_i32_2 = arith.constant 0 : i32
    return %arg0, %c0_i32, %c0_i32_0, %c0_i32_1 : i32, i32, i32, i32
  }
  func.func @transform_3(%arg0: i32) -> (i32, i32, i32, i32) {
    %c0_i32 = arith.constant 0 : i32
    %c0_i32_0 = arith.constant 0 : i32
    %c0_i32_1 = arith.constant 0 : i32
    %c0_i32_2 = arith.constant 0 : i32
    return %arg0, %c0_i32, %c0_i32_0, %c0_i32_1 : i32, i32, i32, i32
  }
  func.func @transform_4(%arg0: i32) -> (i32, i32, i32, i32) {
    %c0_i32 = arith.constant 0 : i32
    %c0_i32_0 = arith.constant 0 : i32
    %c0_i32_1 = arith.constant 0 : i32
    %c0_i32_2 = arith.constant 0 : i32
    return %arg0, %c0_i32, %c0_i32_0, %c0_i32_1 : i32, i32, i32, i32
  }
}

</mosaic_0001>

<llo_original>
// kernel: mul.54
$region0: #{mul.54}
  %s0 = inlined_call_operand.vmem [shape: f32[3,3,32,32], index: 0, kind: input, shape index: {}]
  %s1 = inlined_call_operand.vmem [shape: f32[3,96,32], index: 1, kind: output, shape index: {}]
  $region1: #{mul.54} parent=0
    #allocation0 [shape = 'u8[393216]{0}', space=vmem, size = 0x60000, scoped, tag = 'scoped mem for input reshape']
    %s3 = sshll.u32 1, 4
    %s4 = ssub.s32 %s3, 1
    %s5 = smul.addr 4, 95
    %s6 = scalar_lea.vmem %s0, %s5
    %v7 = vld [vmem:[%s6] sm:%s4]
    %s8 = scalar_lea.vmem [#allocation0], 760
    %9 = vst [vmem:[%s8] sm:%s4] %v7
    %s10 = smul.addr 4, 94
    %s11 = scalar_lea.vmem %s0, %s10
    %v12 = vld [vmem:[%s11] sm:%s4]
    %s13 = scalar_lea.vmem [#allocation0], 752
    %14 = vst [vmem:[%s13] sm:%s4] %v12
    %s15 = smul.addr 4, 93
    %s16 = scalar_lea.vmem %s0, %s15
    %v17 = vld [vmem:[%s16] sm:%s4]
    %s18 = scalar_lea.vmem [#allocation0], 744
    %19 = vst [vmem:[%s18] sm:%s4] %v17
    %s20 = smul.addr 4, 92
    %s21 = scalar_lea.vmem %s0, %s20
    %v22 = vld [vmem:[%s21] sm:%s4]
    %s23 = scalar_lea.vmem [#allocation0], 736
    %24 = vst [vmem:[%s23] sm:%s4] %v22
    %s25 = smul.addr 4, 91
    %s26 = scalar_lea.vmem %s0, %s25
    %v27 = vld [vmem:[%s26] sm:%s4]
    %s28 = scalar_lea.vmem [#allocation0], 728
    %29 = vst [vmem:[%s28] sm:%s4] %v27
    %s30 = smul.addr 4, 90
    %s31 = scalar_lea.vmem %s0, %s30
    %v32 = vld [vmem:[%s31] sm:%s4]
    %s33 = scalar_lea.vmem [#allocation0], 720
    %34 = vst [vmem:[%s33] sm:%s4] %v32
    %s35 = smul.addr 4, 89
    %s36 = scalar_lea.vmem %s0, %s35
    %v37 = vld [vmem:[%s36] sm:%s4]
    %s38 = scalar_lea.vmem [#allocation0], 712
    %39 = vst [vmem:[%s38] sm:%s4] %v37
    %s40 = smul.addr 4, 88
    %s41 = scalar_lea.vmem %s0, %s40
    %v42 = vld [vmem:[%s41] sm:%s4]
    %s43 = scalar_lea.vmem [#allocation0], 704
    %44 = vst [vmem:[%s43] sm:%s4] %v42
    %s45 = smul.addr 4, 87
    %s46 = scalar_lea.vmem %s0, %s45
    %v47 = vld [vmem:[%s46] sm:%s4]
    %s48 = scalar_lea.vmem [#allocation0], 696
    %49 = vst [vmem:[%s48] sm:%s4] %v47
    %s50 = smul.addr 4, 86
    %s51 = scalar_lea.vmem %s0, %s50
    %v52 = vld [vmem:[%s51] sm:%s4]
    %s53 = scalar_lea.vmem [#allocation0], 688
    %54 = vst [vmem:[%s53] sm:%s4] %v52
    %s55 = smul.addr 4, 85
    %s56 = scalar_lea.vmem %s0, %s55
    %v57 = vld [vmem:[%s56] sm:%s4]
    %s58 = scalar_lea.vmem [#allocation0], 680
    %59 = vst [vmem:[%s58] sm:%s4] %v57
    %s60 = smul.addr 4, 84
    %s61 = scalar_lea.vmem %s0, %s60
    %v62 = vld [vmem:[%s61] sm:%s4]
    %s63 = scalar_lea.vmem [#allocation0], 672
    %64 = vst [vmem:[%s63] sm:%s4] %v62
    %s65 = smul.addr 4, 83
    %s66 = scalar_lea.vmem %s0, %s65
    %v67 = vld [vmem:[%s66] sm:%s4]
    %s68 = scalar_lea.vmem [#allocation0], 664
    %69 = vst [vmem:[%s68] sm:%s4] %v67
    %s70 = smul.addr 4, 82
    %s71 = scalar_lea.vmem %s0, %s70
    %v72 = vld [vmem:[%s71] sm:%s4]
    %s73 = scalar_lea.vmem [#allocation0], 656
    %74 = vst [vmem:[%s73] sm:%s4] %v72
    %s75 = smul.addr 4, 81
    %s76 = scalar_lea.vmem %s0, %s75
    %v77 = vld [vmem:[%s76] sm:%s4]
    %s78 = scalar_lea.vmem [#allocation0], 648
    %79 = vst [vmem:[%s78] sm:%s4] %v77
    %s80 = smul.addr 4, 80
    %s81 = scalar_lea.vmem %s0, %s80
    %v82 = vld [vmem:[%s81] sm:%s4]
    %s83 = scalar_lea.vmem [#allocation0], 640
    %84 = vst [vmem:[%s83] sm:%s4] %v82
    %s85 = smul.addr 4, 79
    %s86 = scalar_lea.vmem %s0, %s85
    %v87 = vld [vmem:[%s86] sm:%s4]
    %s88 = scalar_lea.vmem [#allocation0], 632
    %89 = vst [vmem:[%s88] sm:%s4] %v87
    %s90 = smul.addr 4, 78
    %s91 = scalar_lea.vmem %s0, %s90
    %v92 = vld [vmem:[%s91] sm:%s4]
    %s93 = scalar_lea.vmem [#allocation0], 624
    %94 = vst [vmem:[%s93] sm:%s4] %v92
    %s95 = smul.addr 4, 77
    %s96 = scalar_lea.vmem %s0, %s95
    %v97 = vld [vmem:[%s96] sm:%s4]
    %s98 = scalar_lea.vmem [#allocation0], 616
    %99 = vst [vmem:[%s98] sm:%s4] %v97
    %s100 = smul.addr 4, 76
    %s101 = scalar_lea.vmem %s0, %s100
    %v102 = vld [vmem:[%s101] sm:%s4]
    %s103 = scalar_lea.vmem [#allocation0], 608
    %104 = vst [vmem:[%s103] sm:%s4] %v102
    %s105 = smul.addr 4, 75
    %s106 = scalar_lea.vmem %s0, %s105
    %v107 = vld [vmem:[%s106] sm:%s4]
    %s108 = scalar_lea.vmem [#allocation0], 600
    %109 = vst [vmem:[%s108] sm:%s4] %v107
    %s110 = smul.addr 4, 74
    %s111 = scalar_lea.vmem %s0, %s110
    %v112 = vld [vmem:[%s111] sm:%s4]
    %s113 = scalar_lea.vmem [#allocation0], 592
    %114 = vst [vmem:[%s113] sm:%s4] %v112
    %s115 = smul.addr 4, 73
    %s116 = scalar_lea.vmem %s0, %s115
    %v117 = vld [vmem:[%s116] sm:%s4]
    %s118 = scalar_lea.vmem [#allocation0], 584
    %119 = vst [vmem:[%s118] sm:%s4] %v117
    %s120 = smul.addr 4, 72
    %s121 = scalar_lea.vmem %s0, %s120
    %v122 = vld [vmem:[%s121] sm:%s4]
    %s123 = scalar_lea.vmem [#allocation0], 576
    %124 = vst [vmem:[%s123] sm:%s4] %v122
    %s125 = smul.addr 4, 71
    %s126 = scalar_lea.vmem %s0, %s125
    %v127 = vld [vmem:[%s126] sm:%s4]
    %s128 = scalar_lea.vmem [#allocation0], 568
    %129 = vst [vmem:[%s128] sm:%s4] %v127
    %s130 = smul.addr 4, 70
    %s131 = scalar_lea.vmem %s0, %s130
    %v132 = vld [vmem:[%s131] sm:%s4]
    %s133 = scalar_lea.vmem [#allocation0], 560
    %134 = vst [vmem:[%s133] sm:%s4] %v132
    %s135 = smul.addr 4, 69
    %s136 = scalar_lea.vmem %s0, %s135
    %v137 = vld [vmem:[%s136] sm:%s4]
    %s138 = scalar_lea.vmem [#allocation0], 552
    %139 = vst [vmem:[%s138] sm:%s4] %v137
    %s140 = smul.addr 4, 68
    %s141 = scalar_lea.vmem %s0, %s140
    %v142 = vld [vmem:[%s141] sm:%s4]
    %s143 = scalar_lea.vmem [#allocation0], 544
    %144 = vst [vmem:[%s143] sm:%s4] %v142
    %s145 = smul.addr 4, 67
    %s146 = scalar_lea.vmem %s0, %s145
    %v147 = vld [vmem:[%s146] sm:%s4]
    %s148 = scalar_lea.vmem [#allocation0], 536
    %149 = vst [vmem:[%s148] sm:%s4] %v147
    %s150 = smul.addr 4, 66
    %s151 = scalar_lea.vmem %s0, %s150
    %v152 = vld [vmem:[%s151] sm:%s4]
    %s153 = scalar_lea.vmem [#allocation0], 528
    %154 = vst [vmem:[%s153] sm:%s4] %v152
    %s155 = smul.addr 4, 65
    %s156 = scalar_lea.vmem %s0, %s155
    %v157 = vld [vmem:[%s156] sm:%s4]
    %s158 = scalar_lea.vmem [#allocation0], 520
    %159 = vst [vmem:[%s158] sm:%s4] %v157
    %s160 = smul.addr 4, 64
    %s161 = scalar_lea.vmem %s0, %s160
    %v162 = vld [vmem:[%s161] sm:%s4]
    %s163 = scalar_lea.vmem [#allocation0], 512
    %164 = vst [vmem:[%s163] sm:%s4] %v162
    %s165 = smul.addr 4, 63
    %s166 = scalar_lea.vmem %s0, %s165
    %v167 = vld [vmem:[%s166] sm:%s4]
    %s168 = scalar_lea.vmem [#allocation0], 504
    %169 = vst [vmem:[%s168] sm:%s4] %v167
    %s170 = smul.addr 4, 62
    %s171 = scalar_lea.vmem %s0, %s170
    %v172 = vld [vmem:[%s171] sm:%s4]
    %s173 = scalar_lea.vmem [#allocation0], 496
    %174 = vst [vmem:[%s173] sm:%s4] %v172
    %s175 = smul.addr 4, 61
    %s176 = scalar_lea.vmem %s0, %s175
    %v177 = vld [vmem:[%s176] sm:%s4]
    %s178 = scalar_lea.vmem [#allocation0], 488
    %179 = vst [vmem:[%s178] sm:%s4] %v177
    %s180 = smul.addr 4, 60
    %s181 = scalar_lea.vmem %s0, %s180
    %v182 = vld [vmem:[%s181] sm:%s4]
    %s183 = scalar_lea.vmem [#allocation0], 480
    %184 = vst [vmem:[%s183] sm:%s4] %v182
    %s185 = smul.addr 4, 59
    %s186 = scalar_lea.vmem %s0, %s185
    %v187 = vld [vmem:[%s186] sm:%s4]
    %s188 = scalar_lea.vmem [#allocation0], 472
    %189 = vst [vmem:[%s188] sm:%s4] %v187
    %s190 = smul.addr 4, 58
    %s191 = scalar_lea.vmem %s0, %s190
    %v192 = vld [vmem:[%s191] sm:%s4]
    %s193 = scalar_lea.vmem [#allocation0], 464
    %194 = vst [vmem:[%s193] sm:%s4] %v192
    %s195 = smul.addr 4, 57
    %s196 = scalar_lea.vmem %s0, %s195
    %v197 = vld [vmem:[%s196] sm:%s4]
    %s198 = scalar_lea.vmem [#allocation0], 456
    %199 = vst [vmem:[%s198] sm:%s4] %v197
    %s200 = smul.addr 4, 56
    %s201 = scalar_lea.vmem %s0, %s200
    %v202 = vld [vmem:[%s201] sm:%s4]
    %s203 = scalar_lea.vmem [#allocation0], 448
    %204 = vst [vmem:[%s203] sm:%s4] %v202
    %s205 = smul.addr 4, 55
    %s206 = scalar_lea.vmem %s0, %s205
    %v207 = vld [vmem:[%s206] sm:%s4]
    %s208 = scalar_lea.vmem [#allocation0], 440
    %209 = vst [vmem:[%s208] sm:%s4] %v207
    %s210 = smul.addr 4, 54
    %s211 = scalar_lea.vmem %s0, %s210
    %v212 = vld [vmem:[%s211] sm:%s4]
    %s213 = scalar_lea.vmem [#allocation0], 432
    %214 = vst [vmem:[%s213] sm:%s4] %v212
    %s215 = smul.addr 4, 53
    %s216 = scalar_lea.vmem %s0, %s215
    %v217 = vld [vmem:[%s216] sm:%s4]
    %s218 = scalar_lea.vmem [#allocation0], 424
    %219 = vst [vmem:[%s218] sm:%s4] %v217
    %s220 = smul.addr 4, 52
    %s221 = scalar_lea.vmem %s0, %s220
    %v222 = vld [vmem:[%s221] sm:%s4]
    %s223 = scalar_lea.vmem [#allocation0], 416
    %224 = vst [vmem:[%s223] sm:%s4] %v222
    %s225 = smul.addr 4, 51
    %s226 = scalar_lea.vmem %s0, %s225
    %v227 = vld [vmem:[%s226] sm:%s4]
    %s228 = scalar_lea.vmem [#allocation0], 408
    %229 = vst [vmem:[%s228] sm:%s4] %v227
    %s230 = smul.addr 4, 50
    %s231 = scalar_lea.vmem %s0, %s230
    %v232 = vld [vmem:[%s231] sm:%s4]
    %s233 = scalar_lea.vmem [#allocation0], 400
    %234 = vst [vmem:[%s233] sm:%s4] %v232
    %s235 = smul.addr 4, 49
    %s236 = scalar_lea.vmem %s0, %s235
    %v237 = vld [vmem:[%s236] sm:%s4]
    %s238 = scalar_lea.vmem [#allocation0], 392
    %239 = vst [vmem:[%s238] sm:%s4] %v237
    %s240 = smul.addr 4, 48
    %s241 = scalar_lea.vmem %s0, %s240
    %v242 = vld [vmem:[%s241] sm:%s4]
    %s243 = scalar_lea.vmem [#allocation0], 384
    %244 = vst [vmem:[%s243] sm:%s4] %v242
    %s245 = smul.addr 4, 47
    %s246 = scalar_lea.vmem %s0, %s245
    %v247 = vld [vmem:[%s246] sm:%s4]
    %s248 = scalar_lea.vmem [#allocation0], 376
    %249 = vst [vmem:[%s248] sm:%s4] %v247
    %s250 = smul.addr 4, 46
    %s251 = scalar_lea.vmem %s0, %s250
    %v252 = vld [vmem:[%s251] sm:%s4]
    %s253 = scalar_lea.vmem [#allocation0], 368
    %254 = vst [vmem:[%s253] sm:%s4] %v252
    %s255 = smul.addr 4, 45
    %s256 = scalar_lea.vmem %s0, %s255
    %v257 = vld [vmem:[%s256] sm:%s4]
    %s258 = scalar_lea.vmem [#allocation0], 360
    %259 = vst [vmem:[%s258] sm:%s4] %v257
    %s260 = smul.addr 4, 44
    %s261 = scalar_lea.vmem %s0, %s260
    %v262 = vld [vmem:[%s261] sm:%s4]
    %s263 = scalar_lea.vmem [#allocation0], 352
    %264 = vst [vmem:[%s263] sm:%s4] %v262
    %s265 = smul.addr 4, 43
    %s266 = scalar_lea.vmem %s0, %s265
    %v267 = vld [vmem:[%s266] sm:%s4]
    %s268 = scalar_lea.vmem [#allocation0], 344
    %269 = vst [vmem:[%s268] sm:%s4] %v267
    %s270 = smul.addr 4, 42
    %s271 = scalar_lea.vmem %s0, %s270
    %v272 = vld [vmem:[%s271] sm:%s4]
    %s273 = scalar_lea.vmem [#allocation0], 336
    %274 = vst [vmem:[%s273] sm:%s4] %v272
    %s275 = smul.addr 4, 41
    %s276 = scalar_lea.vmem %s0, %s275
    %v277 = vld [vmem:[%s276] sm:%s4]
    %s278 = scalar_lea.vmem [#allocation0], 328
    %279 = vst [vmem:[%s278] sm:%s4] %v277
    %s280 = smul.addr 4, 40
    %s281 = scalar_lea.vmem %s0, %s280
    %v282 = vld [vmem:[%s281] sm:%s4]
    %s283 = scalar_lea.vmem [#allocation0], 320
    %284 = vst [vmem:[%s283] sm:%s4] %v282
    %s285 = smul.addr 4, 39
    %s286 = scalar_lea.vmem %s0, %s285
    %v287 = vld [vmem:[%s286] sm:%s4]
    %s288 = scalar_lea.vmem [#allocation0], 312
    %289 = vst [vmem:[%s288] sm:%s4] %v287
    %s290 = smul.addr 4, 38
    %s291 = scalar_lea.vmem %s0, %s290
    %v292 = vld [vmem:[%s291] sm:%s4]
    %s293 = scalar_lea.vmem [#allocation0], 304
    %294 = vst [vmem:[%s293] sm:%s4] %v292
    %s295 = smul.addr 4, 37
    %s296 = scalar_lea.vmem %s0, %s295
    %v297 = vld [vmem:[%s296] sm:%s4]
    %s298 = scalar_lea.vmem [#allocation0], 296
    %299 = vst [vmem:[%s298] sm:%s4] %v297
    %s300 = smul.addr 4, 36
    %s301 = scalar_lea.vmem %s0, %s300
    %v302 = vld [vmem:[%s301] sm:%s4]
    %s303 = scalar_lea.vmem [#allocation0], 288
    %304 = vst [vmem:[%s303] sm:%s4] %v302
    %s305 = smul.addr 4, 35
    %s306 = scalar_lea.vmem %s0, %s305
    %v307 = vld [vmem:[%s306] sm:%s4]
    %s308 = scalar_lea.vmem [#allocation0], 280
    %309 = vst [vmem:[%s308] sm:%s4] %v307
    %s310 = smul.addr 4, 34
    %s311 = scalar_lea.vmem %s0, %s310
    %v312 = vld [vmem:[%s311] sm:%s4]
    %s313 = scalar_lea.vmem [#allocation0], 272
    %314 = vst [vmem:[%s313] sm:%s4] %v312
    %s315 = smul.addr 4, 33
    %s316 = scalar_lea.vmem %s0, %s315
    %v317 = vld [vmem:[%s316] sm:%s4]
    %s318 = scalar_lea.vmem [#allocation0], 264
    %319 = vst [vmem:[%s318] sm:%s4] %v317
    %s320 = smul.addr 4, 32
    %s321 = scalar_lea.vmem %s0, %s320
    %v322 = vld [vmem:[%s321] sm:%s4]
    %s323 = scalar_lea.vmem [#allocation0], 256
    %324 = vst [vmem:[%s323] sm:%s4] %v322
    %s325 = smul.addr 4, 31
    %s326 = scalar_lea.vmem %s0, %s325
    %v327 = vld [vmem:[%s326] sm:%s4]
    %s328 = scalar_lea.vmem [#allocation0], 248
    %329 = vst [vmem:[%s328] sm:%s4] %v327
    %s330 = smul.addr 4, 30
    %s331 = scalar_lea.vmem %s0, %s330
    %v332 = vld [vmem:[%s331] sm:%s4]
    %s333 = scalar_lea.vmem [#allocation0], 240
    %334 = vst [vmem:[%s333] sm:%s4] %v332
    %s335 = smul.addr 4, 29
    %s336 = scalar_lea.vmem %s0, %s335
    %v337 = vld [vmem:[%s336] sm:%s4]
    %s338 = scalar_lea.vmem [#allocation0], 232
    %339 = vst [vmem:[%s338] sm:%s4] %v337
    %s340 = smul.addr 4, 28
    %s341 = scalar_lea.vmem %s0, %s340
    %v342 = vld [vmem:[%s341] sm:%s4]
    %s343 = scalar_lea.vmem [#allocation0], 224
    %344 = vst [vmem:[%s343] sm:%s4] %v342
    %s345 = smul.addr 4, 27
    %s346 = scalar_lea.vmem %s0, %s345
    %v347 = vld [vmem:[%s346] sm:%s4]
    %s348 = scalar_lea.vmem [#allocation0], 216
    %349 = vst [vmem:[%s348] sm:%s4] %v347
    %s350 = smul.addr 4, 26
    %s351 = scalar_lea.vmem %s0, %s350
    %v352 = vld [vmem:[%s351] sm:%s4]
    %s353 = scalar_lea.vmem [#allocation0], 208
    %354 = vst [vmem:[%s353] sm:%s4] %v352
    %s355 = smul.addr 4, 25
    %s356 = scalar_lea.vmem %s0, %s355
    %v357 = vld [vmem:[%s356] sm:%s4]
    %s358 = scalar_lea.vmem [#allocation0], 200
    %359 = vst [vmem:[%s358] sm:%s4] %v357
    %s360 = smul.addr 4, 24
    %s361 = scalar_lea.vmem %s0, %s360
    %v362 = vld [vmem:[%s361] sm:%s4]
    %s363 = scalar_lea.vmem [#allocation0], 192
    %364 = vst [vmem:[%s363] sm:%s4] %v362
    %s365 = smul.addr 4, 23
    %s366 = scalar_lea.vmem %s0, %s365
    %v367 = vld [vmem:[%s366] sm:%s4]
    %s368 = scalar_lea.vmem [#allocation0], 184
    %369 = vst [vmem:[%s368] sm:%s4] %v367
    %s370 = smul.addr 4, 22
    %s371 = scalar_lea.vmem %s0, %s370
    %v372 = vld [vmem:[%s371] sm:%s4]
    %s373 = scalar_lea.vmem [#allocation0], 176
    %374 = vst [vmem:[%s373] sm:%s4] %v372
    %s375 = smul.addr 4, 21
    %s376 = scalar_lea.vmem %s0, %s375
    %v377 = vld [vmem:[%s376] sm:%s4]
    %s378 = scalar_lea.vmem [#allocation0], 168
    %379 = vst [vmem:[%s378] sm:%s4] %v377
    %s380 = smul.addr 4, 20
    %s381 = scalar_lea.vmem %s0, %s380
    %v382 = vld [vmem:[%s381] sm:%s4]
    %s383 = scalar_lea.vmem [#allocation0], 160
    %384 = vst [vmem:[%s383] sm:%s4] %v382
    %s385 = smul.addr 4, 19
    %s386 = scalar_lea.vmem %s0, %s385
    %v387 = vld [vmem:[%s386] sm:%s4]
    %s388 = scalar_lea.vmem [#allocation0], 152
    %389 = vst [vmem:[%s388] sm:%s4] %v387
    %s390 = smul.addr 4, 18
    %s391 = scalar_lea.vmem %s0, %s390
    %v392 = vld [vmem:[%s391] sm:%s4]
    %s393 = scalar_lea.vmem [#allocation0], 144
    %394 = vst [vmem:[%s393] sm:%s4] %v392
    %s395 = smul.addr 4, 17
    %s396 = scalar_lea.vmem %s0, %s395
    %v397 = vld [vmem:[%s396] sm:%s4]
    %s398 = scalar_lea.vmem [#allocation0], 136
    %399 = vst [vmem:[%s398] sm:%s4] %v397
    %s400 = smul.addr 4, 16
    %s401 = scalar_lea.vmem %s0, %s400
    %v402 = vld [vmem:[%s401] sm:%s4]
    %s403 = scalar_lea.vmem [#allocation0], 128
    %404 = vst [vmem:[%s403] sm:%s4] %v402
    %s405 = smul.addr 4, 15
    %s406 = scalar_lea.vmem %s0, %s405
    %v407 = vld [vmem:[%s406] sm:%s4]
    %s408 = scalar_lea.vmem [#allocation0], 120
    %409 = vst [vmem:[%s408] sm:%s4] %v407
    %s410 = smul.addr 4, 14
    %s411 = scalar_lea.vmem %s0, %s410
    %v412 = vld [vmem:[%s411] sm:%s4]
    %s413 = scalar_lea.vmem [#allocation0], 112
    %414 = vst [vmem:[%s413] sm:%s4] %v412
    %s415 = smul.addr 4, 13
    %s416 = scalar_lea.vmem %s0, %s415
    %v417 = vld [vmem:[%s416] sm:%s4]
    %s418 = scalar_lea.vmem [#allocation0], 104
    %419 = vst [vmem:[%s418] sm:%s4] %v417
    %s420 = smul.addr 4, 12
    %s421 = scalar_lea.vmem %s0, %s420
    %v422 = vld [vmem:[%s421] sm:%s4]
    %s423 = scalar_lea.vmem [#allocation0], 96
    %424 = vst [vmem:[%s423] sm:%s4] %v422
    %s425 = smul.addr 4, 11
    %s426 = scalar_lea.vmem %s0, %s425
    %v427 = vld [vmem:[%s426] sm:%s4]
    %s428 = scalar_lea.vmem [#allocation0], 88
    %429 = vst [vmem:[%s428] sm:%s4] %v427
    %s430 = smul.addr 4, 10
    %s431 = scalar_lea.vmem %s0, %s430
    %v432 = vld [vmem:[%s431] sm:%s4]
    %s433 = scalar_lea.vmem [#allocation0], 80
    %434 = vst [vmem:[%s433] sm:%s4] %v432
    %s435 = smul.addr 4, 9
    %s436 = scalar_lea.vmem %s0, %s435
    %v437 = vld [vmem:[%s436] sm:%s4]
    %s438 = scalar_lea.vmem [#allocation0], 72
    %439 = vst [vmem:[%s438] sm:%s4] %v437
    %s440 = smul.addr 4, 8
    %s441 = scalar_lea.vmem %s0, %s440
    %v442 = vld [vmem:[%s441] sm:%s4]
    %s443 = scalar_lea.vmem [#allocation0], 64
    %444 = vst [vmem:[%s443] sm:%s4] %v442
    %s445 = smul.addr 4, 7
    %s446 = scalar_lea.vmem %s0, %s445
    %v447 = vld [vmem:[%s446] sm:%s4]
    %s448 = scalar_lea.vmem [#allocation0], 56
    %449 = vst [vmem:[%s448] sm:%s4] %v447
    %s450 = smul.addr 4, 6
    %s451 = scalar_lea.vmem %s0, %s450
    %v452 = vld [vmem:[%s451] sm:%s4]
    %s453 = scalar_lea.vmem [#allocation0], 48
    %454 = vst [vmem:[%s453] sm:%s4] %v452
    %s455 = smul.addr 4, 5
    %s456 = scalar_lea.vmem %s0, %s455
    %v457 = vld [vmem:[%s456] sm:%s4]
    %s458 = scalar_lea.vmem [#allocation0], 40
    %459 = vst [vmem:[%s458] sm:%s4] %v457
    %s460 = smul.addr 4, 4
    %s461 = scalar_lea.vmem %s0, %s460
    %v462 = vld [vmem:[%s461] sm:%s4]
    %s463 = scalar_lea.vmem [#allocation0], 32
    %464 = vst [vmem:[%s463] sm:%s4] %v462
    %s465 = smul.addr 4, 3
    %s466 = scalar_lea.vmem %s0, %s465
    %v467 = vld [vmem:[%s466] sm:%s4]
    %s468 = scalar_lea.vmem [#allocation0], 24
    %469 = vst [vmem:[%s468] sm:%s4] %v467
    %s470 = smul.addr 4, 2
    %s471 = scalar_lea.vmem %s0, %s470
    %v472 = vld [vmem:[%s471] sm:%s4]
    %s473 = scalar_lea.vmem [#allocation0], 16
    %474 = vst [vmem:[%s473] sm:%s4] %v472
    %s475 = scalar_lea.vmem %s0, 4
    %v476 = vld [vmem:[%s475] sm:%s4]
    %s477 = scalar_lea.vmem [#allocation0], 8
    %478 = vst [vmem:[%s477] sm:%s4] %v476
    %v479 = vld [vmem:[%s0] sm:%s4]
    %480 = vst [vmem:[#allocation0] sm:%s4] %v479
    %v481 = vld [vmem:[#allocation0] ss:$8 sm:$0xf]
    %v482 = vld [vmem:[#allocation0] ss:$8 sm:$0xf0]
    %vm483 = vcmask 1047556
    %v484 = vsel %vm483, %v482, %v481
    %vm485 = vcmask 261120
    %486 = vst.msk [vmem:[%s1] sm:$0xff] %vm485, %v484
    %s487 = scalar_lea.vmem [#allocation0], 64
    %v488 = vld [vmem:[%s487] ss:$8 sm:$0xf]
    %s489 = scalar_lea.vmem [#allocation0], 64
    %v490 = vld [vmem:[%s489] ss:$8 sm:$0xf0]
    %vm491 = vcmask 1047556
    %v492 = vsel %vm491, %v490, %v488
    %vm493 = vcmask 261120
    %s494 = scalar_lea.vmem %s1, 8
    %495 = vst.msk [vmem:[%s494] sm:$0xff] %vm493, %v492
    %s496 = scalar_lea.vmem [#allocation0], 128
    %v497 = vld [vmem:[%s496] ss:$8 sm:$0xf]
    %s498 = scalar_lea.vmem [#allocation0], 128
    %v499 = vld [vmem:[%s498] ss:$8 sm:$0xf0]
    %vm500 = vcmask 1047556
    %v501 = vsel %vm500, %v499, %v497
    %vm502 = vcmask 261120
    %s503 = scalar_lea.vmem %s1, 16
    %504 = vst.msk [vmem:[%s503] sm:$0xff] %vm502, %v501
    %s505 = scalar_lea.vmem [#allocation0], 192
    %v506 = vld [vmem:[%s505] ss:$8 sm:$0xf]
    %s507 = scalar_lea.vmem [#allocation0], 192
    %v508 = vld [vmem:[%s507] ss:$8 sm:$0xf0]
    %vm509 = vcmask 1047556
    %v510 = vsel %vm509, %v508, %v506
    %vm511 = vcmask 261120
    %s512 = scalar_lea.vmem %s1, 24
    %513 = vst.msk [vmem:[%s512] sm:$0xff] %vm511, %v510
    %s514 = scalar_lea.vmem [#allocation0], 256
    %v515 = vld [vmem:[%s514] ss:$8 sm:$0xf]
    %s516 = scalar_lea.vmem [#allocation0], 256
    %v517 = vld [vmem:[%s516] ss:$8 sm:$0xf0]
    %vm518 = vcmask 1047556
    %v519 = vsel %vm518, %v517, %v515
    %vm520 = vcmask 261120
    %s521 = scalar_lea.vmem %s1, 32
    %522 = vst.msk [vmem:[%s521] sm:$0xff] %vm520, %v519
    %s523 = scalar_lea.vmem [#allocation0], 320
    %v524 = vld [vmem:[%s523] ss:$8 sm:$0xf]
    %s525 = scalar_lea.vmem [#allocation0], 320
    %v526 = vld [vmem:[%s525] ss:$8 sm:$0xf0]
    %vm527 = vcmask 1047556
    %v528 = vsel %vm527, %v526, %v524
    %vm529 = vcmask 261120
    %s530 = scalar_lea.vmem %s1, 40
    %531 = vst.msk [vmem:[%s530] sm:$0xff] %vm529, %v528
    %s532 = scalar_lea.vmem [#allocation0], 384
    %v533 = vld [vmem:[%s532] ss:$8 sm:$0xf]
    %s534 = scalar_lea.vmem [#allocation0], 384
    %v535 = vld [vmem:[%s534] ss:$8 sm:$0xf0]
    %vm536 = vcmask 1047556
    %v537 = vsel %vm536, %v535, %v533
    %vm538 = vcmask 261120
    %s539 = scalar_lea.vmem %s1, 48
    %540 = vst.msk [vmem:[%s539] sm:$0xff] %vm538, %v537
    %s541 = scalar_lea.vmem [#allocation0], 448
    %v542 = vld [vmem:[%s541] ss:$8 sm:$0xf]
    %s543 = scalar_lea.vmem [#allocation0], 448
    %v544 = vld [vmem:[%s543] ss:$8 sm:$0xf0]
    %vm545 = vcmask 1047556
    %v546 = vsel %vm545, %v544, %v542
    %vm547 = vcmask 261120
    %s548 = scalar_lea.vmem %s1, 56
    %549 = vst.msk [vmem:[%s548] sm:$0xff] %vm547, %v546
    %s550 = scalar_lea.vmem [#allocation0], 512
    %v551 = vld [vmem:[%s550] ss:$8 sm:$0xf]
    %s552 = scalar_lea.vmem [#allocation0], 512
    %v553 = vld [vmem:[%s552] ss:$8 sm:$0xf0]
    %vm554 = vcmask 1047556
    %v555 = vsel %vm554, %v553, %v551
    %vm556 = vcmask 261120
    %s557 = scalar_lea.vmem %s1, 64
    %558 = vst.msk [vmem:[%s557] sm:$0xff] %vm556, %v555
    %s559 = scalar_lea.vmem [#allocation0], 576
    %v560 = vld [vmem:[%s559] ss:$8 sm:$0xf]
    %s561 = scalar_lea.vmem [#allocation0], 576
    %v562 = vld [vmem:[%s561] ss:$8 sm:$0xf0]
    %vm563 = vcmask 1047556
    %v564 = vsel %vm563, %v562, %v560
    %vm565 = vcmask 261120
    %s566 = scalar_lea.vmem %s1, 72
    %567 = vst.msk [vmem:[%s566] sm:$0xff] %vm565, %v564
    %s568 = scalar_lea.vmem [#allocation0], 640
    %v569 = vld [vmem:[%s568] ss:$8 sm:$0xf]
    %s570 = scalar_lea.vmem [#allocation0], 640
    %v571 = vld [vmem:[%s570] ss:$8 sm:$0xf0]
    %vm572 = vcmask 1047556
    %v573 = vsel %vm572, %v571, %v569
    %vm574 = vcmask 261120
    %s575 = scalar_lea.vmem %s1, 80
    %576 = vst.msk [vmem:[%s575] sm:$0xff] %vm574, %v573
    %s577 = scalar_lea.vmem [#allocation0], 704
    %v578 = vld [vmem:[%s577] ss:$8 sm:$0xf]
    %s579 = scalar_lea.vmem [#allocation0], 704
    %v580 = vld [vmem:[%s579] ss:$8 sm:$0xf0]
    %vm581 = vcmask 1047556
    %v582 = vsel %vm581, %v580, %v578
    %vm583 = vcmask 261120
    %s584 = scalar_lea.vmem %s1, 88
    %585 = vst.msk [vmem:[%s584] sm:$0xff] %vm583, %v582
    %s586 = scalar_lea.vmem [#allocation0], 2
    %v587 = vld [vmem:[%s586] ss:$8 sm:$0xf]
    %s588 = scalar_lea.vmem [#allocation0], 2
    %v589 = vld [vmem:[%s588] ss:$8 sm:$0xf0]
    %vm590 = vcmask 1047556
    %v591 = vsel %vm590, %v589, %v587
    %592 = vrot.lane.b32.xlu0 %v591, 64
    %v593 = vpop.permute.xlu0 %592
    %vm594 = vcmask 785920
    %595 = vst.msk [vmem:[%s1] sm:$0xff] %vm594, %v593
    %s596 = scalar_lea.vmem [#allocation0], 258
    %v597 = vld [vmem:[%s596] ss:$8 sm:$0xf]
    %s598 = scalar_lea.vmem [#allocation0], 258
    %v599 = vld [vmem:[%s598] ss:$8 sm:$0xf0]
    %vm600 = vcmask 1047556
    %v601 = vsel %vm600, %v599, %v597
    %602 = vrot.lane.b32.xlu0 %v601, 64
    %v603 = vpop.permute.xlu0 %602
    %vm604 = vcmask 785920
    %s605 = scalar_lea.vmem %s1, 32
    %606 = vst.msk [vmem:[%s605] sm:$0xff] %vm604, %v603
    %s607 = scalar_lea.vmem [#allocation0], 514
    %v608 = vld [vmem:[%s607] ss:$8 sm:$0xf]
    %s609 = scalar_lea.vmem [#allocation0], 514
    %v610 = vld [vmem:[%s609] ss:$8 sm:$0xf0]
    %vm611 = vcmask 1047556
    %v612 = vsel %vm611, %v610, %v608
    %613 = vrot.lane.b32.xlu0 %v612, 64
    %v614 = vpop.permute.xlu0 %613
    %vm615 = vcmask 785920
    %s616 = scalar_lea.vmem %s1, 64
    %617 = vst.msk [vmem:[%s616] sm:$0xff] %vm615, %v614
    %s618 = scalar_lea.vmem [#allocation0], 66
    %v619 = vld [vmem:[%s618] ss:$8 sm:$0xf]
    %s620 = scalar_lea.vmem [#allocation0], 66
    %v621 = vld [vmem:[%s620] ss:$8 sm:$0xf0]
    %vm622 = vcmask 1047556
    %v623 = vsel %vm622, %v621, %v619
    %624 = vrot.lane.b32.xlu0 %v623, 64
    %v625 = vpop.permute.xlu0 %624
    %vm626 = vcmask 785920
    %s627 = scalar_lea.vmem %s1, 8
    %628 = vst.msk [vmem:[%s627] sm:$0xff] %vm626, %v625
    %s629 = scalar_lea.vmem [#allocation0], 322
    %v630 = vld [vmem:[%s629] ss:$8 sm:$0xf]
    %s631 = scalar_lea.vmem [#allocation0], 322
    %v632 = vld [vmem:[%s631] ss:$8 sm:$0xf0]
    %vm633 = vcmask 1047556
    %v634 = vsel %vm633, %v632, %v630
    %635 = vrot.lane.b32.xlu0 %v634, 64
    %v636 = vpop.permute.xlu0 %635
    %vm637 = vcmask 785920
    %s638 = scalar_lea.vmem %s1, 40
    %639 = vst.msk [vmem:[%s638] sm:$0xff] %vm637, %v636
    %s640 = scalar_lea.vmem [#allocation0], 578
    %v641 = vld [vmem:[%s640] ss:$8 sm:$0xf]
    %s642 = scalar_lea.vmem [#allocation0], 578
    %v643 = vld [vmem:[%s642] ss:$8 sm:$0xf0]
    %vm644 = vcmask 1047556
    %v645 = vsel %vm644, %v643, %v641
    %646 = vrot.lane.b32.xlu0 %v645, 64
    %v647 = vpop.permute.xlu0 %646
    %vm648 = vcmask 785920
    %s649 = scalar_lea.vmem %s1, 72
    %650 = vst.msk [vmem:[%s649] sm:$0xff] %vm648, %v647
    %s651 = scalar_lea.vmem [#allocation0], 130
    %v652 = vld [vmem:[%s651] ss:$8 sm:$0xf]
    %s653 = scalar_lea.vmem [#allocation0], 130
    %v654 = vld [vmem:[%s653] ss:$8 sm:$0xf0]
    %vm655 = vcmask 1047556
    %v656 = vsel %vm655, %v654, %v652
    %657 = vrot.lane.b32.xlu0 %v656, 64
    %v658 = vpop.permute.xlu0 %657
    %vm659 = vcmask 785920
    %s660 = scalar_lea.vmem %s1, 16
    %661 = vst.msk [vmem:[%s660] sm:$0xff] %vm659, %v658
    %s662 = scalar_lea.vmem [#allocation0], 386
    %v663 = vld [vmem:[%s662] ss:$8 sm:$0xf]
    %s664 = scalar_lea.vmem [#allocation0], 386
    %v665 = vld [vmem:[%s664] ss:$8 sm:$0xf0]
    %vm666 = vcmask 1047556
    %v667 = vsel %vm666, %v665, %v663
    %668 = vrot.lane.b32.xlu0 %v667, 64
    %v669 = vpop.permute.xlu0 %668
    %vm670 = vcmask 785920
    %s671 = scalar_lea.vmem %s1, 48
    %672 = vst.msk [vmem:[%s671] sm:$0xff] %vm670, %v669
    %s673 = scalar_lea.vmem [#allocation0], 642
    %v674 = vld [vmem:[%s673] ss:$8 sm:$0xf]
    %s675 = scalar_lea.vmem [#allocation0], 642
    %v676 = vld [vmem:[%s675] ss:$8 sm:$0xf0]
    %vm677 = vcmask 1047556
    %v678 = vsel %vm677, %v676, %v674
    %679 = vrot.lane.b32.xlu0 %v678, 64
    %v680 = vpop.permute.xlu0 %679
    %vm681 = vcmask 785920
    %s682 = scalar_lea.vmem %s1, 80
    %683 = vst.msk [vmem:[%s682] sm:$0xff] %vm681, %v680
    %s684 = scalar_lea.vmem [#allocation0], 194
    %v685 = vld [vmem:[%s684] ss:$8 sm:$0xf]
    %s686 = scalar_lea.vmem [#allocation0], 194
    %v687 = vld [vmem:[%s686] ss:$8 sm:$0xf0]
    %vm688 = vcmask 1047556
    %v689 = vsel %vm688, %v687, %v685
    %690 = vrot.lane.b32.xlu0 %v689, 64
    %v691 = vpop.permute.xlu0 %690
    %vm692 = vcmask 785920
    %s693 = scalar_lea.vmem %s1, 24
    %694 = vst.msk [vmem:[%s693] sm:$0xff] %vm692, %v691
    %s695 = scalar_lea.vmem [#allocation0], 450
    %v696 = vld [vmem:[%s695] ss:$8 sm:$0xf]
    %s697 = scalar_lea.vmem [#allocation0], 450
    %v698 = vld [vmem:[%s697] ss:$8 sm:$0xf0]
    %vm699 = vcmask 1047556
    %v700 = vsel %vm699, %v698, %v696
    %701 = vrot.lane.b32.xlu0 %v700, 64
    %v702 = vpop.permute.xlu0 %701
    %vm703 = vcmask 785920
    %s704 = scalar_lea.vmem %s1, 56
    %705 = vst.msk [vmem:[%s704] sm:$0xff] %vm703, %v702
    %s706 = scalar_lea.vmem [#allocation0], 706
    %v707 = vld [vmem:[%s706] ss:$8 sm:$0xf]
    %s708 = scalar_lea.vmem [#allocation0], 706
    %v709 = vld [vmem:[%s708] ss:$8 sm:$0xf0]
    %vm710 = vcmask 1047556
    %v711 = vsel %vm710, %v709, %v707
    %712 = vrot.lane.b32.xlu0 %v711, 64
    %v713 = vpop.permute.xlu0 %712
    %vm714 = vcmask 785920
    %s715 = scalar_lea.vmem %s1, 88
    %716 = vst.msk [vmem:[%s715] sm:$0xff] %vm714, %v713
    %s717 = scalar_lea.vmem [#allocation0], 1
    %v718 = vld [vmem:[%s717] ss:$8 sm:$0xf]
    %s719 = scalar_lea.vmem [#allocation0], 1
    %v720 = vld [vmem:[%s719] ss:$8 sm:$0xf0]
    %vm721 = vcmask 1047556
    %v722 = vsel %vm721, %v720, %v718
    %723 = vrot.lane.b32.xlu0 %v722, 32
    %v724 = vpop.permute.xlu0 %723
    %vm725 = vcmask 523520
    %726 = vst.msk [vmem:[%s1] sm:$0xff] %vm725, %v724
    %s727 = scalar_lea.vmem [#allocation0], 257
    %v728 = vld [vmem:[%s727] ss:$8 sm:$0xf]
    %s729 = scalar_lea.vmem [#allocation0], 257
    %v730 = vld [vmem:[%s729] ss:$8 sm:$0xf0]
    %vm731 = vcmask 1047556
    %v732 = vsel %vm731, %v730, %v728
    %733 = vrot.lane.b32.xlu0 %v732, 32
    %v734 = vpop.permute.xlu0 %733
    %vm735 = vcmask 523520
    %s736 = scalar_lea.vmem %s1, 32
    %737 = vst.msk [vmem:[%s736] sm:$0xff] %vm735, %v734
    %s738 = scalar_lea.vmem [#allocation0], 513
    %v739 = vld [vmem:[%s738] ss:$8 sm:$0xf]
    %s740 = scalar_lea.vmem [#allocation0], 513
    %v741 = vld [vmem:[%s740] ss:$8 sm:$0xf0]
    %vm742 = vcmask 1047556
    %v743 = vsel %vm742, %v741, %v739
    %744 = vrot.lane.b32.xlu0 %v743, 32
    %v745 = vpop.permute.xlu0 %744
    %vm746 = vcmask 523520
    %s747 = scalar_lea.vmem %s1, 64
    %748 = vst.msk [vmem:[%s747] sm:$0xff] %vm746, %v745
    %s749 = scalar_lea.vmem [#allocation0], 65
    %v750 = vld [vmem:[%s749] ss:$8 sm:$0xf]
    %s751 = scalar_lea.vmem [#allocation0], 65
    %v752 = vld [vmem:[%s751] ss:$8 sm:$0xf0]
    %vm753 = vcmask 1047556
    %v754 = vsel %vm753, %v752, %v750
    %755 = vrot.lane.b32.xlu0 %v754, 32
    %v756 = vpop.permute.xlu0 %755
    %vm757 = vcmask 523520
    %s758 = scalar_lea.vmem %s1, 8
    %759 = vst.msk [vmem:[%s758] sm:$0xff] %vm757, %v756
    %s760 = scalar_lea.vmem [#allocation0], 321
    %v761 = vld [vmem:[%s760] ss:$8 sm:$0xf]
    %s762 = scalar_lea.vmem [#allocation0], 321
    %v763 = vld [vmem:[%s762] ss:$8 sm:$0xf0]
    %vm764 = vcmask 1047556
    %v765 = vsel %vm764, %v763, %v761
    %766 = vrot.lane.b32.xlu0 %v765, 32
    %v767 = vpop.permute.xlu0 %766
    %vm768 = vcmask 523520
    %s769 = scalar_lea.vmem %s1, 40
    %770 = vst.msk [vmem:[%s769] sm:$0xff] %vm768, %v767
    %s771 = scalar_lea.vmem [#allocation0], 577
    %v772 = vld [vmem:[%s771] ss:$8 sm:$0xf]
    %s773 = scalar_lea.vmem [#allocation0], 577
    %v774 = vld [vmem:[%s773] ss:$8 sm:$0xf0]
    %vm775 = vcmask 1047556
    %v776 = vsel %vm775, %v774, %v772
    %777 = vrot.lane.b32.xlu0 %v776, 32
    %v778 = vpop.permute.xlu0 %777
    %vm779 = vcmask 523520
    %s780 = scalar_lea.vmem %s1, 72
    %781 = vst.msk [vmem:[%s780] sm:$0xff] %vm779, %v778
    %s782 = scalar_lea.vmem [#allocation0], 129
    %v783 = vld [vmem:[%s782] ss:$8 sm:$0xf]
    %s784 = scalar_lea.vmem [#allocation0], 129
    %v785 = vld [vmem:[%s784] ss:$8 sm:$0xf0]
    %vm786 = vcmask 1047556
    %v787 = vsel %vm786, %v785, %v783
    %788 = vrot.lane.b32.xlu0 %v787, 32
    %v789 = vpop.permute.xlu0 %788
    %vm790 = vcmask 523520
    %s791 = scalar_lea.vmem %s1, 16
    %792 = vst.msk [vmem:[%s791] sm:$0xff] %vm790, %v789
    %s793 = scalar_lea.vmem [#allocation0], 385
    %v794 = vld [vmem:[%s793] ss:$8 sm:$0xf]
    %s795 = scalar_lea.vmem [#allocation0], 385
    %v796 = vld [vmem:[%s795] ss:$8 sm:$0xf0]
    %vm797 = vcmask 1047556
    %v798 = vsel %vm797, %v796, %v794
    %799 = vrot.lane.b32.xlu0 %v798, 32
    %v800 = vpop.permute.xlu0 %799
    %vm801 = vcmask 523520
    %s802 = scalar_lea.vmem %s1, 48
    %803 = vst.msk [vmem:[%s802] sm:$0xff] %vm801, %v800
    %s804 = scalar_lea.vmem [#allocation0], 641
    %v805 = vld [vmem:[%s804] ss:$8 sm:$0xf]
    %s806 = scalar_lea.vmem [#allocation0], 641
    %v807 = vld [vmem:[%s806] ss:$8 sm:$0xf0]
    %vm808 = vcmask 1047556
    %v809 = vsel %vm808, %v807, %v805
    %810 = vrot.lane.b32.xlu0 %v809, 32
    %v811 = vpop.permute.xlu0 %810
    %vm812 = vcmask 523520
    %s813 = scalar_lea.vmem %s1, 80
    %814 = vst.msk [vmem:[%s813] sm:$0xff] %vm812, %v811
    %s815 = scalar_lea.vmem [#allocation0], 193
    %v816 = vld [vmem:[%s815] ss:$8 sm:$0xf]
    %s817 = scalar_lea.vmem [#allocation0], 193
    %v818 = vld [vmem:[%s817] ss:$8 sm:$0xf0]
    %vm819 = vcmask 1047556
    %v820 = vsel %vm819, %v818, %v816
    %821 = vrot.lane.b32.xlu0 %v820, 32
    %v822 = vpop.permute.xlu0 %821
    %vm823 = vcmask 523520
    %s824 = scalar_lea.vmem %s1, 24
    %825 = vst.msk [vmem:[%s824] sm:$0xff] %vm823, %v822
    %s826 = scalar_lea.vmem [#allocation0], 449
    %v827 = vld [vmem:[%s826] ss:$8 sm:$0xf]
    %s828 = scalar_lea.vmem [#allocation0], 449
    %v829 = vld [vmem:[%s828] ss:$8 sm:$0xf0]
    %vm830 = vcmask 1047556
    %v831 = vsel %vm830, %v829, %v827
    %832 = vrot.lane.b32.xlu0 %v831, 32
    %v833 = vpop.permute.xlu0 %832
    %vm834 = vcmask 523520
    %s835 = scalar_lea.vmem %s1, 56
    %836 = vst.msk [vmem:[%s835] sm:$0xff] %vm834, %v833
    %s837 = scalar_lea.vmem [#allocation0], 705
    %v838 = vld [vmem:[%s837] ss:$8 sm:$0xf]
    %s839 = scalar_lea.vmem [#allocation0], 705
    %v840 = vld [vmem:[%s839] ss:$8 sm:$0xf0]
    %vm841 = vcmask 1047556
    %v842 = vsel %vm841, %v840, %v838
    %843 = vrot.lane.b32.xlu0 %v842, 32
    %v844 = vpop.permute.xlu0 %843
    %vm845 = vcmask 523520
    %s846 = scalar_lea.vmem %s1, 88
    %847 = vst.msk [vmem:[%s846] sm:$0xff] %vm845, %v844

// kernel: conv_tokenizer_pallas.4
$region0: #{conv_tokenizer_pallas.4}
  #allocation0 [shape = 'u32[]', space=smem, size = 0x4, offset = 0x4, fixed_abs, tag = 'smem constant byte address 0x4 - core index']
  #allocation1 [shape = 'u32[144,128]{1,0:T(1,128)}', space=vmem, size = 0x12000, scoped, tag = 'internal scratch']
  %s0 = inlined_call_operand.vmem [shape: f32[2,16,128], index: 0, kind: input, shape index: {}]
  %s1 = inlined_call_operand.vmem [shape: f32[1,128,128], index: 1, kind: input, shape index: {}]
  %s2 = inlined_call_operand.vmem [shape: f32[1,128], index: 2, kind: input, shape index: {}]
  %s3 = inlined_call_operand.vmem [shape: f32[2,16,128], index: 3, kind: output, shape index: {}]
  %s4 = sld [smem:[#allocation0]]
  $region45: #{conv_tokenizer_pallas.4} parent=0
    _
  %s6 = ssub.s32 1, %s4
  %s7 = scalar_select 0, %s6, %s4
  loop: start=0, step=1, limit=4
  $region2: #{conv_tokenizer_pallas.4} parent=0 // loop_pre_header
    _
  $region3: #{conv_tokenizer_pallas.4} parent=0 // loop_header
    %s9 = sphi 0, %s13
    %p10 = scmp.ge.s32.totalorder %s9, 4
    %s19 = sphi 0, %s21
    %s22 = sphi 0, %s19
    %s23 = sphi 0, %s22
    %s39 = sphi 0, %s23
    %s43 = sphi 0, %s43
    %s45 = sphi 0, %s43
    %s46 = sphi 0, %s45
    %s60 = sphi 0, %s46
    %s64 = sphi 0, %s64
    %s66 = sphi 0, %s64
    %s67 = sphi 0, %s66
    %s81 = sphi 0, %s67
    %s87 = sphi 0, %s89
    %s90 = sphi 0, %s87
    %s91 = sphi 0, %s90
    %s107 = sphi 0, %s91
  $region4: #{conv_tokenizer_pallas.4} parent=0 // loop_header_branch
    %12 = sbr.rel (%p10) target = $region8
  $region5: #{conv_tokenizer_pallas.4} parent=0 // loop_body
    %s14 = ssub.s32 %s9, 1
    %s15 = ssub.s32 %s9, 2
    %s16 = sadd.s32 %s9, 1
    %s17 = ssub.s32 %s9, %s16
    %p18 = scmp.eq.s32.totalorder %s17, 0
    %s20 = sadd.s32 %s19, 1
    %s21 = scalar_select %p18, %s19, %s20
    %p24 = pneg %p18
    %p25 = scmp.eq.s32.totalorder %s9, 1
    %p26 = por %p24, %p25
    %p27 = scmp.ne.s32.totalorder %s19, %s22
    %p28 = scmp.eq.s32.totalorder %s9, 0
    %p29 = por %p27, %p28
    %p30 = scmp.ne.s32.totalorder %s19, %s22
    %p31 = scmp.eq.s32.totalorder %s14, 1
    %p32 = por %p30, %p31
    %p33 = scmp.ne.s32.totalorder %s22, %s23
    %p34 = scmp.eq.s32.totalorder %s14, 0
    %p35 = por %p33, %p34
    %p36 = scmp.ne.s32.totalorder %s22, %s23
    %p37 = scmp.eq.s32.totalorder %s15, 1
    %p38 = por %p36, %p37
    %p40 = scmp.ne.s32.totalorder %s23, %s39
    %p41 = scmp.eq.s32.totalorder %s15, 0
    %p42 = por %p40, %p41
    %s44 = sadd.s32 %s43, 1
    %p47 = scmp.eq.s32.totalorder %s9, 1
    %p48 = scmp.ne.s32.totalorder %s43, %s45
    %p49 = scmp.eq.s32.totalorder %s9, 0
    %p50 = por %p48, %p49
    %p51 = scmp.ne.s32.totalorder %s43, %s45
    %p52 = scmp.eq.s32.totalorder %s14, 1
    %p53 = por %p51, %p52
    %p54 = scmp.ne.s32.totalorder %s45, %s46
    %p55 = scmp.eq.s32.totalorder %s14, 0
    %p56 = por %p54, %p55
    %p57 = scmp.ne.s32.totalorder %s45, %s46
    %p58 = scmp.eq.s32.totalorder %s15, 1
    %p59 = por %p57, %p58
    %p61 = scmp.ne.s32.totalorder %s46, %s60
    %p62 = scmp.eq.s32.totalorder %s15, 0
    %p63 = por %p61, %p62
    %s65 = sadd.s32 %s64, 1
    %p68 = scmp.eq.s32.totalorder %s9, 1
    %p69 = scmp.ne.s32.totalorder %s64, %s66
    %p70 = scmp.eq.s32.totalorder %s9, 0
    %p71 = por %p69, %p70
    %p72 = scmp.ne.s32.totalorder %s64, %s66
    %p73 = scmp.eq.s32.totalorder %s14, 1
    %p74 = por %p72, %p73
    %p75 = scmp.ne.s32.totalorder %s66, %s67
    %p76 = scmp.eq.s32.totalorder %s14, 0
    %p77 = por %p75, %p76
    %p78 = scmp.ne.s32.totalorder %s66, %s67
    %p79 = scmp.eq.s32.totalorder %s15, 1
    %p80 = por %p78, %p79
    %p82 = scmp.ne.s32.totalorder %s67, %s81
    %p83 = scmp.eq.s32.totalorder %s15, 0
    %p84 = por %p82, %p83
    %s85 = ssub.s32 %s9, %s16
    %p86 = scmp.eq.s32.totalorder %s85, 0
    %s88 = sadd.s32 %s87, 1
    %s89 = scalar_select %p86, %s87, %s88
    %p92 = pneg %p86
    %p93 = scmp.eq.s32.totalorder %s9, 1
    %p94 = por %p92, %p93
    %p95 = scmp.ne.s32.totalorder %s87, %s90
    %p96 = scmp.eq.s32.totalorder %s9, 0
    %p97 = por %p95, %p96
    %p98 = scmp.ne.s32.totalorder %s87, %s90
    %p99 = scmp.eq.s32.totalorder %s14, 1
    %p100 = por %p98, %p99
    %p101 = scmp.ne.s32.totalorder %s90, %s91
    %p102 = scmp.eq.s32.totalorder %s14, 0
    %p103 = por %p101, %p102
    %p104 = scmp.ne.s32.totalorder %s90, %s91
    %p105 = scmp.eq.s32.totalorder %s15, 1
    %p106 = por %p104, %p105
    %p108 = scmp.ne.s32.totalorder %s91, %s107
    %p109 = scmp.eq.s32.totalorder %s15, 0
    %p110 = por %p108, %p109
    %p111 = scmp.le.s32.totalorder 1, %s9
    %p112 = scmp.lt.s32.totalorder %s9, 3
    %p113 = pnand %p111, %p112
    %p114 = pneg %p113
    // Predicated region
    $region9: #{conv_tokenizer_pallas.4} parent=5 // pred_check
      _
    $region10: #{conv_tokenizer_pallas.4} parent=5 // pred_check_branch
      %116 = sbr.rel (%p113) target = $region12
    $region11: #{conv_tokenizer_pallas.4} parent=5 // pred_region
      %s117 = ssub.s32 %s9, 1
      // Predicated region
      $region13: #{conv_tokenizer_pallas.4} parent=11 // pred_check
        %p118 = pneg %p56
      $region14: #{conv_tokenizer_pallas.4} parent=11 // pred_check_branch
        %120 = sbr.rel (%p118) target = $region16
      $region15: #{conv_tokenizer_pallas.4} parent=11 // pred_region
        _
      $region16: #{conv_tokenizer_pallas.4} parent=11 // pred_fallthru
        _
      // Predicated region
      $region17: #{conv_tokenizer_pallas.4} parent=11 // pred_check
        %p121 = pneg %p77
      $region18: #{conv_tokenizer_pallas.4} parent=11 // pred_check_branch
        %123 = sbr.rel (%p121) target = $region20
      $region19: #{conv_tokenizer_pallas.4} parent=11 // pred_region
        _
      $region20: #{conv_tokenizer_pallas.4} parent=11 // pred_fallthru
        _
    $region12: #{conv_tokenizer_pallas.4} parent=5 // pred_fallthru
      _
    %p124 = scmp.lt.s32.totalorder %s9, 2
    // Predicated region
    $region21: #{conv_tokenizer_pallas.4} parent=5 // pred_check
      %p125 = pneg %p124
    $region22: #{conv_tokenizer_pallas.4} parent=5 // pred_check_branch
      %127 = sbr.rel (%p125) target = $region24
    $region23: #{conv_tokenizer_pallas.4} parent=5 // pred_region
      // Predicated region
      $region25: #{conv_tokenizer_pallas.4} parent=23 // pred_check
        %p128 = pneg %p29
      $region26: #{conv_tokenizer_pallas.4} parent=23 // pred_check_branch
        %130 = sbr.rel (%p128) target = $region28
      $region27: #{conv_tokenizer_pallas.4} parent=23 // pred_region
        %p131 = scmp.lt.s32.totalorder %s9, 1
        %s132 = scalar_select %p131, %s9, 1
        %s133 = smul.addr %s132, 2
        %s134 = smul.addr %s133, 8
        %s135 = scalar_lea.vmem %s0, %s134
      $region28: #{conv_tokenizer_pallas.4} parent=23 // pred_fallthru
        _
    $region24: #{conv_tokenizer_pallas.4} parent=5 // pred_fallthru
      _
    %p136 = scmp.le.s32.totalorder 1, %s9
    %p137 = scmp.lt.s32.totalorder %s9, 3
    %p138 = pnand %p136, %p137
    %p139 = pneg %p138
    // Predicated region
    $region29: #{conv_tokenizer_pallas.4} parent=5 // pred_check
      _
    $region30: #{conv_tokenizer_pallas.4} parent=5 // pred_check_branch
      %141 = sbr.rel (%p138) target = $region32
    $region31: #{conv_tokenizer_pallas.4} parent=5 // pred_region
      %s142 = ssub.s32 %s9, 1
      %p143 = scmp.lt.s32.totalorder %s14, 1
      %s144 = scalar_select %p143, %s14, 1
      %s145 = smul.addr %s144, 2
      %s146 = smul.addr %s145, 8
      %s147 = scalar_lea.vmem %s0, %s146
      %p148 = pneg %p35
      %p149 = pneg %p32
      %p150 = pneg %p56
      %p151 = pneg %p53
      %p152 = pneg %p77
      %p153 = pneg %p74
      %p154 = pneg %p103
      %p155 = pneg %p100
      %p156 = scmp.lt.s32.totalorder %s14, 1
      %s157 = scalar_select %p156, %s14, 1
      %s158 = smul.addr %s157, 2
      %s159 = smul.addr %s158, 8
      %s160 = scalar_lea.vmem %s3, %s159
      %p161 = scmp.lt.s32.totalorder %s14, 1
      %s162 = scalar_select %p161, %s14, 1
      %s163 = smul.addr %s162, 2
      %s164 = smul.addr %s163, 8
      %s165 = scalar_lea.vmem %s0, %s164
      %p166 = scmp.lt.s32.totalorder %s14, 1
      %s167 = scalar_select %p166, %s14, 1
      %s168 = smul.addr %s167, 2
      %s169 = smul.addr %s168, 8
      %s170 = scalar_lea.vmem %s3, %s169
      %v171 = vld [vmem:[%s165] sm:$0xff]
      %v172 = vld [vmem:[%s165 + $0x8] sm:$0xff]
      %v173 = vld [vmem:[%s1] sm:$0xff]
      %v174 = vld [vmem:[%s1 + $0x8] sm:$0xff]
      %v175 = vld [vmem:[%s1 + $0x10] sm:$0xff]
      %v176 = vld [vmem:[%s1 + $0x18] sm:$0xff]
      %v177 = vld [vmem:[%s1 + $0x20] sm:$0xff]
      %v178 = vld [vmem:[%s1 + $0x28] sm:$0xff]
      %v179 = vld [vmem:[%s1 + $0x30] sm:$0xff]
      %v180 = vld [vmem:[%s1 + $0x38] sm:$0xff]
      %v181 = vld [vmem:[%s1 + $0x40] sm:$0xff]
      %v182 = vld [vmem:[%s1 + $0x48] sm:$0xff]
      %v183 = vld [vmem:[%s1 + $0x50] sm:$0xff]
      %v184 = vld [vmem:[%s1 + $0x58] sm:$0xff]
      %v185 = vld [vmem:[%s1 + $0x60] sm:$0xff]
      %v186 = vld [vmem:[%s1 + $0x68] sm:$0xff]
      %v187 = vld [vmem:[%s1 + $0x70] sm:$0xff]
      %v188 = vld [vmem:[%s1 + $0x78] sm:$0xff]
      %v189 = vld [vmem:[%s2] sm:$0x1]
      %v191 = vlaneseq
      %v192 = vshrl.u32 %v191, 7
      %v193 = vsub.s32 0, %v192
      %v194 = vrot.slane %v189, %v193
      %196 = vmatprep.subr.mxu0 0.0
      %197 = vmatpush1.msra.mxu0 %v188
      %198 = vmatprep.subr.mxu0 0.0
      %199 = vmatpush1.msra.mxu0 %v187
      %200 = vmatprep.subr.mxu0 0.0
      %201 = vmatpush1.msra.mxu0 %v186
      %202 = vmatprep.subr.mxu0 0.0
      %203 = vmatpush1.msra.mxu0 %v185
      %204 = vmatprep.subr.mxu0 0.0
      %205 = vmatpush1.msra.mxu0 %v184
      %206 = vmatprep.subr.mxu0 0.0
      %207 = vmatpush1.msra.mxu0 %v183
      %208 = vmatprep.subr.mxu0 0.0
      %209 = vmatpush1.msra.mxu0 %v182
      %210 = vmatprep.subr.mxu0 0.0
      %211 = vmatpush1.msra.mxu0 %v181
      %212 = vmatprep.subr.mxu0 0.0
      %213 = vmatpush1.msra.mxu0 %v180
      %214 = vmatprep.subr.mxu0 0.0
      %215 = vmatpush1.msra.mxu0 %v179
      %216 = vmatprep.subr.mxu0 0.0
      %217 = vmatpush1.msra.mxu0 %v178
      %218 = vmatprep.subr.mxu0 0.0
      %219 = vmatpush1.msra.mxu0 %v177
      %220 = vmatprep.subr.mxu0 0.0
      %221 = vmatpush1.msra.mxu0 %v176
      %222 = vmatprep.subr.mxu0 0.0
      %223 = vmatpush1.msra.mxu0 %v175
      %224 = vmatprep.subr.mxu0 0.0
      %225 = vmatpush1.msra.mxu0 %v174
      %226 = vmatprep.subr.mxu0 0.0
      %227 = vmatpush1.msra.mxu0 %v173
      %228 = vmatprep.subr.mxu0 0.0
      %229 = vmatpush2.msra.mxu0 0.0
      %230 = vmatprep.subr.mxu0 0.0
      %231 = vmatpush2.msra.mxu0 0.0
      %232 = vmatprep.subr.mxu0 0.0
      %233 = vmatpush2.msra.mxu0 0.0
      %234 = vmatprep.subr.mxu0 0.0
      %235 = vmatpush2.msra.mxu0 0.0
      %236 = vmatprep.subr.mxu0 0.0
      %237 = vmatpush2.msra.mxu0 0.0
      %238 = vmatprep.subr.mxu0 0.0
      %239 = vmatpush2.msra.mxu0 0.0
      %240 = vmatprep.subr.mxu0 0.0
      %241 = vmatpush2.msra.mxu0 0.0
      %242 = vmatprep.subr.mxu0 0.0
      %243 = vmatpush2.msra.mxu0 0.0
      %244 = vmatprep.subr.mxu0 0.0
      %245 = vmatpush2.msra.mxu0 0.0
      %246 = vmatprep.subr.mxu0 0.0
      %247 = vmatpush2.msra.mxu0 0.0
      %248 = vmatprep.subr.mxu0 0.0
      %249 = vmatpush2.msra.mxu0 0.0
      %250 = vmatprep.subr.mxu0 0.0
      %251 = vmatpush2.msra.mxu0 0.0
      %252 = vmatprep.subr.mxu0 0.0
      %253 = vmatpush2.msra.mxu0 0.0
      %254 = vmatprep.subr.mxu0 0.0
      %255 = vmatpush2.msra.mxu0 0.0
      %256 = vmatprep.subr.mxu0 0.0
      %257 = vmatpush2.msra.mxu0 0.0
      %258 = vmatprep.subr.mxu0 0.0
      %259 = vmatpush2.msra.mxu0 0.0
      %260 = vmatprep.mubr.f32.mxu0 0.0
      %261 = vmatmul.mubr.f32.gmra.mxu0 %v171
      %v262 = vpop.f32.mrf.mxu0
      %v263 = vadd.f32 %v194, %v262
      %v264 = vpop.f32.mrf.mxu0
      %265 = vmatprep.mubr.f32.mxu0 0.0
      %266 = vmatmul.mubr.f32.gmra.mxu0 %v172
      %v267 = vpop.f32.mrf.mxu0
      %v268 = vadd.f32 %v194, %v267
      %v269 = vpop.f32.mrf.mxu0
      %270 = vdwg.mxu0
      %v271 = vmax.f32 %v263, 0.0
      %v272 = vmax.f32 %v268, 0.0
      %273 = vst [vmem:[%s170] sm:$0xff] %v271
      %274 = vst [vmem:[%s170 + $0x8] sm:$0xff] %v272
      %p275 = scmp.lt.s32.totalorder %s14, 1
      %s276 = scalar_select %p275, %s14, 1
      %s277 = smul.addr %s276, 2
      %s278 = smul.addr %s277, 8
      %s279 = scalar_lea.vmem %s3, %s278
      // Predicated region
      $region33: #{conv_tokenizer_pallas.4} parent=31 // pred_check
        %p280 = pneg %p100
      $region34: #{conv_tokenizer_pallas.4} parent=31 // pred_check_branch
        %282 = sbr.rel (%p280) target = $region36
      $region35: #{conv_tokenizer_pallas.4} parent=31 // pred_region
        _
      $region36: #{conv_tokenizer_pallas.4} parent=31 // pred_fallthru
        _
    $region32: #{conv_tokenizer_pallas.4} parent=5 // pred_fallthru
      _
    %p283 = scmp.le.s32.totalorder 2, %s9
    // Predicated region
    $region37: #{conv_tokenizer_pallas.4} parent=5 // pred_check
      %p284 = pneg %p283
    $region38: #{conv_tokenizer_pallas.4} parent=5 // pred_check_branch
      %286 = sbr.rel (%p284) target = $region40
    $region39: #{conv_tokenizer_pallas.4} parent=5 // pred_region
      %s287 = ssub.s32 %s9, 2
      // Predicated region
      $region41: #{conv_tokenizer_pallas.4} parent=39 // pred_check
        %p288 = pneg %p106
      $region42: #{conv_tokenizer_pallas.4} parent=39 // pred_check_branch
        %290 = sbr.rel (%p288) target = $region44
      $region43: #{conv_tokenizer_pallas.4} parent=39 // pred_region
        %p291 = scmp.lt.s32.totalorder %s15, 1
        %s292 = scalar_select %p291, %s15, 1
        %s293 = smul.addr %s292, 2
        %s294 = smul.addr %s293, 8
        %s295 = scalar_lea.vmem %s3, %s294
      $region44: #{conv_tokenizer_pallas.4} parent=39 // pred_fallthru
        _
    $region40: #{conv_tokenizer_pallas.4} parent=5 // pred_fallthru
      _
  $region6: #{conv_tokenizer_pallas.4} parent=0 // loop_footer
    %s13 = sadd.s32 1, %s9
  $region7: #{conv_tokenizer_pallas.4} parent=0 // loop_footer_branch
    %8 = sbr.rel target = $region3
  $region8: #{conv_tokenizer_pallas.4} parent=0 // loop_exit
    _

// kernel: conv_tokenizer_pallas.5
$region0: #{conv_tokenizer_pallas.5}
  #allocation0 [shape = 'u32[]', space=smem, size = 0x4, offset = 0x4, fixed_abs, tag = 'smem constant byte address 0x4 - core index']
  #allocation1 [shape = 'u32[144,128]{1,0:T(1,128)}', space=vmem, size = 0x12000, scoped, tag = 'internal scratch']
  %s0 = inlined_call_operand.vmem [shape: f32[2,20,384], index: 0, kind: input, shape index: {}]
  %s1 = inlined_call_operand.vmem [shape: f32[3,384,128], index: 1, kind: input, shape index: {}]
  %s2 = inlined_call_operand.vmem [shape: f32[1,128], index: 2, kind: input, shape index: {}]
  %s3 = inlined_call_operand.vmem [shape: f32[2,16,128], index: 3, kind: output, shape index: {}]
  %s4 = sld [smem:[#allocation0]]
  $region45: #{conv_tokenizer_pallas.5} parent=0
    _
  %s6 = ssub.s32 1, %s4
  %s7 = scalar_select 0, %s6, %s4
  loop: start=0, step=1, limit=4
  $region2: #{conv_tokenizer_pallas.5} parent=0 // loop_pre_header
    _
  $region3: #{conv_tokenizer_pallas.5} parent=0 // loop_header
    %s9 = sphi 0, %s13
    %p10 = scmp.ge.s32.totalorder %s9, 4
    %s19 = sphi 0, %s21
    %s22 = sphi 0, %s19
    %s23 = sphi 0, %s22
    %s39 = sphi 0, %s23
    %s43 = sphi 0, %s43
    %s45 = sphi 0, %s43
    %s46 = sphi 0, %s45
    %s60 = sphi 0, %s46
    %s64 = sphi 0, %s64
    %s66 = sphi 0, %s64
    %s67 = sphi 0, %s66
    %s81 = sphi 0, %s67
    %s87 = sphi 0, %s89
    %s90 = sphi 0, %s87
    %s91 = sphi 0, %s90
    %s107 = sphi 0, %s91
  $region4: #{conv_tokenizer_pallas.5} parent=0 // loop_header_branch
    %12 = sbr.rel (%p10) target = $region8
  $region5: #{conv_tokenizer_pallas.5} parent=0 // loop_body
    %s14 = ssub.s32 %s9, 1
    %s15 = ssub.s32 %s9, 2
    %s16 = sadd.s32 %s9, 1
    %s17 = ssub.s32 %s9, %s16
    %p18 = scmp.eq.s32.totalorder %s17, 0
    %s20 = sadd.s32 %s19, 1
    %s21 = scalar_select %p18, %s19, %s20
    %p24 = pneg %p18
    %p25 = scmp.eq.s32.totalorder %s9, 1
    %p26 = por %p24, %p25
    %p27 = scmp.ne.s32.totalorder %s19, %s22
    %p28 = scmp.eq.s32.totalorder %s9, 0
    %p29 = por %p27, %p28
    %p30 = scmp.ne.s32.totalorder %s19, %s22
    %p31 = scmp.eq.s32.totalorder %s14, 1
    %p32 = por %p30, %p31
    %p33 = scmp.ne.s32.totalorder %s22, %s23
    %p34 = scmp.eq.s32.totalorder %s14, 0
    %p35 = por %p33, %p34
    %p36 = scmp.ne.s32.totalorder %s22, %s23
    %p37 = scmp.eq.s32.totalorder %s15, 1
    %p38 = por %p36, %p37
    %p40 = scmp.ne.s32.totalorder %s23, %s39
    %p41 = scmp.eq.s32.totalorder %s15, 0
    %p42 = por %p40, %p41
    %s44 = sadd.s32 %s43, 1
    %p47 = scmp.eq.s32.totalorder %s9, 1
    %p48 = scmp.ne.s32.totalorder %s43, %s45
    %p49 = scmp.eq.s32.totalorder %s9, 0
    %p50 = por %p48, %p49
    %p51 = scmp.ne.s32.totalorder %s43, %s45
    %p52 = scmp.eq.s32.totalorder %s14, 1
    %p53 = por %p51, %p52
    %p54 = scmp.ne.s32.totalorder %s45, %s46
    %p55 = scmp.eq.s32.totalorder %s14, 0
    %p56 = por %p54, %p55
    %p57 = scmp.ne.s32.totalorder %s45, %s46
    %p58 = scmp.eq.s32.totalorder %s15, 1
    %p59 = por %p57, %p58
    %p61 = scmp.ne.s32.totalorder %s46, %s60
    %p62 = scmp.eq.s32.totalorder %s15, 0
    %p63 = por %p61, %p62
    %s65 = sadd.s32 %s64, 1
    %p68 = scmp.eq.s32.totalorder %s9, 1
    %p69 = scmp.ne.s32.totalorder %s64, %s66
    %p70 = scmp.eq.s32.totalorder %s9, 0
    %p71 = por %p69, %p70
    %p72 = scmp.ne.s32.totalorder %s64, %s66
    %p73 = scmp.eq.s32.totalorder %s14, 1
    %p74 = por %p72, %p73
    %p75 = scmp.ne.s32.totalorder %s66, %s67
    %p76 = scmp.eq.s32.totalorder %s14, 0
    %p77 = por %p75, %p76
    %p78 = scmp.ne.s32.totalorder %s66, %s67
    %p79 = scmp.eq.s32.totalorder %s15, 1
    %p80 = por %p78, %p79
    %p82 = scmp.ne.s32.totalorder %s67, %s81
    %p83 = scmp.eq.s32.totalorder %s15, 0
    %p84 = por %p82, %p83
    %s85 = ssub.s32 %s9, %s16
    %p86 = scmp.eq.s32.totalorder %s85, 0
    %s88 = sadd.s32 %s87, 1
    %s89 = scalar_select %p86, %s87, %s88
    %p92 = pneg %p86
    %p93 = scmp.eq.s32.totalorder %s9, 1
    %p94 = por %p92, %p93
    %p95 = scmp.ne.s32.totalorder %s87, %s90
    %p96 = scmp.eq.s32.totalorder %s9, 0
    %p97 = por %p95, %p96
    %p98 = scmp.ne.s32.totalorder %s87, %s90
    %p99 = scmp.eq.s32.totalorder %s14, 1
    %p100 = por %p98, %p99
    %p101 = scmp.ne.s32.totalorder %s90, %s91
    %p102 = scmp.eq.s32.totalorder %s14, 0
    %p103 = por %p101, %p102
    %p104 = scmp.ne.s32.totalorder %s90, %s91
    %p105 = scmp.eq.s32.totalorder %s15, 1
    %p106 = por %p104, %p105
    %p108 = scmp.ne.s32.totalorder %s91, %s107
    %p109 = scmp.eq.s32.totalorder %s15, 0
    %p110 = por %p108, %p109
    %p111 = scmp.le.s32.totalorder 1, %s9
    %p112 = scmp.lt.s32.totalorder %s9, 3
    %p113 = pnand %p111, %p112
    %p114 = pneg %p113
    // Predicated region
    $region9: #{conv_tokenizer_pallas.5} parent=5 // pred_check
      _
    $region10: #{conv_tokenizer_pallas.5} parent=5 // pred_check_branch
      %116 = sbr.rel (%p113) target = $region12
    $region11: #{conv_tokenizer_pallas.5} parent=5 // pred_region
      %s117 = ssub.s32 %s9, 1
      // Predicated region
      $region13: #{conv_tokenizer_pallas.5} parent=11 // pred_check
        %p118 = pneg %p56
      $region14: #{conv_tokenizer_pallas.5} parent=11 // pred_check_branch
        %120 = sbr.rel (%p118) target = $region16
      $region15: #{conv_tokenizer_pallas.5} parent=11 // pred_region
        _
      $region16: #{conv_tokenizer_pallas.5} parent=11 // pred_fallthru
        _
      // Predicated region
      $region17: #{conv_tokenizer_pallas.5} parent=11 // pred_check
        %p121 = pneg %p77
      $region18: #{conv_tokenizer_pallas.5} parent=11 // pred_check_branch
        %123 = sbr.rel (%p121) target = $region20
      $region19: #{conv_tokenizer_pallas.5} parent=11 // pred_region
        _
      $region20: #{conv_tokenizer_pallas.5} parent=11 // pred_fallthru
        _
    $region12: #{conv_tokenizer_pallas.5} parent=5 // pred_fallthru
      _
    %p124 = scmp.lt.s32.totalorder %s9, 2
    // Predicated region
    $region21: #{conv_tokenizer_pallas.5} parent=5 // pred_check
      %p125 = pneg %p124
    $region22: #{conv_tokenizer_pallas.5} parent=5 // pred_check_branch
      %127 = sbr.rel (%p125) target = $region24
    $region23: #{conv_tokenizer_pallas.5} parent=5 // pred_region
      // Predicated region
      $region25: #{conv_tokenizer_pallas.5} parent=23 // pred_check
        %p128 = pneg %p29
      $region26: #{conv_tokenizer_pallas.5} parent=23 // pred_check_branch
        %130 = sbr.rel (%p128) target = $region28
      $region27: #{conv_tokenizer_pallas.5} parent=23 // pred_region
        %p131 = scmp.lt.s32.totalorder %s9, 1
        %s132 = scalar_select %p131, %s9, 1
        %s133 = smul.addr %s132, 9
        %s134 = smul.addr %s133, 8
        %s135 = scalar_lea.vmem %s0, %s134
      $region28: #{conv_tokenizer_pallas.5} parent=23 // pred_fallthru
        _
    $region24: #{conv_tokenizer_pallas.5} parent=5 // pred_fallthru
      _
    %p136 = scmp.le.s32.totalorder 1, %s9
    %p137 = scmp.lt.s32.totalorder %s9, 3
    %p138 = pnand %p136, %p137
    %p139 = pneg %p138
    // Predicated region
    $region29: #{conv_tokenizer_pallas.5} parent=5 // pred_check
      _
    $region30: #{conv_tokenizer_pallas.5} parent=5 // pred_check_branch
      %141 = sbr.rel (%p138) target = $region32
    $region31: #{conv_tokenizer_pallas.5} parent=5 // pred_region
      %s142 = ssub.s32 %s9, 1
      %p143 = scmp.lt.s32.totalorder %s14, 1
      %s144 = scalar_select %p143, %s14, 1
      %s145 = smul.addr %s144, 9
      %s146 = smul.addr %s145, 8
      %s147 = scalar_lea.vmem %s0, %s146
      %p148 = pneg %p35
      %p149 = pneg %p32
      %p150 = pneg %p56
      %p151 = pneg %p53
      %p152 = pneg %p77
      %p153 = pneg %p74
      %p154 = pneg %p103
      %p155 = pneg %p100
      %p156 = scmp.lt.s32.totalorder %s14, 1
      %s157 = scalar_select %p156, %s14, 1
      %s158 = smul.addr %s157, 2
      %s159 = smul.addr %s158, 8
      %s160 = scalar_lea.vmem %s3, %s159
      %p161 = scmp.lt.s32.totalorder %s14, 1
      %s162 = scalar_select %p161, %s14, 1
      %s163 = smul.addr %s162, 9
      %s164 = smul.addr %s163, 8
      %s165 = scalar_lea.vmem %s0, %s164
      %p166 = scmp.lt.s32.totalorder %s14, 1
      %s167 = scalar_select %p166, %s14, 1
      %s168 = smul.addr %s167, 2
      %s169 = smul.addr %s168, 8
      %s170 = scalar_lea.vmem %s3, %s169
      %v171 = vld [vmem:[%s165] sm:$0xff]
      %v172 = vld [vmem:[%s165 + $0x8] sm:$0xff]
      %v173 = vld [vmem:[%s165 + $0x10] sm:$0xff]
      %v174 = vld [vmem:[%s165 + $0x18] sm:$0xff]
      %v175 = vld [vmem:[%s165 + $0x20] sm:$0xff]
      %v176 = vld [vmem:[%s165 + $0x28] sm:$0xff]
      %v177 = vld [vmem:[%s1] sm:$0xff]
      %v178 = vld [vmem:[%s1 + $0x8] sm:$0xff]
      %v179 = vld [vmem:[%s1 + $0x10] sm:$0xff]
      %v180 = vld [vmem:[%s1 + $0x18] sm:$0xff]
      %v181 = vld [vmem:[%s1 + $0x20] sm:$0xff]
      %v182 = vld [vmem:[%s1 + $0x28] sm:$0xff]
      %v183 = vld [vmem:[%s1 + $0x30] sm:$0xff]
      %v184 = vld [vmem:[%s1 + $0x38] sm:$0xff]
      %v185 = vld [vmem:[%s1 + $0x40] sm:$0xff]
      %v186 = vld [vmem:[%s1 + $0x48] sm:$0xff]
      %v187 = vld [vmem:[%s1 + $0x50] sm:$0xff]
      %v188 = vld [vmem:[%s1 + $0x58] sm:$0xff]
      %v189 = vld [vmem:[%s1 + $0x60] sm:$0xff]
      %v190 = vld [vmem:[%s1 + $0x68] sm:$0xff]
      %v191 = vld [vmem:[%s1 + $0x70] sm:$0xff]
      %v192 = vld [vmem:[%s1 + $0x78] sm:$0xff]
      %v193 = vld [vmem:[%s1 + $0x80] sm:$0xff]
      %v194 = vld [vmem:[%s1 + $0x88] sm:$0xff]
      %v195 = vld [vmem:[%s1 + $0x90] sm:$0xff]
      %v196 = vld [vmem:[%s1 + $0x98] sm:$0xff]
      %v197 = vld [vmem:[%s1 + $0xa0] sm:$0xff]
      %v198 = vld [vmem:[%s1 + $0xa8] sm:$0xff]
      %v199 = vld [vmem:[%s1 + $0xb0] sm:$0xff]
      %v200 = vld [vmem:[%s1 + $0xb8] sm:$0xff]
      %v201 = vld [vmem:[%s1 + $0xc0] sm:$0xff]
      %v202 = vld [vmem:[%s1 + $0xc8] sm:$0xff]
      %v203 = vld [vmem:[%s1 + $0xd0] sm:$0xff]
      %v204 = vld [vmem:[%s1 + $0xd8] sm:$0xff]
      %v205 = vld [vmem:[%s1 + $0xe0] sm:$0xff]
      %v206 = vld [vmem:[%s1 + $0xe8] sm:$0xff]
      %v207 = vld [vmem:[%s1 + $0xf0] sm:$0xff]
      %v208 = vld [vmem:[%s1 + $0xf8] sm:$0xff]
      %v209 = vld [vmem:[%s1 + $0x100] sm:$0xff]
      %v210 = vld [vmem:[%s1 + $0x108] sm:$0xff]
      %v211 = vld [vmem:[%s1 + $0x110] sm:$0xff]
      %v212 = vld [vmem:[%s1 + $0x118] sm:$0xff]
      %v213 = vld [vmem:[%s1 + $0x120] sm:$0xff]
      %v214 = vld [vmem:[%s1 + $0x128] sm:$0xff]
      %v215 = vld [vmem:[%s1 + $0x130] sm:$0xff]
      %v216 = vld [vmem:[%s1 + $0x138] sm:$0xff]
      %v217 = vld [vmem:[%s1 + $0x140] sm:$0xff]
      %v218 = vld [vmem:[%s1 + $0x148] sm:$0xff]
      %v219 = vld [vmem:[%s1 + $0x150] sm:$0xff]
      %v220 = vld [vmem:[%s1 + $0x158] sm:$0xff]
      %v221 = vld [vmem:[%s1 + $0x160] sm:$0xff]
      %v222 = vld [vmem:[%s1 + $0x168] sm:$0xff]
      %v223 = vld [vmem:[%s1 + $0x170] sm:$0xff]
      %v224 = vld [vmem:[%s1 + $0x178] sm:$0xff]
      %v225 = vld [vmem:[%s165] sm:$0xfc]
      %v226 = vld [vmem:[%s165 + $0x8] sm:$0xfc]
      %v227 = vld [vmem:[%s165 + $0x10] sm:$0xfc]
      %v228 = vld [vmem:[%s165 + $0x30] sm:$0x3]
      %v229 = vld [vmem:[%s165 + $0x38] sm:$0x3]
      %v230 = vld [vmem:[%s165 + $0x40] sm:$0x3]
      %s231 = scalar_lea.vmem %s1, 384
      %v232 = vld [vmem:[%s231] sm:$0xff]
      %v233 = vld [vmem:[%s231 + $0x8] sm:$0xff]
      %v234 = vld [vmem:[%s231 + $0x10] sm:$0xff]
      %v235 = vld [vmem:[%s231 + $0x18] sm:$0xff]
      %v236 = vld [vmem:[%s231 + $0x20] sm:$0xff]
      %v237 = vld [vmem:[%s231 + $0x28] sm:$0xff]
      %v238 = vld [vmem:[%s231 + $0x30] sm:$0xff]
      %v239 = vld [vmem:[%s231 + $0x38] sm:$0xff]
      %v240 = vld [vmem:[%s231 + $0x40] sm:$0xff]
      %v241 = vld [vmem:[%s231 + $0x48] sm:$0xff]
      %v242 = vld [vmem:[%s231 + $0x50] sm:$0xff]
      %v243 = vld [vmem:[%s231 + $0x58] sm:$0xff]
      %v244 = vld [vmem:[%s231 + $0x60] sm:$0xff]
      %v245 = vld [vmem:[%s231 + $0x68] sm:$0xff]
      %v246 = vld [vmem:[%s231 + $0x70] sm:$0xff]
      %v247 = vld [vmem:[%s231 + $0x78] sm:$0xff]
      %v248 = vld [vmem:[%s231 + $0x80] sm:$0xff]
      %v249 = vld [vmem:[%s231 + $0x88] sm:$0xff]
      %v250 = vld [vmem:[%s231 + $0x90] sm:$0xff]
      %v251 = vld [vmem:[%s231 + $0x98] sm:$0xff]
      %v252 = vld [vmem:[%s231 + $0xa0] sm:$0xff]
      %v253 = vld [vmem:[%s231 + $0xa8] sm:$0xff]
      %v254 = vld [vmem:[%s231 + $0xb0] sm:$0xff]
      %v255 = vld [vmem:[%s231 + $0xb8] sm:$0xff]
      %v256 = vld [vmem:[%s231 + $0xc0] sm:$0xff]
      %v257 = vld [vmem:[%s231 + $0xc8] sm:$0xff]
      %v258 = vld [vmem:[%s231 + $0xd0] sm:$0xff]
      %v259 = vld [vmem:[%s231 + $0xd8] sm:$0xff]
      %v260 = vld [vmem:[%s231 + $0xe0] sm:$0xff]
      %v261 = vld [vmem:[%s231 + $0xe8] sm:$0xff]
      %v262 = vld [vmem:[%s231 + $0xf0] sm:$0xff]
      %v263 = vld [vmem:[%s231 + $0xf8] sm:$0xff]
      %v264 = vld [vmem:[%s231 + $0x100] sm:$0xff]
      %v265 = vld [vmem:[%s231 + $0x108] sm:$0xff]
      %v266 = vld [vmem:[%s231 + $0x110] sm:$0xff]
      %v267 = vld [vmem:[%s231 + $0x118] sm:$0xff]
      %v268 = vld [vmem:[%s231 + $0x120] sm:$0xff]
      %v269 = vld [vmem:[%s231 + $0x128] sm:$0xff]
      %v270 = vld [vmem:[%s231 + $0x130] sm:$0xff]
      %v271 = vld [vmem:[%s231 + $0x138] sm:$0xff]
      %v272 = vld [vmem:[%s231 + $0x140] sm:$0xff]
      %v273 = vld [vmem:[%s231 + $0x148] sm:$0xff]
      %v274 = vld [vmem:[%s231 + $0x150] sm:$0xff]
      %v275 = vld [vmem:[%s231 + $0x158] sm:$0xff]
      %v276 = vld [vmem:[%s231 + $0x160] sm:$0xff]
      %v277 = vld [vmem:[%s231 + $0x168] sm:$0xff]
      %v278 = vld [vmem:[%s231 + $0x170] sm:$0xff]
      %v279 = vld [vmem:[%s231 + $0x178] sm:$0xff]
      %vm289 = vcmask 1045504
      %v290 = vrot.slane %v225, 2
      %v291 = vrot.slane %v174, 2
      %v292 = vsel %vm289, %v290, %v291
      %v293 = vrot.slane %v226, 2
      %v294 = vrot.slane %v175, 2
      %v295 = vsel %vm289, %v293, %v294
      %v296 = vrot.slane %v227, 2
      %v297 = vrot.slane %v176, 2
      %v298 = vsel %vm289, %v296, %v297
      %v299 = vrot.slane %v228, 2
      %v300 = vsel %vm289, %v291, %v299
      %v301 = vrot.slane %v229, 2
      %v302 = vsel %vm289, %v294, %v301
      %v303 = vrot.slane %v230, 2
      %v304 = vsel %vm289, %v297, %v303
      %311 = vmatprep.subr.mxu0 0.0
      %312 = vmatpush1.msra.mxu0 %v247
      %313 = vmatprep.subr.mxu0 0.0
      %314 = vmatpush1.msra.mxu0 %v246
      %315 = vmatprep.subr.mxu0 0.0
      %316 = vmatpush1.msra.mxu0 %v245
      %317 = vmatprep.subr.mxu0 0.0
      %318 = vmatpush1.msra.mxu0 %v244
      %319 = vmatprep.subr.mxu0 0.0
      %320 = vmatpush1.msra.mxu0 %v243
      %321 = vmatprep.subr.mxu0 0.0
      %322 = vmatpush1.msra.mxu0 %v242
      %323 = vmatprep.subr.mxu0 0.0
      %324 = vmatpush1.msra.mxu0 %v241
      %325 = vmatprep.subr.mxu0 0.0
      %326 = vmatpush1.msra.mxu0 %v240
      %327 = vmatprep.subr.mxu0 0.0
      %328 = vmatpush1.msra.mxu0 %v239
      %329 = vmatprep.subr.mxu0 0.0
      %330 = vmatpush1.msra.mxu0 %v238
      %331 = vmatprep.subr.mxu0 0.0
      %332 = vmatpush1.msra.mxu0 %v237
      %333 = vmatprep.subr.mxu0 0.0
      %334 = vmatpush1.msra.mxu0 %v236
      %335 = vmatprep.subr.mxu0 0.0
      %336 = vmatpush1.msra.mxu0 %v235
      %337 = vmatprep.subr.mxu0 0.0
      %338 = vmatpush1.msra.mxu0 %v234
      %339 = vmatprep.subr.mxu0 0.0
      %340 = vmatpush1.msra.mxu0 %v233
      %341 = vmatprep.subr.mxu0 0.0
      %342 = vmatpush1.msra.mxu0 %v232
      %343 = vmatprep.subr.mxu0 0.0
      %344 = vmatpush2.msra.mxu0 %v263
      %345 = vmatprep.subr.mxu0 0.0
      %346 = vmatpush2.msra.mxu0 %v262
      %347 = vmatprep.subr.mxu0 0.0
      %348 = vmatpush2.msra.mxu0 %v261
      %349 = vmatprep.subr.mxu0 0.0
      %350 = vmatpush2.msra.mxu0 %v260
      %351 = vmatprep.subr.mxu0 0.0
      %352 = vmatpush2.msra.mxu0 %v259
      %353 = vmatprep.subr.mxu0 0.0
      %354 = vmatpush2.msra.mxu0 %v258
      %355 = vmatprep.subr.mxu0 0.0
      %356 = vmatpush2.msra.mxu0 %v257
      %357 = vmatprep.subr.mxu0 0.0
      %358 = vmatpush2.msra.mxu0 %v256
      %359 = vmatprep.subr.mxu0 0.0
      %360 = vmatpush2.msra.mxu0 %v255
      %361 = vmatprep.subr.mxu0 0.0
      %362 = vmatpush2.msra.mxu0 %v254
      %363 = vmatprep.subr.mxu0 0.0
      %364 = vmatpush2.msra.mxu0 %v253
      %365 = vmatprep.subr.mxu0 0.0
      %366 = vmatpush2.msra.mxu0 %v252
      %367 = vmatprep.subr.mxu0 0.0
      %368 = vmatpush2.msra.mxu0 %v251
      %369 = vmatprep.subr.mxu0 0.0
      %370 = vmatpush2.msra.mxu0 %v250
      %371 = vmatprep.subr.mxu0 0.0
      %372 = vmatpush2.msra.mxu0 %v249
      %373 = vmatprep.subr.mxu0 0.0
      %374 = vmatpush2.msra.mxu0 %v248
      %375 = vmatprep.mubr.f32.mxu0 %v295
      %376 = vmatmul.mubr.f32.gmra.mxu0 %v292
      %v377 = vpop.f32.mrf.mxu0
      %v378 = vadd.f32 0.0, %v377
      %v379 = vpop.f32.mrf.mxu0
      %380 = vmatprep.mubr.f32.mxu0 %v302
      %381 = vmatmul.mubr.f32.gmra.mxu0 %v300
      %v382 = vpop.f32.mrf.mxu0
      %v383 = vadd.f32 0.0, %v382
      %v384 = vpop.f32.mrf.mxu0
      %385 = vdwg.mxu0
      %386 = vmatprep.subr.mxu0 0.0
      %387 = vmatpush1.msra.mxu0 %v279
      %388 = vmatprep.subr.mxu0 0.0
      %389 = vmatpush1.msra.mxu0 %v278
      %390 = vmatprep.subr.mxu0 0.0
      %391 = vmatpush1.msra.mxu0 %v277
      %392 = vmatprep.subr.mxu0 0.0
      %393 = vmatpush1.msra.mxu0 %v276
      %394 = vmatprep.subr.mxu0 0.0
      %395 = vmatpush1.msra.mxu0 %v275
      %396 = vmatprep.subr.mxu0 0.0
      %397 = vmatpush1.msra.mxu0 %v274
      %398 = vmatprep.subr.mxu0 0.0
      %399 = vmatpush1.msra.mxu0 %v273
      %400 = vmatprep.subr.mxu0 0.0
      %401 = vmatpush1.msra.mxu0 %v272
      %402 = vmatprep.subr.mxu0 0.0
      %403 = vmatpush1.msra.mxu0 %v271
      %404 = vmatprep.subr.mxu0 0.0
      %405 = vmatpush1.msra.mxu0 %v270
      %406 = vmatprep.subr.mxu0 0.0
      %407 = vmatpush1.msra.mxu0 %v269
      %408 = vmatprep.subr.mxu0 0.0
      %409 = vmatpush1.msra.mxu0 %v268
      %410 = vmatprep.subr.mxu0 0.0
      %411 = vmatpush1.msra.mxu0 %v267
      %412 = vmatprep.subr.mxu0 0.0
      %413 = vmatpush1.msra.mxu0 %v266
      %414 = vmatprep.subr.mxu0 0.0
      %415 = vmatpush1.msra.mxu0 %v265
      %416 = vmatprep.subr.mxu0 0.0
      %417 = vmatpush1.msra.mxu0 %v264
      %418 = vmatprep.subr.mxu0 0.0
      %419 = vmatpush2.msra.mxu0 0.0
      %420 = vmatprep.subr.mxu0 0.0
      %421 = vmatpush2.msra.mxu0 0.0
      %422 = vmatprep.subr.mxu0 0.0
      %423 = vmatpush2.msra.mxu0 0.0
      %424 = vmatprep.subr.mxu0 0.0
      %425 = vmatpush2.msra.mxu0 0.0
      %426 = vmatprep.subr.mxu0 0.0
      %427 = vmatpush2.msra.mxu0 0.0
      %428 = vmatprep.subr.mxu0 0.0
      %429 = vmatpush2.msra.mxu0 0.0
      %430 = vmatprep.subr.mxu0 0.0
      %431 = vmatpush2.msra.mxu0 0.0
      %432 = vmatprep.subr.mxu0 0.0
      %433 = vmatpush2.msra.mxu0 0.0
      %434 = vmatprep.subr.mxu0 0.0
      %435 = vmatpush2.msra.mxu0 0.0
      %436 = vmatprep.subr.mxu0 0.0
      %437 = vmatpush2.msra.mxu0 0.0
      %438 = vmatprep.subr.mxu0 0.0
      %439 = vmatpush2.msra.mxu0 0.0
      %440 = vmatprep.subr.mxu0 0.0
      %441 = vmatpush2.msra.mxu0 0.0
      %442 = vmatprep.subr.mxu0 0.0
      %443 = vmatpush2.msra.mxu0 0.0
      %444 = vmatprep.subr.mxu0 0.0
      %445 = vmatpush2.msra.mxu0 0.0
      %446 = vmatprep.subr.mxu0 0.0
      %447 = vmatpush2.msra.mxu0 0.0
      %448 = vmatprep.subr.mxu0 0.0
      %449 = vmatpush2.msra.mxu0 0.0
      %450 = vmatprep.mubr.f32.mxu0 0.0
      %451 = vmatmul.mubr.f32.gmra.mxu0 %v298
      %v452 = vpop.f32.mrf.mxu0
      %v453 = vadd.f32 %v378, %v452
      %v454 = vpop.f32.mrf.mxu0
      %455 = vmatprep.mubr.f32.mxu0 0.0
      %456 = vmatmul.mubr.f32.gmra.mxu0 %v304
      %v457 = vpop.f32.mrf.mxu0
      %v458 = vadd.f32 %v383, %v457
      %v459 = vpop.f32.mrf.mxu0
      %460 = vdwg.mxu0
      %461 = vmatprep.subr.mxu0 0.0
      %462 = vmatpush1.msra.mxu0 %v192
      %463 = vmatprep.subr.mxu0 0.0
      %464 = vmatpush1.msra.mxu0 %v191
      %465 = vmatprep.subr.mxu0 0.0
      %466 = vmatpush1.msra.mxu0 %v190
      %467 = vmatprep.subr.mxu0 0.0
      %468 = vmatpush1.msra.mxu0 %v189
      %469 = vmatprep.subr.mxu0 0.0
      %470 = vmatpush1.msra.mxu0 %v188
      %471 = vmatprep.subr.mxu0 0.0
      %472 = vmatpush1.msra.mxu0 %v187
      %473 = vmatprep.subr.mxu0 0.0
      %474 = vmatpush1.msra.mxu0 %v186
      %475 = vmatprep.subr.mxu0 0.0
      %476 = vmatpush1.msra.mxu0 %v185
      %477 = vmatprep.subr.mxu0 0.0
      %478 = vmatpush1.msra.mxu0 %v184
      %479 = vmatprep.subr.mxu0 0.0
      %480 = vmatpush1.msra.mxu0 %v183
      %481 = vmatprep.subr.mxu0 0.0
      %482 = vmatpush1.msra.mxu0 %v182
      %483 = vmatprep.subr.mxu0 0.0
      %484 = vmatpush1.msra.mxu0 %v181
      %485 = vmatprep.subr.mxu0 0.0
      %486 = vmatpush1.msra.mxu0 %v180
      %487 = vmatprep.subr.mxu0 0.0
      %488 = vmatpush1.msra.mxu0 %v179
      %489 = vmatprep.subr.mxu0 0.0
      %490 = vmatpush1.msra.mxu0 %v178
      %491 = vmatprep.subr.mxu0 0.0
      %492 = vmatpush1.msra.mxu0 %v177
      %493 = vmatprep.subr.mxu0 0.0
      %494 = vmatpush2.msra.mxu0 %v208
      %495 = vmatprep.subr.mxu0 0.0
      %496 = vmatpush2.msra.mxu0 %v207
      %497 = vmatprep.subr.mxu0 0.0
      %498 = vmatpush2.msra.mxu0 %v206
      %499 = vmatprep.subr.mxu0 0.0
      %500 = vmatpush2.msra.mxu0 %v205
      %501 = vmatprep.subr.mxu0 0.0
      %502 = vmatpush2.msra.mxu0 %v204
      %503 = vmatprep.subr.mxu0 0.0
      %504 = vmatpush2.msra.mxu0 %v203
      %505 = vmatprep.subr.mxu0 0.0
      %506 = vmatpush2.msra.mxu0 %v202
      %507 = vmatprep.subr.mxu0 0.0
      %508 = vmatpush2.msra.mxu0 %v201
      %509 = vmatprep.subr.mxu0 0.0
      %510 = vmatpush2.msra.mxu0 %v200
      %511 = vmatprep.subr.mxu0 0.0
      %512 = vmatpush2.msra.mxu0 %v199
      %513 = vmatprep.subr.mxu0 0.0
      %514 = vmatpush2.msra.mxu0 %v198
      %515 = vmatprep.subr.mxu0 0.0
      %516 = vmatpush2.msra.mxu0 %v197
      %517 = vmatprep.subr.mxu0 0.0
      %518 = vmatpush2.msra.mxu0 %v196
      %519 = vmatprep.subr.mxu0 0.0
      %520 = vmatpush2.msra.mxu0 %v195
      %521 = vmatprep.subr.mxu0 0.0
      %522 = vmatpush2.msra.mxu0 %v194
      %523 = vmatprep.subr.mxu0 0.0
      %524 = vmatpush2.msra.mxu0 %v193
      %525 = vmatprep.mubr.f32.mxu0 %v172
      %526 = vmatmul.mubr.f32.gmra.mxu0 %v171
      %v527 = vpop.f32.mrf.mxu0
      %v528 = vadd.f32 %v453, %v527
      %v529 = vpop.f32.mrf.mxu0
      %530 = vmatprep.mubr.f32.mxu0 %v175
      %531 = vmatmul.mubr.f32.gmra.mxu0 %v174
      %v532 = vpop.f32.mrf.mxu0
      %v533 = vadd.f32 %v458, %v532
      %v534 = vpop.f32.mrf.mxu0
      %535 = vdwg.mxu0
      %536 = vmatprep.subr.mxu0 0.0
      %537 = vmatpush1.msra.mxu0 %v224
      %538 = vmatprep.subr.mxu0 0.0
      %539 = vmatpush1.msra.mxu0 %v223
      %540 = vmatprep.subr.mxu0 0.0
      %541 = vmatpush1.msra.mxu0 %v222
      %542 = vmatprep.subr.mxu0 0.0
      %543 = vmatpush1.msra.mxu0 %v221
      %544 = vmatprep.subr.mxu0 0.0
      %545 = vmatpush1.msra.mxu0 %v220
      %546 = vmatprep.subr.mxu0 0.0
      %547 = vmatpush1.msra.mxu0 %v219
      %548 = vmatprep.subr.mxu0 0.0
      %549 = vmatpush1.msra.mxu0 %v218
      %550 = vmatprep.subr.mxu0 0.0
      %551 = vmatpush1.msra.mxu0 %v217
      %552 = vmatprep.subr.mxu0 0.0
      %553 = vmatpush1.msra.mxu0 %v216
      %554 = vmatprep.subr.mxu0 0.0
      %555 = vmatpush1.msra.mxu0 %v215
      %556 = vmatprep.subr.mxu0 0.0
      %557 = vmatpush1.msra.mxu0 %v214
      %558 = vmatprep.subr.mxu0 0.0
      %559 = vmatpush1.msra.mxu0 %v213
      %560 = vmatprep.subr.mxu0 0.0
      %561 = vmatpush1.msra.mxu0 %v212
      %562 = vmatprep.subr.mxu0 0.0
      %563 = vmatpush1.msra.mxu0 %v211
      %564 = vmatprep.subr.mxu0 0.0
      %565 = vmatpush1.msra.mxu0 %v210
      %566 = vmatprep.subr.mxu0 0.0
      %567 = vmatpush1.msra.mxu0 %v209
      %568 = vmatprep.subr.mxu0 0.0
      %569 = vmatpush2.msra.mxu0 0.0
      %570 = vmatprep.subr.mxu0 0.0
      %571 = vmatpush2.msra.mxu0 0.0
      %572 = vmatprep.subr.mxu0 0.0
      %573 = vmatpush2.msra.mxu0 0.0
      %574 = vmatprep.subr.mxu0 0.0
      %575 = vmatpush2.msra.mxu0 0.0
      %576 = vmatprep.subr.mxu0 0.0
      %577 = vmatpush2.msra.mxu0 0.0
      %578 = vmatprep.subr.mxu0 0.0
      %579 = vmatpush2.msra.mxu0 0.0
      %580 = vmatprep.subr.mxu0 0.0
      %581 = vmatpush2.msra.mxu0 0.0
      %582 = vmatprep.subr.mxu0 0.0
      %583 = vmatpush2.msra.mxu0 0.0
      %584 = vmatprep.subr.mxu0 0.0
      %585 = vmatpush2.msra.mxu0 0.0
      %586 = vmatprep.subr.mxu0 0.0
      %587 = vmatpush2.msra.mxu0 0.0
      %588 = vmatprep.subr.mxu0 0.0
      %589 = vmatpush2.msra.mxu0 0.0
      %590 = vmatprep.subr.mxu0 0.0
      %591 = vmatpush2.msra.mxu0 0.0
      %592 = vmatprep.subr.mxu0 0.0
      %593 = vmatpush2.msra.mxu0 0.0
      %594 = vmatprep.subr.mxu0 0.0
      %595 = vmatpush2.msra.mxu0 0.0
      %596 = vmatprep.subr.mxu0 0.0
      %597 = vmatpush2.msra.mxu0 0.0
      %598 = vmatprep.subr.mxu0 0.0
      %599 = vmatpush2.msra.mxu0 0.0
      %600 = vmatprep.mubr.f32.mxu0 0.0
      %601 = vmatmul.mubr.f32.gmra.mxu0 %v173
      %v602 = vpop.f32.mrf.mxu0
      %v603 = vadd.f32 %v528, %v602
      %v604 = vpop.f32.mrf.mxu0
      %605 = vmatprep.mubr.f32.mxu0 0.0
      %606 = vmatmul.mubr.f32.gmra.mxu0 %v176
      %v607 = vpop.f32.mrf.mxu0
      %v608 = vadd.f32 %v533, %v607
      %v609 = vpop.f32.mrf.mxu0
      %610 = vdwg.mxu0
      %v611 = vld [vmem:[%s165] sm:$0xf0]
      %v612 = vld [vmem:[%s165 + $0x8] sm:$0xf0]
      %v613 = vld [vmem:[%s165 + $0x10] sm:$0xf0]
      %v614 = vld [vmem:[%s165 + $0x30] sm:$0xf]
      %v615 = vld [vmem:[%s165 + $0x38] sm:$0xf]
      %v616 = vld [vmem:[%s165 + $0x40] sm:$0xf]
      %s617 = scalar_lea.vmem %s1, 768
      %v618 = vld [vmem:[%s617] sm:$0xff]
      %v619 = vld [vmem:[%s617 + $0x8] sm:$0xff]
      %v620 = vld [vmem:[%s617 + $0x10] sm:$0xff]
      %v621 = vld [vmem:[%s617 + $0x18] sm:$0xff]
      %v622 = vld [vmem:[%s617 + $0x20] sm:$0xff]
      %v623 = vld [vmem:[%s617 + $0x28] sm:$0xff]
      %v624 = vld [vmem:[%s617 + $0x30] sm:$0xff]
      %v625 = vld [vmem:[%s617 + $0x38] sm:$0xff]
      %v626 = vld [vmem:[%s617 + $0x40] sm:$0xff]
      %v627 = vld [vmem:[%s617 + $0x48] sm:$0xff]
      %v628 = vld [vmem:[%s617 + $0x50] sm:$0xff]
      %v629 = vld [vmem:[%s617 + $0x58] sm:$0xff]
      %v630 = vld [vmem:[%s617 + $0x60] sm:$0xff]
      %v631 = vld [vmem:[%s617 + $0x68] sm:$0xff]
      %v632 = vld [vmem:[%s617 + $0x70] sm:$0xff]
      %v633 = vld [vmem:[%s617 + $0x78] sm:$0xff]
      %v634 = vld [vmem:[%s617 + $0x80] sm:$0xff]
      %v635 = vld [vmem:[%s617 + $0x88] sm:$0xff]
      %v636 = vld [vmem:[%s617 + $0x90] sm:$0xff]
      %v637 = vld [vmem:[%s617 + $0x98] sm:$0xff]
      %v638 = vld [vmem:[%s617 + $0xa0] sm:$0xff]
      %v639 = vld [vmem:[%s617 + $0xa8] sm:$0xff]
      %v640 = vld [vmem:[%s617 + $0xb0] sm:$0xff]
      %v641 = vld [vmem:[%s617 + $0xb8] sm:$0xff]
      %v642 = vld [vmem:[%s617 + $0xc0] sm:$0xff]
      %v643 = vld [vmem:[%s617 + $0xc8] sm:$0xff]
      %v644 = vld [vmem:[%s617 + $0xd0] sm:$0xff]
      %v645 = vld [vmem:[%s617 + $0xd8] sm:$0xff]
      %v646 = vld [vmem:[%s617 + $0xe0] sm:$0xff]
      %v647 = vld [vmem:[%s617 + $0xe8] sm:$0xff]
      %v648 = vld [vmem:[%s617 + $0xf0] sm:$0xff]
      %v649 = vld [vmem:[%s617 + $0xf8] sm:$0xff]
      %v650 = vld [vmem:[%s617 + $0x100] sm:$0xff]
      %v651 = vld [vmem:[%s617 + $0x108] sm:$0xff]
      %v652 = vld [vmem:[%s617 + $0x110] sm:$0xff]
      %v653 = vld [vmem:[%s617 + $0x118] sm:$0xff]
      %v654 = vld [vmem:[%s617 + $0x120] sm:$0xff]
      %v655 = vld [vmem:[%s617 + $0x128] sm:$0xff]
      %v656 = vld [vmem:[%s617 + $0x130] sm:$0xff]
      %v657 = vld [vmem:[%s617 + $0x138] sm:$0xff]
      %v658 = vld [vmem:[%s617 + $0x140] sm:$0xff]
      %v659 = vld [vmem:[%s617 + $0x148] sm:$0xff]
      %v660 = vld [vmem:[%s617 + $0x150] sm:$0xff]
      %v661 = vld [vmem:[%s617 + $0x158] sm:$0xff]
      %v662 = vld [vmem:[%s617 + $0x160] sm:$0xff]
      %v663 = vld [vmem:[%s617 + $0x168] sm:$0xff]
      %v664 = vld [vmem:[%s617 + $0x170] sm:$0xff]
      %v665 = vld [vmem:[%s617 + $0x178] sm:$0xff]
      %vm672 = vcmask 1043456
      %v673 = vrot.slane %v611, 4
      %v674 = vrot.slane %v174, 4
      %v675 = vsel %vm672, %v673, %v674
      %v676 = vrot.slane %v612, 4
      %v677 = vrot.slane %v175, 4
      %v678 = vsel %vm672, %v676, %v677
      %v679 = vrot.slane %v613, 4
      %v680 = vrot.slane %v176, 4
      %v681 = vsel %vm672, %v679, %v680
      %v682 = vrot.slane %v614, 4
      %v683 = vsel %vm672, %v674, %v682
      %v684 = vrot.slane %v615, 4
      %v685 = vsel %vm672, %v677, %v684
      %v686 = vrot.slane %v616, 4
      %v687 = vsel %vm672, %v680, %v686
      %694 = vmatprep.subr.mxu0 0.0
      %695 = vmatpush1.msra.mxu0 %v633
      %696 = vmatprep.subr.mxu0 0.0
      %697 = vmatpush1.msra.mxu0 %v632
      %698 = vmatprep.subr.mxu0 0.0
      %699 = vmatpush1.msra.mxu0 %v631
      %700 = vmatprep.subr.mxu0 0.0
      %701 = vmatpush1.msra.mxu0 %v630
      %702 = vmatprep.subr.mxu0 0.0
      %703 = vmatpush1.msra.mxu0 %v629
      %704 = vmatprep.subr.mxu0 0.0
      %705 = vmatpush1.msra.mxu0 %v628
      %706 = vmatprep.subr.mxu0 0.0
      %707 = vmatpush1.msra.mxu0 %v627
      %708 = vmatprep.subr.mxu0 0.0
      %709 = vmatpush1.msra.mxu0 %v626
      %710 = vmatprep.subr.mxu0 0.0
      %711 = vmatpush1.msra.mxu0 %v625
      %712 = vmatprep.subr.mxu0 0.0
      %713 = vmatpush1.msra.mxu0 %v624
      %714 = vmatprep.subr.mxu0 0.0
      %715 = vmatpush1.msra.mxu0 %v623
      %716 = vmatprep.subr.mxu0 0.0
      %717 = vmatpush1.msra.mxu0 %v622
      %718 = vmatprep.subr.mxu0 0.0
      %719 = vmatpush1.msra.mxu0 %v621
      %720 = vmatprep.subr.mxu0 0.0
      %721 = vmatpush1.msra.mxu0 %v620
      %722 = vmatprep.subr.mxu0 0.0
      %723 = vmatpush1.msra.mxu0 %v619
      %724 = vmatprep.subr.mxu0 0.0
      %725 = vmatpush1.msra.mxu0 %v618
      %726 = vmatprep.subr.mxu0 0.0
      %727 = vmatpush2.msra.mxu0 %v649
      %728 = vmatprep.subr.mxu0 0.0
      %729 = vmatpush2.msra.mxu0 %v648
      %730 = vmatprep.subr.mxu0 0.0
      %731 = vmatpush2.msra.mxu0 %v647
      %732 = vmatprep.subr.mxu0 0.0
      %733 = vmatpush2.msra.mxu0 %v646
      %734 = vmatprep.subr.mxu0 0.0
      %735 = vmatpush2.msra.mxu0 %v645
      %736 = vmatprep.subr.mxu0 0.0
      %737 = vmatpush2.msra.mxu0 %v644
      %738 = vmatprep.subr.mxu0 0.0
      %739 = vmatpush2.msra.mxu0 %v643
      %740 = vmatprep.subr.mxu0 0.0
      %741 = vmatpush2.msra.mxu0 %v642
      %742 = vmatprep.subr.mxu0 0.0
      %743 = vmatpush2.msra.mxu0 %v641
      %744 = vmatprep.subr.mxu0 0.0
      %745 = vmatpush2.msra.mxu0 %v640
      %746 = vmatprep.subr.mxu0 0.0
      %747 = vmatpush2.msra.mxu0 %v639
      %748 = vmatprep.subr.mxu0 0.0
      %749 = vmatpush2.msra.mxu0 %v638
      %750 = vmatprep.subr.mxu0 0.0
      %751 = vmatpush2.msra.mxu0 %v637
      %752 = vmatprep.subr.mxu0 0.0
      %753 = vmatpush2.msra.mxu0 %v636
      %754 = vmatprep.subr.mxu0 0.0
      %755 = vmatpush2.msra.mxu0 %v635
      %756 = vmatprep.subr.mxu0 0.0
      %757 = vmatpush2.msra.mxu0 %v634
      %758 = vmatprep.mubr.f32.mxu0 %v678
      %759 = vmatmul.mubr.f32.gmra.mxu0 %v675
      %v760 = vpop.f32.mrf.mxu0
      %v761 = vadd.f32 0.0, %v760
      %v762 = vpop.f32.mrf.mxu0
      %763 = vmatprep.mubr.f32.mxu0 %v685
      %764 = vmatmul.mubr.f32.gmra.mxu0 %v683
      %v765 = vpop.f32.mrf.mxu0
      %v766 = vadd.f32 0.0, %v765
      %v767 = vpop.f32.mrf.mxu0
      %768 = vdwg.mxu0
      %769 = vmatprep.subr.mxu0 0.0
      %770 = vmatpush1.msra.mxu0 %v665
      %771 = vmatprep.subr.mxu0 0.0
      %772 = vmatpush1.msra.mxu0 %v664
      %773 = vmatprep.subr.mxu0 0.0
      %774 = vmatpush1.msra.mxu0 %v663
      %775 = vmatprep.subr.mxu0 0.0
      %776 = vmatpush1.msra.mxu0 %v662
      %777 = vmatprep.subr.mxu0 0.0
      %778 = vmatpush1.msra.mxu0 %v661
      %779 = vmatprep.subr.mxu0 0.0
      %780 = vmatpush1.msra.mxu0 %v660
      %781 = vmatprep.subr.mxu0 0.0
      %782 = vmatpush1.msra.mxu0 %v659
      %783 = vmatprep.subr.mxu0 0.0
      %784 = vmatpush1.msra.mxu0 %v658
      %785 = vmatprep.subr.mxu0 0.0
      %786 = vmatpush1.msra.mxu0 %v657
      %787 = vmatprep.subr.mxu0 0.0
      %788 = vmatpush1.msra.mxu0 %v656
      %789 = vmatprep.subr.mxu0 0.0
      %790 = vmatpush1.msra.mxu0 %v655
      %791 = vmatprep.subr.mxu0 0.0
      %792 = vmatpush1.msra.mxu0 %v654
      %793 = vmatprep.subr.mxu0 0.0
      %794 = vmatpush1.msra.mxu0 %v653
      %795 = vmatprep.subr.mxu0 0.0
      %796 = vmatpush1.msra.mxu0 %v652
      %797 = vmatprep.subr.mxu0 0.0
      %798 = vmatpush1.msra.mxu0 %v651
      %799 = vmatprep.subr.mxu0 0.0
      %800 = vmatpush1.msra.mxu0 %v650
      %801 = vmatprep.subr.mxu0 0.0
      %802 = vmatpush2.msra.mxu0 0.0
      %803 = vmatprep.subr.mxu0 0.0
      %804 = vmatpush2.msra.mxu0 0.0
      %805 = vmatprep.subr.mxu0 0.0
      %806 = vmatpush2.msra.mxu0 0.0
      %807 = vmatprep.subr.mxu0 0.0
      %808 = vmatpush2.msra.mxu0 0.0
      %809 = vmatprep.subr.mxu0 0.0
      %810 = vmatpush2.msra.mxu0 0.0
      %811 = vmatprep.subr.mxu0 0.0
      %812 = vmatpush2.msra.mxu0 0.0
      %813 = vmatprep.subr.mxu0 0.0
      %814 = vmatpush2.msra.mxu0 0.0
      %815 = vmatprep.subr.mxu0 0.0
      %816 = vmatpush2.msra.mxu0 0.0
      %817 = vmatprep.subr.mxu0 0.0
      %818 = vmatpush2.msra.mxu0 0.0
      %819 = vmatprep.subr.mxu0 0.0
      %820 = vmatpush2.msra.mxu0 0.0
      %821 = vmatprep.subr.mxu0 0.0
      %822 = vmatpush2.msra.mxu0 0.0
      %823 = vmatprep.subr.mxu0 0.0
      %824 = vmatpush2.msra.mxu0 0.0
      %825 = vmatprep.subr.mxu0 0.0
      %826 = vmatpush2.msra.mxu0 0.0
      %827 = vmatprep.subr.mxu0 0.0
      %828 = vmatpush2.msra.mxu0 0.0
      %829 = vmatprep.subr.mxu0 0.0
      %830 = vmatpush2.msra.mxu0 0.0
      %831 = vmatprep.subr.mxu0 0.0
      %832 = vmatpush2.msra.mxu0 0.0
      %833 = vmatprep.mubr.f32.mxu0 0.0
      %834 = vmatmul.mubr.f32.gmra.mxu0 %v681
      %v835 = vpop.f32.mrf.mxu0
      %v836 = vadd.f32 %v761, %v835
      %v837 = vpop.f32.mrf.mxu0
      %838 = vmatprep.mubr.f32.mxu0 0.0
      %839 = vmatmul.mubr.f32.gmra.mxu0 %v687
      %v840 = vpop.f32.mrf.mxu0
      %v841 = vadd.f32 %v766, %v840
      %v842 = vpop.f32.mrf.mxu0
      %843 = vdwg.mxu0
      %v844 = vadd.f32 %v603, %v836
      %v845 = vadd.f32 %v608, %v841
      %v846 = vld [vmem:[%s2] sm:$0x1]
      %v848 = vlaneseq
      %v849 = vshrl.u32 %v848, 7
      %v850 = vsub.s32 0, %v849
      %v851 = vrot.slane %v846, %v850
      %v853 = vadd.f32 %v844, %v851
      %v854 = vadd.f32 %v845, %v851
      %v855 = vmax.f32 %v853, 0.0
      %v856 = vmax.f32 %v854, 0.0
      %857 = vst [vmem:[%s170] sm:$0xff] %v855
      %858 = vst [vmem:[%s170 + $0x8] sm:$0xff] %v856
      %p859 = scmp.lt.s32.totalorder %s14, 1
      %s860 = scalar_select %p859, %s14, 1
      %s861 = smul.addr %s860, 2
      %s862 = smul.addr %s861, 8
      %s863 = scalar_lea.vmem %s3, %s862
      // Predicated region
      $region33: #{conv_tokenizer_pallas.5} parent=31 // pred_check
        %p864 = pneg %p100
      $region34: #{conv_tokenizer_pallas.5} parent=31 // pred_check_branch
        %866 = sbr.rel (%p864) target = $region36
      $region35: #{conv_tokenizer_pallas.5} parent=31 // pred_region
        _
      $region36: #{conv_tokenizer_pallas.5} parent=31 // pred_fallthru
        _
    $region32: #{conv_tokenizer_pallas.5} parent=5 // pred_fallthru
      _
    %p867 = scmp.le.s32.totalorder 2, %s9
    // Predicated region
    $region37: #{conv_tokenizer_pallas.5} parent=5 // pred_check
      %p868 = pneg %p867
    $region38: #{conv_tokenizer_pallas.5} parent=5 // pred_check_branch
      %870 = sbr.rel (%p868) target = $region40
    $region39: #{conv_tokenizer_pallas.5} parent=5 // pred_region
      %s871 = ssub.s32 %s9, 2
      // Predicated region
      $region41: #{conv_tokenizer_pallas.5} parent=39 // pred_check
        %p872 = pneg %p106
      $region42: #{conv_tokenizer_pallas.5} parent=39 // pred_check_branch
        %874 = sbr.rel (%p872) target = $region44
      $region43: #{conv_tokenizer_pallas.5} parent=39 // pred_region
        %p875 = scmp.lt.s32.totalorder %s15, 1
        %s876 = scalar_select %p875, %s15, 1
        %s877 = smul.addr %s876, 2
        %s878 = smul.addr %s877, 8
        %s879 = scalar_lea.vmem %s3, %s878
      $region44: #{conv_tokenizer_pallas.5} parent=39 // pred_fallthru
        _
    $region40: #{conv_tokenizer_pallas.5} parent=5 // pred_fallthru
      _
  $region6: #{conv_tokenizer_pallas.5} parent=0 // loop_footer
    %s13 = sadd.s32 1, %s9
  $region7: #{conv_tokenizer_pallas.5} parent=0 // loop_footer_branch
    %8 = sbr.rel target = $region3
  $region8: #{conv_tokenizer_pallas.5} parent=0 // loop_exit
    _

// kernel: conv_tokenizer_pallas.6
$region0: #{conv_tokenizer_pallas.6}
  #allocation0 [shape = 'u32[]', space=smem, size = 0x4, offset = 0x4, fixed_abs, tag = 'smem constant byte address 0x4 - core index']
  #allocation1 [shape = 'u32[144,128]{1,0:T(1,128)}', space=vmem, size = 0x12000, scoped, tag = 'internal scratch']
  %s0 = inlined_call_operand.vmem [shape: f32[2,40,192], index: 0, kind: input, shape index: {}]
  %s1 = inlined_call_operand.vmem [shape: f32[3,192,128], index: 1, kind: input, shape index: {}]
  %s2 = inlined_call_operand.vmem [shape: f32[1,128], index: 2, kind: input, shape index: {}]
  %s3 = inlined_call_operand.vmem [shape: f32[2,32,128], index: 3, kind: output, shape index: {}]
  %s4 = sld [smem:[#allocation0]]
  $region45: #{conv_tokenizer_pallas.6} parent=0
    _
  %s6 = ssub.s32 1, %s4
  %s7 = scalar_select 0, %s6, %s4
  loop: start=0, step=1, limit=4
  $region2: #{conv_tokenizer_pallas.6} parent=0 // loop_pre_header
    _
  $region3: #{conv_tokenizer_pallas.6} parent=0 // loop_header
    %s9 = sphi 0, %s13
    %p10 = scmp.ge.s32.totalorder %s9, 4
    %s19 = sphi 0, %s21
    %s22 = sphi 0, %s19
    %s23 = sphi 0, %s22
    %s39 = sphi 0, %s23
    %s43 = sphi 0, %s43
    %s45 = sphi 0, %s43
    %s46 = sphi 0, %s45
    %s60 = sphi 0, %s46
    %s64 = sphi 0, %s64
    %s66 = sphi 0, %s64
    %s67 = sphi 0, %s66
    %s81 = sphi 0, %s67
    %s87 = sphi 0, %s89
    %s90 = sphi 0, %s87
    %s91 = sphi 0, %s90
    %s107 = sphi 0, %s91
  $region4: #{conv_tokenizer_pallas.6} parent=0 // loop_header_branch
    %12 = sbr.rel (%p10) target = $region8
  $region5: #{conv_tokenizer_pallas.6} parent=0 // loop_body
    %s14 = ssub.s32 %s9, 1
    %s15 = ssub.s32 %s9, 2
    %s16 = sadd.s32 %s9, 1
    %s17 = ssub.s32 %s9, %s16
    %p18 = scmp.eq.s32.totalorder %s17, 0
    %s20 = sadd.s32 %s19, 1
    %s21 = scalar_select %p18, %s19, %s20
    %p24 = pneg %p18
    %p25 = scmp.eq.s32.totalorder %s9, 1
    %p26 = por %p24, %p25
    %p27 = scmp.ne.s32.totalorder %s19, %s22
    %p28 = scmp.eq.s32.totalorder %s9, 0
    %p29 = por %p27, %p28
    %p30 = scmp.ne.s32.totalorder %s19, %s22
    %p31 = scmp.eq.s32.totalorder %s14, 1
    %p32 = por %p30, %p31
    %p33 = scmp.ne.s32.totalorder %s22, %s23
    %p34 = scmp.eq.s32.totalorder %s14, 0
    %p35 = por %p33, %p34
    %p36 = scmp.ne.s32.totalorder %s22, %s23
    %p37 = scmp.eq.s32.totalorder %s15, 1
    %p38 = por %p36, %p37
    %p40 = scmp.ne.s32.totalorder %s23, %s39
    %p41 = scmp.eq.s32.totalorder %s15, 0
    %p42 = por %p40, %p41
    %s44 = sadd.s32 %s43, 1
    %p47 = scmp.eq.s32.totalorder %s9, 1
    %p48 = scmp.ne.s32.totalorder %s43, %s45
    %p49 = scmp.eq.s32.totalorder %s9, 0
    %p50 = por %p48, %p49
    %p51 = scmp.ne.s32.totalorder %s43, %s45
    %p52 = scmp.eq.s32.totalorder %s14, 1
    %p53 = por %p51, %p52
    %p54 = scmp.ne.s32.totalorder %s45, %s46
    %p55 = scmp.eq.s32.totalorder %s14, 0
    %p56 = por %p54, %p55
    %p57 = scmp.ne.s32.totalorder %s45, %s46
    %p58 = scmp.eq.s32.totalorder %s15, 1
    %p59 = por %p57, %p58
    %p61 = scmp.ne.s32.totalorder %s46, %s60
    %p62 = scmp.eq.s32.totalorder %s15, 0
    %p63 = por %p61, %p62
    %s65 = sadd.s32 %s64, 1
    %p68 = scmp.eq.s32.totalorder %s9, 1
    %p69 = scmp.ne.s32.totalorder %s64, %s66
    %p70 = scmp.eq.s32.totalorder %s9, 0
    %p71 = por %p69, %p70
    %p72 = scmp.ne.s32.totalorder %s64, %s66
    %p73 = scmp.eq.s32.totalorder %s14, 1
    %p74 = por %p72, %p73
    %p75 = scmp.ne.s32.totalorder %s66, %s67
    %p76 = scmp.eq.s32.totalorder %s14, 0
    %p77 = por %p75, %p76
    %p78 = scmp.ne.s32.totalorder %s66, %s67
    %p79 = scmp.eq.s32.totalorder %s15, 1
    %p80 = por %p78, %p79
    %p82 = scmp.ne.s32.totalorder %s67, %s81
    %p83 = scmp.eq.s32.totalorder %s15, 0
    %p84 = por %p82, %p83
    %s85 = ssub.s32 %s9, %s16
    %p86 = scmp.eq.s32.totalorder %s85, 0
    %s88 = sadd.s32 %s87, 1
    %s89 = scalar_select %p86, %s87, %s88
    %p92 = pneg %p86
    %p93 = scmp.eq.s32.totalorder %s9, 1
    %p94 = por %p92, %p93
    %p95 = scmp.ne.s32.totalorder %s87, %s90
    %p96 = scmp.eq.s32.totalorder %s9, 0
    %p97 = por %p95, %p96
    %p98 = scmp.ne.s32.totalorder %s87, %s90
    %p99 = scmp.eq.s32.totalorder %s14, 1
    %p100 = por %p98, %p99
    %p101 = scmp.ne.s32.totalorder %s90, %s91
    %p102 = scmp.eq.s32.totalorder %s14, 0
    %p103 = por %p101, %p102
    %p104 = scmp.ne.s32.totalorder %s90, %s91
    %p105 = scmp.eq.s32.totalorder %s15, 1
    %p106 = por %p104, %p105
    %p108 = scmp.ne.s32.totalorder %s91, %s107
    %p109 = scmp.eq.s32.totalorder %s15, 0
    %p110 = por %p108, %p109
    %p111 = scmp.le.s32.totalorder 1, %s9
    %p112 = scmp.lt.s32.totalorder %s9, 3
    %p113 = pnand %p111, %p112
    %p114 = pneg %p113
    // Predicated region
    $region9: #{conv_tokenizer_pallas.6} parent=5 // pred_check
      _
    $region10: #{conv_tokenizer_pallas.6} parent=5 // pred_check_branch
      %116 = sbr.rel (%p113) target = $region12
    $region11: #{conv_tokenizer_pallas.6} parent=5 // pred_region
      %s117 = ssub.s32 %s9, 1
      // Predicated region
      $region13: #{conv_tokenizer_pallas.6} parent=11 // pred_check
        %p118 = pneg %p56
      $region14: #{conv_tokenizer_pallas.6} parent=11 // pred_check_branch
        %120 = sbr.rel (%p118) target = $region16
      $region15: #{conv_tokenizer_pallas.6} parent=11 // pred_region
        _
      $region16: #{conv_tokenizer_pallas.6} parent=11 // pred_fallthru
        _
      // Predicated region
      $region17: #{conv_tokenizer_pallas.6} parent=11 // pred_check
        %p121 = pneg %p77
      $region18: #{conv_tokenizer_pallas.6} parent=11 // pred_check_branch
        %123 = sbr.rel (%p121) target = $region20
      $region19: #{conv_tokenizer_pallas.6} parent=11 // pred_region
        _
      $region20: #{conv_tokenizer_pallas.6} parent=11 // pred_fallthru
        _
    $region12: #{conv_tokenizer_pallas.6} parent=5 // pred_fallthru
      _
    %p124 = scmp.lt.s32.totalorder %s9, 2
    // Predicated region
    $region21: #{conv_tokenizer_pallas.6} parent=5 // pred_check
      %p125 = pneg %p124
    $region22: #{conv_tokenizer_pallas.6} parent=5 // pred_check_branch
      %127 = sbr.rel (%p125) target = $region24
    $region23: #{conv_tokenizer_pallas.6} parent=5 // pred_region
      // Predicated region
      $region25: #{conv_tokenizer_pallas.6} parent=23 // pred_check
        %p128 = pneg %p29
      $region26: #{conv_tokenizer_pallas.6} parent=23 // pred_check_branch
        %130 = sbr.rel (%p128) target = $region28
      $region27: #{conv_tokenizer_pallas.6} parent=23 // pred_region
        %p131 = scmp.lt.s32.totalorder %s9, 1
        %s132 = scalar_select %p131, %s9, 1
        %s133 = smul.addr %s132, 10
        %s134 = smul.addr %s133, 8
        %s135 = scalar_lea.vmem %s0, %s134
      $region28: #{conv_tokenizer_pallas.6} parent=23 // pred_fallthru
        _
    $region24: #{conv_tokenizer_pallas.6} parent=5 // pred_fallthru
      _
    %p136 = scmp.le.s32.totalorder 1, %s9
    %p137 = scmp.lt.s32.totalorder %s9, 3
    %p138 = pnand %p136, %p137
    %p139 = pneg %p138
    // Predicated region
    $region29: #{conv_tokenizer_pallas.6} parent=5 // pred_check
      _
    $region30: #{conv_tokenizer_pallas.6} parent=5 // pred_check_branch
      %141 = sbr.rel (%p138) target = $region32
    $region31: #{conv_tokenizer_pallas.6} parent=5 // pred_region
      %s142 = ssub.s32 %s9, 1
      %p143 = scmp.lt.s32.totalorder %s14, 1
      %s144 = scalar_select %p143, %s14, 1
      %s145 = smul.addr %s144, 10
      %s146 = smul.addr %s145, 8
      %s147 = scalar_lea.vmem %s0, %s146
      %p148 = pneg %p35
      %p149 = pneg %p32
      %p150 = pneg %p56
      %p151 = pneg %p53
      %p152 = pneg %p77
      %p153 = pneg %p74
      %p154 = pneg %p103
      %p155 = pneg %p100
      %p156 = scmp.lt.s32.totalorder %s14, 1
      %s157 = scalar_select %p156, %s14, 1
      %s158 = smul.addr %s157, 4
      %s159 = smul.addr %s158, 8
      %s160 = scalar_lea.vmem %s3, %s159
      %p161 = scmp.lt.s32.totalorder %s14, 1
      %s162 = scalar_select %p161, %s14, 1
      %s163 = smul.addr %s162, 10
      %s164 = smul.addr %s163, 8
      %s165 = scalar_lea.vmem %s0, %s164
      %p166 = scmp.lt.s32.totalorder %s14, 1
      %s167 = scalar_select %p166, %s14, 1
      %s168 = smul.addr %s167, 4
      %s169 = smul.addr %s168, 8
      %s170 = scalar_lea.vmem %s3, %s169
      %v171 = vld [vmem:[%s165] sm:$0xff]
      %v172 = vld [vmem:[%s165 + $0x8] sm:$0xff]
      %v173 = vld [vmem:[%s165 + $0x10] sm:$0xff]
      %v174 = vld [vmem:[%s165 + $0x18] sm:$0xff]
      %v175 = vld [vmem:[%s165 + $0x20] sm:$0xff]
      %v176 = vld [vmem:[%s165 + $0x28] sm:$0xff]
      %v177 = vld [vmem:[%s165 + $0x30] sm:$0xff]
      %v178 = vld [vmem:[%s165 + $0x38] sm:$0xff]
      %v179 = vld [vmem:[%s1] sm:$0xff]
      %v180 = vld [vmem:[%s1 + $0x8] sm:$0xff]
      %v181 = vld [vmem:[%s1 + $0x10] sm:$0xff]
      %v182 = vld [vmem:[%s1 + $0x18] sm:$0xff]
      %v183 = vld [vmem:[%s1 + $0x20] sm:$0xff]
      %v184 = vld [vmem:[%s1 + $0x28] sm:$0xff]
      %v185 = vld [vmem:[%s1 + $0x30] sm:$0xff]
      %v186 = vld [vmem:[%s1 + $0x38] sm:$0xff]
      %v187 = vld [vmem:[%s1 + $0x40] sm:$0xff]
      %v188 = vld [vmem:[%s1 + $0x48] sm:$0xff]
      %v189 = vld [vmem:[%s1 + $0x50] sm:$0xff]
      %v190 = vld [vmem:[%s1 + $0x58] sm:$0xff]
      %v191 = vld [vmem:[%s1 + $0x60] sm:$0xff]
      %v192 = vld [vmem:[%s1 + $0x68] sm:$0xff]
      %v193 = vld [vmem:[%s1 + $0x70] sm:$0xff]
      %v194 = vld [vmem:[%s1 + $0x78] sm:$0xff]
      %v195 = vld [vmem:[%s1 + $0x80] sm:$0xff]
      %v196 = vld [vmem:[%s1 + $0x88] sm:$0xff]
      %v197 = vld [vmem:[%s1 + $0x90] sm:$0xff]
      %v198 = vld [vmem:[%s1 + $0x98] sm:$0xff]
      %v199 = vld [vmem:[%s1 + $0xa0] sm:$0xff]
      %v200 = vld [vmem:[%s1 + $0xa8] sm:$0xff]
      %v201 = vld [vmem:[%s1 + $0xb0] sm:$0xff]
      %v202 = vld [vmem:[%s1 + $0xb8] sm:$0xff]
      %v203 = vld [vmem:[%s165] sm:$0xf0]
      %v204 = vld [vmem:[%s165 + $0x8] sm:$0xf0]
      %v205 = vld [vmem:[%s165 + $0x40] sm:$0xf]
      %v206 = vld [vmem:[%s165 + $0x48] sm:$0xf]
      %s207 = scalar_lea.vmem %s1, 192
      %v208 = vld [vmem:[%s207] sm:$0xff]
      %v209 = vld [vmem:[%s207 + $0x8] sm:$0xff]
      %v210 = vld [vmem:[%s207 + $0x10] sm:$0xff]
      %v211 = vld [vmem:[%s207 + $0x18] sm:$0xff]
      %v212 = vld [vmem:[%s207 + $0x20] sm:$0xff]
      %v213 = vld [vmem:[%s207 + $0x28] sm:$0xff]
      %v214 = vld [vmem:[%s207 + $0x30] sm:$0xff]
      %v215 = vld [vmem:[%s207 + $0x38] sm:$0xff]
      %v216 = vld [vmem:[%s207 + $0x40] sm:$0xff]
      %v217 = vld [vmem:[%s207 + $0x48] sm:$0xff]
      %v218 = vld [vmem:[%s207 + $0x50] sm:$0xff]
      %v219 = vld [vmem:[%s207 + $0x58] sm:$0xff]
      %v220 = vld [vmem:[%s207 + $0x60] sm:$0xff]
      %v221 = vld [vmem:[%s207 + $0x68] sm:$0xff]
      %v222 = vld [vmem:[%s207 + $0x70] sm:$0xff]
      %v223 = vld [vmem:[%s207 + $0x78] sm:$0xff]
      %v224 = vld [vmem:[%s207 + $0x80] sm:$0xff]
      %v225 = vld [vmem:[%s207 + $0x88] sm:$0xff]
      %v226 = vld [vmem:[%s207 + $0x90] sm:$0xff]
      %v227 = vld [vmem:[%s207 + $0x98] sm:$0xff]
      %v228 = vld [vmem:[%s207 + $0xa0] sm:$0xff]
      %v229 = vld [vmem:[%s207 + $0xa8] sm:$0xff]
      %v230 = vld [vmem:[%s207 + $0xb0] sm:$0xff]
      %v231 = vld [vmem:[%s207 + $0xb8] sm:$0xff]
      %vm242 = vcmask 1043456
      %v243 = vrot.slane %v203, 4
      %v244 = vrot.slane %v173, 4
      %v245 = vsel %vm242, %v243, %v244
      %v246 = vrot.slane %v204, 4
      %v247 = vrot.slane %v174, 4
      %v248 = vsel %vm242, %v246, %v247
      %v249 = vrot.slane %v175, 4
      %v250 = vsel %vm242, %v244, %v249
      %v251 = vrot.slane %v176, 4
      %v252 = vsel %vm242, %v247, %v251
      %v253 = vrot.slane %v177, 4
      %v254 = vsel %vm242, %v249, %v253
      %v255 = vrot.slane %v178, 4
      %v256 = vsel %vm242, %v251, %v255
      %v257 = vrot.slane %v205, 4
      %v258 = vsel %vm242, %v253, %v257
      %v259 = vrot.slane %v206, 4
      %v260 = vsel %vm242, %v255, %v259
      %vm265 = vcmask 523264
      %v266 = vsel %vm265, %v248, 0
      %v268 = vsel %vm265, %v252, 0
      %v270 = vsel %vm265, %v256, 0
      %v272 = vsel %vm265, %v260, 0
      %274 = vmatprep.subr.mxu0 0.0
      %275 = vmatpush1.msra.mxu0 %v223
      %276 = vmatprep.subr.mxu0 0.0
      %277 = vmatpush1.msra.mxu0 %v222
      %278 = vmatprep.subr.mxu0 0.0
      %279 = vmatpush1.msra.mxu0 %v221
      %280 = vmatprep.subr.mxu0 0.0
      %281 = vmatpush1.msra.mxu0 %v220
      %282 = vmatprep.subr.mxu0 0.0
      %283 = vmatpush1.msra.mxu0 %v219
      %284 = vmatprep.subr.mxu0 0.0
      %285 = vmatpush1.msra.mxu0 %v218
      %286 = vmatprep.subr.mxu0 0.0
      %287 = vmatpush1.msra.mxu0 %v217
      %288 = vmatprep.subr.mxu0 0.0
      %289 = vmatpush1.msra.mxu0 %v216
      %290 = vmatprep.subr.mxu0 0.0
      %291 = vmatpush1.msra.mxu0 %v215
      %292 = vmatprep.subr.mxu0 0.0
      %293 = vmatpush1.msra.mxu0 %v214
      %294 = vmatprep.subr.mxu0 0.0
      %295 = vmatpush1.msra.mxu0 %v213
      %296 = vmatprep.subr.mxu0 0.0
      %297 = vmatpush1.msra.mxu0 %v212
      %298 = vmatprep.subr.mxu0 0.0
      %299 = vmatpush1.msra.mxu0 %v211
      %300 = vmatprep.subr.mxu0 0.0
      %301 = vmatpush1.msra.mxu0 %v210
      %302 = vmatprep.subr.mxu0 0.0
      %303 = vmatpush1.msra.mxu0 %v209
      %304 = vmatprep.subr.mxu0 0.0
      %305 = vmatpush1.msra.mxu0 %v208
      %306 = vmatprep.subr.mxu0 0.0
      %307 = vmatpush2.msra.mxu0 0.0
      %308 = vmatprep.subr.mxu0 0.0
      %309 = vmatpush2.msra.mxu0 0.0
      %310 = vmatprep.subr.mxu0 0.0
      %311 = vmatpush2.msra.mxu0 0.0
      %312 = vmatprep.subr.mxu0 0.0
      %313 = vmatpush2.msra.mxu0 0.0
      %314 = vmatprep.subr.mxu0 0.0
      %315 = vmatpush2.msra.mxu0 0.0
      %316 = vmatprep.subr.mxu0 0.0
      %317 = vmatpush2.msra.mxu0 0.0
      %318 = vmatprep.subr.mxu0 0.0
      %319 = vmatpush2.msra.mxu0 0.0
      %320 = vmatprep.subr.mxu0 0.0
      %321 = vmatpush2.msra.mxu0 0.0
      %322 = vmatprep.subr.mxu0 0.0
      %323 = vmatpush2.msra.mxu0 %v231
      %324 = vmatprep.subr.mxu0 0.0
      %325 = vmatpush2.msra.mxu0 %v230
      %326 = vmatprep.subr.mxu0 0.0
      %327 = vmatpush2.msra.mxu0 %v229
      %328 = vmatprep.subr.mxu0 0.0
      %329 = vmatpush2.msra.mxu0 %v228
      %330 = vmatprep.subr.mxu0 0.0
      %331 = vmatpush2.msra.mxu0 %v227
      %332 = vmatprep.subr.mxu0 0.0
      %333 = vmatpush2.msra.mxu0 %v226
      %334 = vmatprep.subr.mxu0 0.0
      %335 = vmatpush2.msra.mxu0 %v225
      %336 = vmatprep.subr.mxu0 0.0
      %337 = vmatpush2.msra.mxu0 %v224
      %338 = vmatprep.mubr.f32.mxu0 %v266
      %339 = vmatmul.mubr.f32.gmra.mxu0 %v245
      %v340 = vpop.f32.mrf.mxu0
      %v341 = vadd.f32 0.0, %v340
      %v342 = vpop.f32.mrf.mxu0
      %343 = vmatprep.mubr.f32.mxu0 %v268
      %344 = vmatmul.mubr.f32.gmra.mxu0 %v250
      %v345 = vpop.f32.mrf.mxu0
      %v346 = vadd.f32 0.0, %v345
      %v347 = vpop.f32.mrf.mxu0
      %348 = vmatprep.mubr.f32.mxu0 %v270
      %349 = vmatmul.mubr.f32.gmra.mxu0 %v254
      %v350 = vpop.f32.mrf.mxu0
      %v351 = vadd.f32 0.0, %v350
      %v352 = vpop.f32.mrf.mxu0
      %353 = vmatprep.mubr.f32.mxu0 %v272
      %354 = vmatmul.mubr.f32.gmra.mxu0 %v258
      %v355 = vpop.f32.mrf.mxu0
      %v356 = vadd.f32 0.0, %v355
      %v357 = vpop.f32.mrf.mxu0
      %358 = vdwg.mxu0
      %v360 = vsel %vm265, %v172, 0
      %v362 = vsel %vm265, %v174, 0
      %v364 = vsel %vm265, %v176, 0
      %v366 = vsel %vm265, %v178, 0
      %368 = vmatprep.subr.mxu0 0.0
      %369 = vmatpush1.msra.mxu0 %v194
      %370 = vmatprep.subr.mxu0 0.0
      %371 = vmatpush1.msra.mxu0 %v193
      %372 = vmatprep.subr.mxu0 0.0
      %373 = vmatpush1.msra.mxu0 %v192
      %374 = vmatprep.subr.mxu0 0.0
      %375 = vmatpush1.msra.mxu0 %v191
      %376 = vmatprep.subr.mxu0 0.0
      %377 = vmatpush1.msra.mxu0 %v190
      %378 = vmatprep.subr.mxu0 0.0
      %379 = vmatpush1.msra.mxu0 %v189
      %380 = vmatprep.subr.mxu0 0.0
      %381 = vmatpush1.msra.mxu0 %v188
      %382 = vmatprep.subr.mxu0 0.0
      %383 = vmatpush1.msra.mxu0 %v187
      %384 = vmatprep.subr.mxu0 0.0
      %385 = vmatpush1.msra.mxu0 %v186
      %386 = vmatprep.subr.mxu0 0.0
      %387 = vmatpush1.msra.mxu0 %v185
      %388 = vmatprep.subr.mxu0 0.0
      %389 = vmatpush1.msra.mxu0 %v184
      %390 = vmatprep.subr.mxu0 0.0
      %391 = vmatpush1.msra.mxu0 %v183
      %392 = vmatprep.subr.mxu0 0.0
      %393 = vmatpush1.msra.mxu0 %v182
      %394 = vmatprep.subr.mxu0 0.0
      %395 = vmatpush1.msra.mxu0 %v181
      %396 = vmatprep.subr.mxu0 0.0
      %397 = vmatpush1.msra.mxu0 %v180
      %398 = vmatprep.subr.mxu0 0.0
      %399 = vmatpush1.msra.mxu0 %v179
      %400 = vmatprep.subr.mxu0 0.0
      %401 = vmatpush2.msra.mxu0 0.0
      %402 = vmatprep.subr.mxu0 0.0
      %403 = vmatpush2.msra.mxu0 0.0
      %404 = vmatprep.subr.mxu0 0.0
      %405 = vmatpush2.msra.mxu0 0.0
      %406 = vmatprep.subr.mxu0 0.0
      %407 = vmatpush2.msra.mxu0 0.0
      %408 = vmatprep.subr.mxu0 0.0
      %409 = vmatpush2.msra.mxu0 0.0
      %410 = vmatprep.subr.mxu0 0.0
      %411 = vmatpush2.msra.mxu0 0.0
      %412 = vmatprep.subr.mxu0 0.0
      %413 = vmatpush2.msra.mxu0 0.0
      %414 = vmatprep.subr.mxu0 0.0
      %415 = vmatpush2.msra.mxu0 0.0
      %416 = vmatprep.subr.mxu0 0.0
      %417 = vmatpush2.msra.mxu0 %v202
      %418 = vmatprep.subr.mxu0 0.0
      %419 = vmatpush2.msra.mxu0 %v201
      %420 = vmatprep.subr.mxu0 0.0
      %421 = vmatpush2.msra.mxu0 %v200
      %422 = vmatprep.subr.mxu0 0.0
      %423 = vmatpush2.msra.mxu0 %v199
      %424 = vmatprep.subr.mxu0 0.0
      %425 = vmatpush2.msra.mxu0 %v198
      %426 = vmatprep.subr.mxu0 0.0
      %427 = vmatpush2.msra.mxu0 %v197
      %428 = vmatprep.subr.mxu0 0.0
      %429 = vmatpush2.msra.mxu0 %v196
      %430 = vmatprep.subr.mxu0 0.0
      %431 = vmatpush2.msra.mxu0 %v195
      %432 = vmatprep.mubr.f32.mxu0 %v360
      %433 = vmatmul.mubr.f32.gmra.mxu0 %v171
      %v434 = vpop.f32.mrf.mxu0
      %v435 = vadd.f32 %v341, %v434
      %v436 = vpop.f32.mrf.mxu0
      %437 = vmatprep.mubr.f32.mxu0 %v362
      %438 = vmatmul.mubr.f32.gmra.mxu0 %v173
      %v439 = vpop.f32.mrf.mxu0
      %v440 = vadd.f32 %v346, %v439
      %v441 = vpop.f32.mrf.mxu0
      %442 = vmatprep.mubr.f32.mxu0 %v364
      %443 = vmatmul.mubr.f32.gmra.mxu0 %v175
      %v444 = vpop.f32.mrf.mxu0
      %v445 = vadd.f32 %v351, %v444
      %v446 = vpop.f32.mrf.mxu0
      %447 = vmatprep.mubr.f32.mxu0 %v366
      %448 = vmatmul.mubr.f32.gmra.mxu0 %v177
      %v449 = vpop.f32.mrf.mxu0
      %v450 = vadd.f32 %v356, %v449
      %v451 = vpop.f32.mrf.mxu0
      %452 = vdwg.mxu0
      %v453 = vld [vmem:[%s165 + $0x40] sm:$0xff]
      %v454 = vld [vmem:[%s165 + $0x48] sm:$0xff]
      %s455 = scalar_lea.vmem %s1, 384
      %v456 = vld [vmem:[%s455] sm:$0xff]
      %v457 = vld [vmem:[%s455 + $0x8] sm:$0xff]
      %v458 = vld [vmem:[%s455 + $0x10] sm:$0xff]
      %v459 = vld [vmem:[%s455 + $0x18] sm:$0xff]
      %v460 = vld [vmem:[%s455 + $0x20] sm:$0xff]
      %v461 = vld [vmem:[%s455 + $0x28] sm:$0xff]
      %v462 = vld [vmem:[%s455 + $0x30] sm:$0xff]
      %v463 = vld [vmem:[%s455 + $0x38] sm:$0xff]
      %v464 = vld [vmem:[%s455 + $0x40] sm:$0xff]
      %v465 = vld [vmem:[%s455 + $0x48] sm:$0xff]
      %v466 = vld [vmem:[%s455 + $0x50] sm:$0xff]
      %v467 = vld [vmem:[%s455 + $0x58] sm:$0xff]
      %v468 = vld [vmem:[%s455 + $0x60] sm:$0xff]
      %v469 = vld [vmem:[%s455 + $0x68] sm:$0xff]
      %v470 = vld [vmem:[%s455 + $0x70] sm:$0xff]
      %v471 = vld [vmem:[%s455 + $0x78] sm:$0xff]
      %v472 = vld [vmem:[%s455 + $0x80] sm:$0xff]
      %v473 = vld [vmem:[%s455 + $0x88] sm:$0xff]
      %v474 = vld [vmem:[%s455 + $0x90] sm:$0xff]
      %v475 = vld [vmem:[%s455 + $0x98] sm:$0xff]
      %v476 = vld [vmem:[%s455 + $0xa0] sm:$0xff]
      %v477 = vld [vmem:[%s455 + $0xa8] sm:$0xff]
      %v478 = vld [vmem:[%s455 + $0xb0] sm:$0xff]
      %v479 = vld [vmem:[%s455 + $0xb8] sm:$0xff]
      %v481 = vsel %vm265, %v454, 0
      %483 = vmatprep.subr.mxu0 0.0
      %484 = vmatpush1.msra.mxu0 %v471
      %485 = vmatprep.subr.mxu0 0.0
      %486 = vmatpush1.msra.mxu0 %v470
      %487 = vmatprep.subr.mxu0 0.0
      %488 = vmatpush1.msra.mxu0 %v469
      %489 = vmatprep.subr.mxu0 0.0
      %490 = vmatpush1.msra.mxu0 %v468
      %491 = vmatprep.subr.mxu0 0.0
      %492 = vmatpush1.msra.mxu0 %v467
      %493 = vmatprep.subr.mxu0 0.0
      %494 = vmatpush1.msra.mxu0 %v466
      %495 = vmatprep.subr.mxu0 0.0
      %496 = vmatpush1.msra.mxu0 %v465
      %497 = vmatprep.subr.mxu0 0.0
      %498 = vmatpush1.msra.mxu0 %v464
      %499 = vmatprep.subr.mxu0 0.0
      %500 = vmatpush1.msra.mxu0 %v463
      %501 = vmatprep.subr.mxu0 0.0
      %502 = vmatpush1.msra.mxu0 %v462
      %503 = vmatprep.subr.mxu0 0.0
      %504 = vmatpush1.msra.mxu0 %v461
      %505 = vmatprep.subr.mxu0 0.0
      %506 = vmatpush1.msra.mxu0 %v460
      %507 = vmatprep.subr.mxu0 0.0
      %508 = vmatpush1.msra.mxu0 %v459
      %509 = vmatprep.subr.mxu0 0.0
      %510 = vmatpush1.msra.mxu0 %v458
      %511 = vmatprep.subr.mxu0 0.0
      %512 = vmatpush1.msra.mxu0 %v457
      %513 = vmatprep.subr.mxu0 0.0
      %514 = vmatpush1.msra.mxu0 %v456
      %515 = vmatprep.subr.mxu0 0.0
      %516 = vmatpush2.msra.mxu0 0.0
      %517 = vmatprep.subr.mxu0 0.0
      %518 = vmatpush2.msra.mxu0 0.0
      %519 = vmatprep.subr.mxu0 0.0
      %520 = vmatpush2.msra.mxu0 0.0
      %521 = vmatprep.subr.mxu0 0.0
      %522 = vmatpush2.msra.mxu0 0.0
      %523 = vmatprep.subr.mxu0 0.0
      %524 = vmatpush2.msra.mxu0 0.0
      %525 = vmatprep.subr.mxu0 0.0
      %526 = vmatpush2.msra.mxu0 0.0
      %527 = vmatprep.subr.mxu0 0.0
      %528 = vmatpush2.msra.mxu0 0.0
      %529 = vmatprep.subr.mxu0 0.0
      %530 = vmatpush2.msra.mxu0 0.0
      %531 = vmatprep.subr.mxu0 0.0
      %532 = vmatpush2.msra.mxu0 %v479
      %533 = vmatprep.subr.mxu0 0.0
      %534 = vmatpush2.msra.mxu0 %v478
      %535 = vmatprep.subr.mxu0 0.0
      %536 = vmatpush2.msra.mxu0 %v477
      %537 = vmatprep.subr.mxu0 0.0
      %538 = vmatpush2.msra.mxu0 %v476
      %539 = vmatprep.subr.mxu0 0.0
      %540 = vmatpush2.msra.mxu0 %v475
      %541 = vmatprep.subr.mxu0 0.0
      %542 = vmatpush2.msra.mxu0 %v474
      %543 = vmatprep.subr.mxu0 0.0
      %544 = vmatpush2.msra.mxu0 %v473
      %545 = vmatprep.subr.mxu0 0.0
      %546 = vmatpush2.msra.mxu0 %v472
      %547 = vmatprep.mubr.f32.mxu0 %v362
      %548 = vmatmul.mubr.f32.gmra.mxu0 %v173
      %v549 = vpop.f32.mrf.mxu0
      %v550 = vadd.f32 0.0, %v549
      %v551 = vpop.f32.mrf.mxu0
      %552 = vmatprep.mubr.f32.mxu0 %v364
      %553 = vmatmul.mubr.f32.gmra.mxu0 %v175
      %v554 = vpop.f32.mrf.mxu0
      %v555 = vadd.f32 0.0, %v554
      %v556 = vpop.f32.mrf.mxu0
      %557 = vmatprep.mubr.f32.mxu0 %v366
      %558 = vmatmul.mubr.f32.gmra.mxu0 %v177
      %v559 = vpop.f32.mrf.mxu0
      %v560 = vadd.f32 0.0, %v559
      %v561 = vpop.f32.mrf.mxu0
      %562 = vmatprep.mubr.f32.mxu0 %v481
      %563 = vmatmul.mubr.f32.gmra.mxu0 %v453
      %v564 = vpop.f32.mrf.mxu0
      %v565 = vadd.f32 0.0, %v564
      %v566 = vpop.f32.mrf.mxu0
      %567 = vdwg.mxu0
      %v568 = vadd.f32 %v435, %v550
      %v569 = vadd.f32 %v440, %v555
      %v570 = vadd.f32 %v445, %v560
      %v571 = vadd.f32 %v450, %v565
      %v572 = vld [vmem:[%s2] sm:$0x1]
      %v574 = vlaneseq
      %v575 = vshrl.u32 %v574, 7
      %v576 = vsub.s32 0, %v575
      %v577 = vrot.slane %v572, %v576
      %v579 = vadd.f32 %v568, %v577
      %v580 = vadd.f32 %v569, %v577
      %v581 = vadd.f32 %v570, %v577
      %v582 = vadd.f32 %v571, %v577
      %v583 = vmax.f32 %v579, 0.0
      %v584 = vmax.f32 %v580, 0.0
      %v585 = vmax.f32 %v581, 0.0
      %v586 = vmax.f32 %v582, 0.0
      %587 = vst [vmem:[%s170] sm:$0xff] %v583
      %588 = vst [vmem:[%s170 + $0x8] sm:$0xff] %v584
      %589 = vst [vmem:[%s170 + $0x10] sm:$0xff] %v585
      %590 = vst [vmem:[%s170 + $0x18] sm:$0xff] %v586
      %p591 = scmp.lt.s32.totalorder %s14, 1
      %s592 = scalar_select %p591, %s14, 1
      %s593 = smul.addr %s592, 4
      %s594 = smul.addr %s593, 8
      %s595 = scalar_lea.vmem %s3, %s594
      // Predicated region
      $region33: #{conv_tokenizer_pallas.6} parent=31 // pred_check
        %p596 = pneg %p100
      $region34: #{conv_tokenizer_pallas.6} parent=31 // pred_check_branch
        %598 = sbr.rel (%p596) target = $region36
      $region35: #{conv_tokenizer_pallas.6} parent=31 // pred_region
        _
      $region36: #{conv_tokenizer_pallas.6} parent=31 // pred_fallthru
        _
    $region32: #{conv_tokenizer_pallas.6} parent=5 // pred_fallthru
      _
    %p599 = scmp.le.s32.totalorder 2, %s9
    // Predicated region
    $region37: #{conv_tokenizer_pallas.6} parent=5 // pred_check
      %p600 = pneg %p599
    $region38: #{conv_tokenizer_pallas.6} parent=5 // pred_check_branch
      %602 = sbr.rel (%p600) target = $region40
    $region39: #{conv_tokenizer_pallas.6} parent=5 // pred_region
      %s603 = ssub.s32 %s9, 2
      // Predicated region
      $region41: #{conv_tokenizer_pallas.6} parent=39 // pred_check
        %p604 = pneg %p106
      $region42: #{conv_tokenizer_pallas.6} parent=39 // pred_check_branch
        %606 = sbr.rel (%p604) target = $region44
      $region43: #{conv_tokenizer_pallas.6} parent=39 // pred_region
        %p607 = scmp.lt.s32.totalorder %s15, 1
        %s608 = scalar_select %p607, %s15, 1
        %s609 = smul.addr %s608, 4
        %s610 = smul.addr %s609, 8
        %s611 = scalar_lea.vmem %s3, %s610
      $region44: #{conv_tokenizer_pallas.6} parent=39 // pred_fallthru
        _
    $region40: #{conv_tokenizer_pallas.6} parent=5 // pred_fallthru
      _
  $region6: #{conv_tokenizer_pallas.6} parent=0 // loop_footer
    %s13 = sadd.s32 1, %s9
  $region7: #{conv_tokenizer_pallas.6} parent=0 // loop_footer_branch
    %8 = sbr.rel target = $region3
  $region8: #{conv_tokenizer_pallas.6} parent=0 // loop_exit
    _

// kernel: conv_tokenizer_pallas.7
$region0: #{conv_tokenizer_pallas.7}
  #allocation0 [shape = 'u32[]', space=smem, size = 0x4, offset = 0x4, fixed_abs, tag = 'smem constant byte address 0x4 - core index']
  #allocation1 [shape = 'u32[144,128]{1,0:T(1,128)}', space=vmem, size = 0x12000, scoped, tag = 'internal scratch']
  %s0 = inlined_call_operand.vmem [shape: f32[2,5,5,64], index: 0, kind: input, shape index: {}]
  %s1 = inlined_call_operand.vmem [shape: f32[2,5,5,64], index: 1, kind: input, shape index: {}]
  %s2 = inlined_call_operand.vmem [shape: f32[2,5,5,64], index: 2, kind: input, shape index: {}]
  %s3 = inlined_call_operand.vmem [shape: f32[2,5,5,64], index: 3, kind: input, shape index: {}]
  %s4 = inlined_call_operand.hbm [shape: f32[2,4,4,64], index: 4, kind: output, shape index: {}]
  %s5 = sld [smem:[#allocation0]]
  $region49: #{conv_tokenizer_pallas.7} parent=0
    _
  %s7 = ssub.s32 1, %s5
  %s8 = scalar_select 0, %s7, %s5
  $region1: #{conv_tokenizer_pallas.7} parent=0
    #allocation2 [shape = 'u8[16384]{0}', space=vmem, size = 0x4000, scoped, tag = 'output window, operand 0']
    #allocation3 [shape = 's32[2]{0}', space=sflag, size = 0x8, scoped, tag = 'scoped memory for conv_tokenizer_pallas.7']
    %9 = vsyncpa [#allocation3], 0
    %s10 = scalar_lea.sflag [#allocation3], 1
    %11 = vsyncpa %s10, 0
    loop: start=0, step=1, limit=4
    $region2: #{conv_tokenizer_pallas.7} parent=1 // loop_pre_header
      _
    $region3: #{conv_tokenizer_pallas.7} parent=1 // loop_header
      %s13 = sphi 0, %s17
      %p14 = scmp.ge.s32.totalorder %s13, 4
      %s23 = sphi 0, %s25
      %s26 = sphi 0, %s23
      %s27 = sphi 0, %s26
      %s43 = sphi 0, %s27
      %s49 = sphi 0, %s51
      %s52 = sphi 0, %s49
      %s53 = sphi 0, %s52
      %s69 = sphi 0, %s53
      %s75 = sphi 0, %s77
      %s78 = sphi 0, %s75
      %s79 = sphi 0, %s78
      %s95 = sphi 0, %s79
      %s101 = sphi 0, %s103
      %s104 = sphi 0, %s101
      %s105 = sphi 0, %s104
      %s121 = sphi 0, %s105
      %s127 = sphi 0, %s129
      %s130 = sphi 0, %s127
      %s131 = sphi 0, %s130
      %s147 = sphi 0, %s131
    $region4: #{conv_tokenizer_pallas.7} parent=1 // loop_header_branch
      %16 = sbr.rel (%p14) target = $region8
    $region5: #{conv_tokenizer_pallas.7} parent=1 // loop_body
      %s18 = ssub.s32 %s13, 1
      %s19 = ssub.s32 %s13, 2
      %s20 = sadd.s32 %s13, 1
      %s21 = ssub.s32 %s13, %s20
      %p22 = scmp.eq.s32.totalorder %s21, 0
      %s24 = sadd.s32 %s23, 1
      %s25 = scalar_select %p22, %s23, %s24
      %p28 = pneg %p22
      %p29 = scmp.eq.s32.totalorder %s13, 1
      %p30 = por %p28, %p29
      %p31 = scmp.ne.s32.totalorder %s23, %s26
      %p32 = scmp.eq.s32.totalorder %s13, 0
      %p33 = por %p31, %p32
      %p34 = scmp.ne.s32.totalorder %s23, %s26
      %p35 = scmp.eq.s32.totalorder %s18, 1
      %p36 = por %p34, %p35
      %p37 = scmp.ne.s32.totalorder %s26, %s27
      %p38 = scmp.eq.s32.totalorder %s18, 0
      %p39 = por %p37, %p38
      %p40 = scmp.ne.s32.totalorder %s26, %s27
      %p41 = scmp.eq.s32.totalorder %s19, 1
      %p42 = por %p40, %p41
      %p44 = scmp.ne.s32.totalorder %s27, %s43
      %p45 = scmp.eq.s32.totalorder %s19, 0
      %p46 = por %p44, %p45
      %s47 = ssub.s32 %s13, %s20
      %p48 = scmp.eq.s32.totalorder %s47, 0
      %s50 = sadd.s32 %s49, 1
      %s51 = scalar_select %p48, %s49, %s50
      %p54 = pneg %p48
      %p55 = scmp.eq.s32.totalorder %s13, 1
      %p56 = por %p54, %p55
      %p57 = scmp.ne.s32.totalorder %s49, %s52
      %p58 = scmp.eq.s32.totalorder %s13, 0
      %p59 = por %p57, %p58
      %p60 = scmp.ne.s32.totalorder %s49, %s52
      %p61 = scmp.eq.s32.totalorder %s18, 1
      %p62 = por %p60, %p61
      %p63 = scmp.ne.s32.totalorder %s52, %s53
      %p64 = scmp.eq.s32.totalorder %s18, 0
      %p65 = por %p63, %p64
      %p66 = scmp.ne.s32.totalorder %s52, %s53
      %p67 = scmp.eq.s32.totalorder %s19, 1
      %p68 = por %p66, %p67
      %p70 = scmp.ne.s32.totalorder %s53, %s69
      %p71 = scmp.eq.s32.totalorder %s19, 0
      %p72 = por %p70, %p71
      %s73 = ssub.s32 %s13, %s20
      %p74 = scmp.eq.s32.totalorder %s73, 0
      %s76 = sadd.s32 %s75, 1
      %s77 = scalar_select %p74, %s75, %s76
      %p80 = pneg %p74
      %p81 = scmp.eq.s32.totalorder %s13, 1
      %p82 = por %p80, %p81
      %p83 = scmp.ne.s32.totalorder %s75, %s78
      %p84 = scmp.eq.s32.totalorder %s13, 0
      %p85 = por %p83, %p84
      %p86 = scmp.ne.s32.totalorder %s75, %s78
      %p87 = scmp.eq.s32.totalorder %s18, 1
      %p88 = por %p86, %p87
      %p89 = scmp.ne.s32.totalorder %s78, %s79
      %p90 = scmp.eq.s32.totalorder %s18, 0
      %p91 = por %p89, %p90
      %p92 = scmp.ne.s32.totalorder %s78, %s79
      %p93 = scmp.eq.s32.totalorder %s19, 1
      %p94 = por %p92, %p93
      %p96 = scmp.ne.s32.totalorder %s79, %s95
      %p97 = scmp.eq.s32.totalorder %s19, 0
      %p98 = por %p96, %p97
      %s99 = ssub.s32 %s13, %s20
      %p100 = scmp.eq.s32.totalorder %s99, 0
      %s102 = sadd.s32 %s101, 1
      %s103 = scalar_select %p100, %s101, %s102
      %p106 = pneg %p100
      %p107 = scmp.eq.s32.totalorder %s13, 1
      %p108 = por %p106, %p107
      %p109 = scmp.ne.s32.totalorder %s101, %s104
      %p110 = scmp.eq.s32.totalorder %s13, 0
      %p111 = por %p109, %p110
      %p112 = scmp.ne.s32.totalorder %s101, %s104
      %p113 = scmp.eq.s32.totalorder %s18, 1
      %p114 = por %p112, %p113
      %p115 = scmp.ne.s32.totalorder %s104, %s105
      %p116 = scmp.eq.s32.totalorder %s18, 0
      %p117 = por %p115, %p116
      %p118 = scmp.ne.s32.totalorder %s104, %s105
      %p119 = scmp.eq.s32.totalorder %s19, 1
      %p120 = por %p118, %p119
      %p122 = scmp.ne.s32.totalorder %s105, %s121
      %p123 = scmp.eq.s32.totalorder %s19, 0
      %p124 = por %p122, %p123
      %s125 = ssub.s32 %s13, %s20
      %p126 = scmp.eq.s32.totalorder %s125, 0
      %s128 = sadd.s32 %s127, 1
      %s129 = scalar_select %p126, %s127, %s128
      %p132 = pneg %p126
      %p133 = scmp.eq.s32.totalorder %s13, 1
      %p134 = por %p132, %p133
      %p135 = scmp.ne.s32.totalorder %s127, %s130
      %p136 = scmp.eq.s32.totalorder %s13, 0
      %p137 = por %p135, %p136
      %p138 = scmp.ne.s32.totalorder %s127, %s130
      %p139 = scmp.eq.s32.totalorder %s18, 1
      %p140 = por %p138, %p139
      %p141 = scmp.ne.s32.totalorder %s130, %s131
      %p142 = scmp.eq.s32.totalorder %s18, 0
      %p143 = por %p141, %p142
      %p144 = scmp.ne.s32.totalorder %s130, %s131
      %p145 = scmp.eq.s32.totalorder %s19, 1
      %p146 = por %p144, %p145
      %p148 = scmp.ne.s32.totalorder %s131, %s147
      %p149 = scmp.eq.s32.totalorder %s19, 0
      %p150 = por %p148, %p149
      %p151 = scmp.le.s32.totalorder 1, %s13
      %p152 = scmp.lt.s32.totalorder %s13, 3
      %p153 = pnand %p151, %p152
      %p154 = pneg %p153
      // Predicated region
      $region9: #{conv_tokenizer_pallas.7} parent=5 // pred_check
        _
      $region10: #{conv_tokenizer_pallas.7} parent=5 // pred_check_branch
        %156 = sbr.rel (%p153) target = $region12
      $region11: #{conv_tokenizer_pallas.7} parent=5 // pred_region
        %s157 = ssub.s32 %s13, 1
      $region12: #{conv_tokenizer_pallas.7} parent=5 // pred_fallthru
        _
      %p158 = scmp.lt.s32.totalorder %s13, 2
      // Predicated region
      $region13: #{conv_tokenizer_pallas.7} parent=5 // pred_check
        %p159 = pneg %p158
      $region14: #{conv_tokenizer_pallas.7} parent=5 // pred_check_branch
        %161 = sbr.rel (%p159) target = $region16
      $region15: #{conv_tokenizer_pallas.7} parent=5 // pred_region
        // Predicated region
        $region17: #{conv_tokenizer_pallas.7} parent=15 // pred_check
          %p162 = pneg %p33
        $region18: #{conv_tokenizer_pallas.7} parent=15 // pred_check_branch
          %164 = sbr.rel (%p162) target = $region20
        $region19: #{conv_tokenizer_pallas.7} parent=15 // pred_region
          %p165 = scmp.lt.s32.totalorder %s13, 1
          %s166 = scalar_select %p165, %s13, 1
          %s167 = smul.addr %s166, 5
          %s168 = smul.addr %s167, 8
          %s169 = scalar_lea.vmem %s0, %s168
        $region20: #{conv_tokenizer_pallas.7} parent=15 // pred_fallthru
          _
        // Predicated region
        $region21: #{conv_tokenizer_pallas.7} parent=15 // pred_check
          %p170 = pneg %p59
        $region22: #{conv_tokenizer_pallas.7} parent=15 // pred_check_branch
          %172 = sbr.rel (%p170) target = $region24
        $region23: #{conv_tokenizer_pallas.7} parent=15 // pred_region
          %p173 = scmp.lt.s32.totalorder %s13, 1
          %s174 = scalar_select %p173, %s13, 1
          %s175 = smul.addr %s174, 5
          %s176 = smul.addr %s175, 8
          %s177 = scalar_lea.vmem %s1, %s176
        $region24: #{conv_tokenizer_pallas.7} parent=15 // pred_fallthru
          _
        // Predicated region
        $region25: #{conv_tokenizer_pallas.7} parent=15 // pred_check
          %p178 = pneg %p85
        $region26: #{conv_tokenizer_pallas.7} parent=15 // pred_check_branch
          %180 = sbr.rel (%p178) target = $region28
        $region27: #{conv_tokenizer_pallas.7} parent=15 // pred_region
          %p181 = scmp.lt.s32.totalorder %s13, 1
          %s182 = scalar_select %p181, %s13, 1
          %s183 = smul.addr %s182, 5
          %s184 = smul.addr %s183, 8
          %s185 = scalar_lea.vmem %s2, %s184
        $region28: #{conv_tokenizer_pallas.7} parent=15 // pred_fallthru
          _
        // Predicated region
        $region29: #{conv_tokenizer_pallas.7} parent=15 // pred_check
          %p186 = pneg %p111
        $region30: #{conv_tokenizer_pallas.7} parent=15 // pred_check_branch
          %188 = sbr.rel (%p186) target = $region32
        $region31: #{conv_tokenizer_pallas.7} parent=15 // pred_region
          %p189 = scmp.lt.s32.totalorder %s13, 1
          %s190 = scalar_select %p189, %s13, 1
          %s191 = smul.addr %s190, 5
          %s192 = smul.addr %s191, 8
          %s193 = scalar_lea.vmem %s3, %s192
        $region32: #{conv_tokenizer_pallas.7} parent=15 // pred_fallthru
          _
      $region16: #{conv_tokenizer_pallas.7} parent=5 // pred_fallthru
        _
      %p194 = scmp.le.s32.totalorder 1, %s13
      %p195 = scmp.lt.s32.totalorder %s13, 3
      %p196 = pnand %p194, %p195
      %p197 = pneg %p196
      // Predicated region
      $region33: #{conv_tokenizer_pallas.7} parent=5 // pred_check
        _
      $region34: #{conv_tokenizer_pallas.7} parent=5 // pred_check_branch
        %199 = sbr.rel (%p196) target = $region36
      $region35: #{conv_tokenizer_pallas.7} parent=5 // pred_region
        %s200 = ssub.s32 %s13, 1
        %p201 = scmp.lt.s32.totalorder %s18, 1
        %s202 = scalar_select %p201, %s18, 1
        %s203 = smul.addr %s202, 5
        %s204 = smul.addr %s203, 8
        %s205 = scalar_lea.vmem %s0, %s204
        %p206 = pneg %p39
        %p207 = pneg %p36
        %p208 = scmp.lt.s32.totalorder %s18, 1
        %s209 = scalar_select %p208, %s18, 1
        %s210 = smul.addr %s209, 5
        %s211 = smul.addr %s210, 8
        %s212 = scalar_lea.vmem %s1, %s211
        %p213 = pneg %p65
        %p214 = pneg %p62
        %p215 = scmp.lt.s32.totalorder %s18, 1
        %s216 = scalar_select %p215, %s18, 1
        %s217 = smul.addr %s216, 5
        %s218 = smul.addr %s217, 8
        %s219 = scalar_lea.vmem %s2, %s218
        %p220 = pneg %p91
        %p221 = pneg %p88
        %p222 = scmp.lt.s32.totalorder %s18, 1
        %s223 = scalar_select %p222, %s18, 1
        %s224 = smul.addr %s223, 5
        %s225 = smul.addr %s224, 8
        %s226 = scalar_lea.vmem %s3, %s225
        %p227 = pneg %p117
        %p228 = pneg %p114
        %p229 = pneg %p143
        %p230 = pneg %p140
        %s231 = sand.u32 %s130, 1
        %s232 = scalar_lea.sflag [#allocation3], %s231
        %s233 = sand.u32 %s130, 1
        %s234 = smul.addr %s233, 16
        %s235 = scalar_lea.vmem [#allocation2], %s234
        %p236 = scmp.lt.s32.totalorder %s18, 1
        %s237 = scalar_select %p236, %s18, 1
        %s238 = smul.addr %s237, 5
        %s239 = smul.addr %s238, 8
        %s240 = scalar_lea.vmem %s0, %s239
        %p241 = scmp.lt.s32.totalorder %s18, 1
        %s242 = scalar_select %p241, %s18, 1
        %s243 = smul.addr %s242, 5
        %s244 = smul.addr %s243, 8
        %s245 = scalar_lea.vmem %s1, %s244
        %p246 = scmp.lt.s32.totalorder %s18, 1
        %s247 = scalar_select %p246, %s18, 1
        %s248 = smul.addr %s247, 5
        %s249 = smul.addr %s248, 8
        %s250 = scalar_lea.vmem %s2, %s249
        %p251 = scmp.lt.s32.totalorder %s18, 1
        %s252 = scalar_select %p251, %s18, 1
        %s253 = smul.addr %s252, 5
        %s254 = smul.addr %s253, 8
        %s255 = scalar_lea.vmem %s3, %s254
        %v256 = vld [vmem:[%s240] sm:$0xf]
        %v257 = vld [vmem:[%s240 + $0x8] sm:$0xf]
        %v258 = vld [vmem:[%s240 + $0x10] sm:$0xf]
        %v259 = vld [vmem:[%s240 + $0x18] sm:$0xf]
        %v260 = vld [vmem:[%s245] sm:$0xf]
        %v261 = vld [vmem:[%s245 + $0x8] sm:$0xf]
        %v262 = vld [vmem:[%s245 + $0x10] sm:$0xf]
        %v263 = vld [vmem:[%s245 + $0x18] sm:$0xf]
        %v264 = vmax.f32 %v256, %v260
        %v265 = vmax.f32 %v257, %v261
        %v266 = vmax.f32 %v258, %v262
        %v267 = vmax.f32 %v259, %v263
        %v268 = vld [vmem:[%s240 + $0x1] sm:$0xf]
        %v269 = vld [vmem:[%s240 + $0x9] sm:$0xf]
        %v270 = vld [vmem:[%s240 + $0x11] sm:$0xf]
        %v271 = vld [vmem:[%s240 + $0x19] sm:$0xf]
        %v272 = vmax.f32 %v264, %v268
        %v273 = vmax.f32 %v265, %v269
        %v274 = vmax.f32 %v266, %v270
        %v275 = vmax.f32 %v267, %v271
        %v276 = vld [vmem:[%s250] sm:$0xf]
        %v277 = vld [vmem:[%s250 + $0x8] sm:$0xf]
        %v278 = vld [vmem:[%s250 + $0x10] sm:$0xf]
        %v279 = vld [vmem:[%s250 + $0x18] sm:$0xf]
        %v280 = vmax.f32 %v272, %v276
        %v281 = vmax.f32 %v273, %v277
        %v282 = vmax.f32 %v274, %v278
        %v283 = vmax.f32 %v275, %v279
        %v284 = vld [vmem:[%s255] sm:$0xf]
        %v285 = vld [vmem:[%s255 + $0x8] sm:$0xf]
        %v286 = vld [vmem:[%s255 + $0x10] sm:$0xf]
        %v287 = vld [vmem:[%s255 + $0x18] sm:$0xf]
        %v288 = vmax.f32 %v280, %v284
        %v289 = vmax.f32 %v281, %v285
        %v290 = vmax.f32 %v282, %v286
        %v291 = vmax.f32 %v283, %v287
        %v292 = vld [vmem:[%s250 + $0x1] sm:$0xf]
        %v293 = vld [vmem:[%s250 + $0x9] sm:$0xf]
        %v294 = vld [vmem:[%s250 + $0x11] sm:$0xf]
        %v295 = vld [vmem:[%s250 + $0x19] sm:$0xf]
        %v296 = vmax.f32 %v288, %v292
        %v297 = vmax.f32 %v289, %v293
        %v298 = vmax.f32 %v290, %v294
        %v299 = vmax.f32 %v291, %v295
        %s300 = scalar_lea.vmem %s240, 8
        %v301 = vld [vmem:[%s300] sm:$0xf]
        %v302 = vld [vmem:[%s300 + $0x8] sm:$0xf]
        %v303 = vld [vmem:[%s300 + $0x10] sm:$0xf]
        %v304 = vld [vmem:[%s300 + $0x18] sm:$0xf]
        %v305 = vmax.f32 %v296, %v301
        %v306 = vmax.f32 %v297, %v302
        %v307 = vmax.f32 %v298, %v303
        %v308 = vmax.f32 %v299, %v304
        %s309 = scalar_lea.vmem %s245, 8
        %v310 = vld [vmem:[%s309] sm:$0xf]
        %v311 = vld [vmem:[%s309 + $0x8] sm:$0xf]
        %v312 = vld [vmem:[%s309 + $0x10] sm:$0xf]
        %v313 = vld [vmem:[%s309 + $0x18] sm:$0xf]
        %v314 = vmax.f32 %v305, %v310
        %v315 = vmax.f32 %v306, %v311
        %v316 = vmax.f32 %v307, %v312
        %v317 = vmax.f32 %v308, %v313
        %v318 = vld [vmem:[%s300 + $0x1] sm:$0xf]
        %v319 = vld [vmem:[%s300 + $0x9] sm:$0xf]
        %v320 = vld [vmem:[%s300 + $0x11] sm:$0xf]
        %v321 = vld [vmem:[%s300 + $0x19] sm:$0xf]
        %v322 = vmax.f32 %v314, %v318
        %v323 = vmax.f32 %v315, %v319
        %v324 = vmax.f32 %v316, %v320
        %v325 = vmax.f32 %v317, %v321
        %vm326 = vcmask 519168
        %327 = vst.msk [vmem:[%s235] sm:$0xf] %vm326, %v322
        %328 = vst.msk [vmem:[%s235 + $0x4] sm:$0xf] %vm326, %v323
        %329 = vst.msk [vmem:[%s235 + $0x8] sm:$0xf] %vm326, %v324
        %330 = vst.msk [vmem:[%s235 + $0xc] sm:$0xf] %vm326, %v325
        %s331 = sand.u32 %s130, 1
        %s332 = scalar_lea.sflag [#allocation3], %s331
        %s333 = sand.u32 %s130, 1
        %s334 = smul.addr %s333, 16
        %s335 = scalar_lea.vmem [#allocation2], %s334
        // Predicated region
        $region37: #{conv_tokenizer_pallas.7} parent=35 // pred_check
          %p336 = pneg %p140
        $region38: #{conv_tokenizer_pallas.7} parent=35 // pred_check_branch
          %338 = sbr.rel (%p336) target = $region40
        $region39: #{conv_tokenizer_pallas.7} parent=35 // pred_region
          %s340 = ssub.s32 256, 256
          %341 = vsyncadd %s332, %s340
          %s342 = smul.addr %s18, 4
          %s343 = smul.addr %s342, 64
          %s344 = scalar_lea.hbm %s4, %s343
          %s345 = sshll.u32 %s335, 4
          %s346 = int_to_ptr.vmem [resolvable:$true] %s345
          %351 = dma.vmem_to_hbm [thread:$0]  %s346, 256, %s344, %s332, 64, 64, 4
        $region40: #{conv_tokenizer_pallas.7} parent=35 // pred_fallthru
          _
      $region36: #{conv_tokenizer_pallas.7} parent=5 // pred_fallthru
        _
      %p352 = scmp.le.s32.totalorder 2, %s13
      // Predicated region
      $region41: #{conv_tokenizer_pallas.7} parent=5 // pred_check
        %p353 = pneg %p352
      $region42: #{conv_tokenizer_pallas.7} parent=5 // pred_check_branch
        %355 = sbr.rel (%p353) target = $region44
      $region43: #{conv_tokenizer_pallas.7} parent=5 // pred_region
        %s356 = ssub.s32 %s13, 2
        // Predicated region
        $region45: #{conv_tokenizer_pallas.7} parent=43 // pred_check
          %p357 = pneg %p146
        $region46: #{conv_tokenizer_pallas.7} parent=43 // pred_check_branch
          %359 = sbr.rel (%p357) target = $region48
        $region47: #{conv_tokenizer_pallas.7} parent=43 // pred_region
          %s360 = sand.u32 %s131, 1
          %s361 = scalar_lea.sflag [#allocation3], %s360
          %s362 = sand.u32 %s131, 1
          %s363 = smul.addr %s362, 16
          %s364 = scalar_lea.vmem [#allocation2], %s363
          %365 = dma.done %s361, 256
        $region48: #{conv_tokenizer_pallas.7} parent=43 // pred_fallthru
          _
      $region44: #{conv_tokenizer_pallas.7} parent=5 // pred_fallthru
        _
    $region6: #{conv_tokenizer_pallas.7} parent=1 // loop_footer
      %s17 = sadd.s32 1, %s13
    $region7: #{conv_tokenizer_pallas.7} parent=1 // loop_footer_branch
      %12 = sbr.rel target = $region3
    $region8: #{conv_tokenizer_pallas.7} parent=1 // loop_exit
      _
    %366 = vsyncpa [#allocation3], 1
    %s367 = scalar_lea.sflag [#allocation3], 1
    %368 = vsyncpa %s367, 1

</llo_original>
